<compile_context>
chip_gen: v7x
topology: tpu7x:2x2x1
jax: 0.10.0
libtpu: 0.0.40
codegen_flags: <defaults>
</compile_context>

<pallas_src>
import jax
import jax.numpy as jnp
from jax.experimental import pallas as pl
from jax.experimental.pallas import tpu as pltpu


# ----------------------------------------------------------------------------- kernel
def agatt_kernel(v_ref, q_ref, m_ref,
                 w1v_ref, b1v_ref, w2v_ref, b2v_ref,
                 w1q_ref, b1q_ref, w2q_ref, b2q_ref,
                 w1_ref, b1_ref, w2r_ref, b2_ref,
                 o_ref):
    TB, N, D = v_ref.shape          # padded: N % 8 == 0, D % 128 == 0
    H = w1v_ref.shape[1]            # 2 * D (padded)
    cdt = w1v_ref.dtype             # MXU operand dtype (bf16)

    # ---- lin_v FFN over the fused (TB*N, D) rows: fills the MXU M dimension ----
    v2 = v_ref[...].reshape(TB * N, D)
    hv = jnp.maximum(
        jnp.dot(v2, w1v_ref[...], preferred_element_type=jnp.float32) + b1v_ref[...], 0.0)
    vv = jnp.dot(hv.astype(cdt), w2v_ref[...],
                 preferred_element_type=jnp.float32) + b2v_ref[...]            # (TB*N, D) f32

    # ---- lin_q FFN once per batch tile (M = TB) ----
    q2 = q_ref[...].reshape(TB, D)
    hq = jnp.maximum(
        jnp.dot(q2, w1q_ref[...], preferred_element_type=jnp.float32) + b1q_ref[...], 0.0)
    qq = jnp.dot(hq.astype(cdt), w2q_ref[...],
                 preferred_element_type=jnp.float32) + b2q_ref[...]            # (TB, D) f32

    # ---- gate: broadcast qq over num_obj ----
    x = vv.reshape(TB, N, D) * qq[:, None, :]                                  # (TB, N, D) f32

    # ---- lin FFN: dense1 on MXU (M = TB*N); dense2 (2D -> 1) as VPU mul + XLU lane reduce ----
    hx = jnp.maximum(
        jnp.dot(x.reshape(TB * N, D).astype(cdt), w1_ref[...],
                preferred_element_type=jnp.float32) + b1_ref[...], 0.0)        # (TB*N, 2D) f32
    logits = (jnp.sum(hx.reshape(TB, N, H) * w2r_ref[...].astype(jnp.float32), axis=-1)
              + b2_ref[...])                                                   # (TB, N) f32

    # ---- masked softmax over num_obj (lane axis, per batch row) ----
    logits = jnp.where(m_ref[...].reshape(TB, N) != 0, jnp.float32(-65504.0), logits)
    mx = jnp.max(logits, axis=-1, keepdims=True)
    e = jnp.exp(logits - mx)
    s = jnp.sum(e, axis=-1, keepdims=True)
    r = pl.reciprocal(s, approx=True)      # EUP slot
    r = r * (2.0 - s * r)                  # one Newton step: rows sum to 1 at ~f32 precision
    o_ref[...] = (e * r).reshape(TB, 1, N)


# ----------------------------------------------------------------------------- tiling helpers
_VMEM_BUDGET_BYTES = 40 * 1024 * 1024   # safe under v7x's 64 MiB/TC; plenty of headroom on v5e/v6e
_MAX_FUSED_ROWS = 2048                  # fused MXU M-dimension cap (amortizes per-step overhead)


def _round_up(x, m):
    return ((x + m - 1) // m) * m


def _estimate_vmem_bytes(tb, n, d, weight_bytes, cbytes):
    """Rough per-step footprint: double-buffered streamed tiles + f32 intermediates + weights."""
    h = 2 * d
    stream = 2 * (tb * n * d * cbytes      # v tile
                  + tb * d * cbytes        # q tile
                  + tb * n * 4             # mask tile (int32)
                  + tb * n * 4)            # output tile (f32)
    inter = tb * n * (2 * h + 2 * d) * 4 + tb * n * (h + d) * cbytes   # hv/hx/vv/x + bf16 casts
    return stream + inter + 2 * weight_bytes


def _pick_batch_tile(B, n, d, weight_bytes, cbytes):
    """Largest batch tile that (a) leaves >= 2 grid steps when B >= 2 (both v7x TensorCores busy),
    (b) keeps the fused MXU M = TB*n within _MAX_FUSED_ROWS, and (c) fits the VMEM budget.
    Prefers an exact divisor of B to avoid batch padding."""
    hi = max(1, B // 2) if B >= 2 else 1
    hi = min(hi, max(1, _MAX_FUSED_ROWS // n))
    tb = hi
    while tb > 1 and _estimate_vmem_bytes(tb, n, d, weight_bytes, cbytes) > _VMEM_BUDGET_BYTES:
        tb -= 1
    for cand in range(tb, max(1, tb // 2) - 1, -1):
        if B % cand == 0:
            return cand
    return tb


# ----------------------------------------------------------------------------- wrapper
def ag_attention(v, q, v_mask, params, *, compute_dtype=jnp.bfloat16, batch_tile=None):
    """v:(B,N,D) f32, q:(B,D) f32, v_mask:(B,1,1,N) bool -> (B,N) softmax attention weights."""
    B, N, D = v.shape
    H = 2 * D
    cdt = jnp.dtype(compute_dtype)
    cbytes = cdt.itemsize

    (w1v, b1v, w2v, b2v, w1q, b1q, w2q, b2q, w1, b1, w2, b2) = params

    # pad N (sublane) to %8 and D (lane) to %128: reshapes become layout no-ops, MXU lanes full.
    Np = _round_up(N, 8)
    Dp = _round_up(D, 128)
    Hp = 2 * Dp

    def pad2(a, r, c):  # zero-pad a 2-D array to (r, c); zero padding keeps the math exact
        return jnp.pad(a, ((0, r - a.shape[0]), (0, c - a.shape[1])))

    # weights -> padded + bf16 (MXU operands); biases stay f32
    w1v_p = pad2(w1v, Dp, Hp).astype(cdt); b1v_p = pad2(b1v, 1, Hp)
    w2v_p = pad2(w2v, Hp, Dp).astype(cdt); b2v_p = pad2(b2v, 1, Dp)
    w1q_p = pad2(w1q, Dp, Hp).astype(cdt); b1q_p = pad2(b1q, 1, Hp)
    w2q_p = pad2(w2q, Hp, Dp).astype(cdt); b2q_p = pad2(b2q, 1, Dp)
    w1_p  = pad2(w1,  Dp, Hp).astype(cdt); b1_p  = pad2(b1, 1, Hp)
    w2r_p = pad2(w2.reshape(1, H), 1, Hp).astype(cdt)     # (1, 2D) lane-dense row for VPU mul + reduce
    b2_p  = b2.reshape(1, 1).astype(jnp.float32)

    weights = (w1v_p, b1v_p, w2v_p, b2v_p, w1q_p, b1q_p, w2q_p, b2q_p,
               w1_p, b1_p, w2r_p, b2_p)
    weight_bytes = sum(int(a.size) * a.dtype.itemsize for a in weights)

    TB = (_pick_batch_tile(B, Np, Dp, weight_bytes, cbytes)
          if batch_tile is None else batch_tile)
    Bp = _round_up(B, TB)
    grid = (Bp // TB,)

    est = _estimate_vmem_bytes(TB, Np, Dp, weight_bytes, cbytes)
    vmem_limit = int(min(max(est + 16 * 1024 * 1024, 32 * 1024 * 1024), 56 * 1024 * 1024))

    # streamed inputs: padded; v/q cast to bf16; mask lane-dense int32. The singleton middle dim
    # keeps every tiled block's last two dims "full-extent or (8,128)-aligned" for any TB.
    v_p = jnp.pad(v.astype(cdt), ((0, Bp - B), (0, Np - N), (0, Dp - D)))
    q_p = jnp.pad(q.astype(cdt), ((0, Bp - B), (0, Dp - D)))[:, None, :]
    m_p = jnp.pad(v_mask.reshape(B, N).astype(jnp.int32),
                  ((0, Bp - B), (0, Np - N)), constant_values=1)[:, None, :]

    cost = pl.CostEstimate(
        flops=int(Bp * Np * (6 * Dp * Hp + 2 * Hp + Dp + 8) + Bp * 4 * Dp * Hp),
        transcendentals=int(Bp * Np),
        bytes_accessed=int(v_p.size * cbytes + q_p.size * cbytes + m_p.size * 4
                           + weight_bytes + Bp * Np * 4))

    def build(single_buffer_weights):
        def wspec(a):
            # resident weights: constant index_map -> single buffer saves VMEM (key on v7x 64 MiB)
            if single_buffer_weights:
                return pl.BlockSpec(a.shape, lambda i: (0,) * a.ndim,
                                    pipeline_mode=pl.Buffered(1))
            return pl.BlockSpec(a.shape, lambda i: (0,) * a.ndim)

        return pl.pallas_call(
            agatt_kernel,
            out_shape=jax.ShapeDtypeStruct((Bp, 1, Np), jnp.float32),
            grid_spec=pltpu.PrefetchScalarGridSpec(
                num_scalar_prefetch=0,
                grid=grid,
                in_specs=[
                    pl.BlockSpec((TB, Np, Dp), lambda i: (i, 0, 0)),   # v tile
                    pl.BlockSpec((TB, 1, Dp), lambda i: (i, 0, 0)),    # q tile
                    pl.BlockSpec((TB, 1, Np), lambda i: (i, 0, 0)),    # mask tile (lane-dense)
                    wspec(w1v_p), wspec(b1v_p), wspec(w2v_p), wspec(b2v_p),
                    wspec(w1q_p), wspec(b1q_p), wspec(w2q_p), wspec(b2q_p),
                    wspec(w1_p), wspec(b1_p), wspec(w2r_p), wspec(b2_p),
                ],
                out_specs=pl.BlockSpec((TB, 1, Np), lambda i: (i, 0, 0)),  # lane-dense output
            ),
            compiler_params=pltpu.CompilerParams(
                dimension_semantics=("parallel",),
                vmem_limit_bytes=vmem_limit),
            cost_estimate=cost,
        )

    args = (v_p, q_p, m_p, *weights)
    try:
        out = jax.block_until_ready(build(True)(*args))
    except Exception:
        # pipeline_mode=pl.Buffered(1) not supported by this JAX version -> default double-buffering
        out = build(False)(*args)

    return out[:B, 0, :N]


# ----------------------------------------------------------------------------- params & reference
def init_linear(key, fan_in, fan_out):
    # mimic torch.nn.Linear default init: U(-1/sqrt(fan_in), 1/sqrt(fan_in))
    kw, kb = jax.random.split(key)
    bound = 1.0 / (fan_in ** 0.5)
    w = jax.random.uniform(kw, (fan_in, fan_out), jnp.float32, -bound, bound)
    b = jax.random.uniform(kb, (1, fan_out), jnp.float32, -bound, bound)
    return w, b


def init_ffn(key, hidden_dim, outdim):
    k1, k2 = jax.random.split(key)
    w1, b1 = init_linear(k1, hidden_dim, hidden_dim * 2)
    w2, b2 = init_linear(k2, hidden_dim * 2, outdim)
    return w1, b1, w2, b2


def reference(v, q, v_mask, params):
    (w1v, b1v, w2v, b2v, w1q, b1q, w2q, b2q, w1, b1, w2, b2) = params
    ffn = lambda x, w1_, b1_, w2_, b2_: jnp.maximum(x @ w1_ + b1_, 0.0) @ w2_ + b2_
    vv = ffn(v, w1v, b1v, w2v, b2v)                 # (B,N,D)
    qq = ffn(q, w1q, b1q, w2q, b2q)                 # (B,D)
    x = vv * qq[:, None, :]
    logits = ffn(x, w1, b1, w2, b2)[..., 0]         # (B,N)
    m = v_mask.reshape(v.shape[0], v.shape[1])
    logits = jnp.where(m, -65504.0, logits)
    return jax.nn.softmax(logits, axis=1)


# ----------------------------------------------------------------------------- test
if __name__ == "__main__":
    B, N, D = 2, 8, 32  # batch, num_obj, hidden_dim

    key = jax.random.PRNGKey(0)
    kv, kq, km, kp1, kp2, kp3 = jax.random.split(key, 6)

    v = jax.random.normal(kv, (B, N, D), jnp.float32)
    q = jax.random.normal(kq, (B, D), jnp.float32)
    v_mask = jax.random.bernoulli(km, 0.25, (B, 1, 1, N))  # bool, True = masked out

    params = (*init_ffn(kp1, D, D),   # lin_v
              *init_ffn(kp2, D, D),   # lin_q
              *init_ffn(kp3, D, 1))   # lin

    out = ag_attention(v, q, v_mask, params)
    out = jax.block_until_ready(out)

    ref = reference(v, q, v_mask, params)
    assert out.shape == (B, N)
    assert jnp.allclose(jnp.sum(out, axis=1), 1.0, atol=1e-3), "softmax rows must sum to 1"
    # bf16 MXU operands (f32 accumulation): loosened tolerance vs the pure-f32 reference
    assert jnp.allclose(out, ref, atol=2e-2, rtol=2e-2), "mismatch vs pure-JAX reference"

    print("KERNEL_OK")
</pallas_src>

<mosaic_0001>
module attributes {stable_mosaic.version = 11 : i64} {
  func.func @agatt_kernel(%arg0: i32, %arg1: memref<1x8x128xbf16, #tpu.memory_space<vmem>>, %arg2: memref<1x1x128xbf16, #tpu.memory_space<vmem>>, %arg3: memref<1x1x8xi32, #tpu.memory_space<vmem>>, %arg4: memref<128x256xbf16, #tpu.memory_space<vmem>>, %arg5: memref<1x256xf32, #tpu.memory_space<vmem>>, %arg6: memref<256x128xbf16, #tpu.memory_space<vmem>>, %arg7: memref<1x128xf32, #tpu.memory_space<vmem>>, %arg8: memref<128x256xbf16, #tpu.memory_space<vmem>>, %arg9: memref<1x256xf32, #tpu.memory_space<vmem>>, %arg10: memref<256x128xbf16, #tpu.memory_space<vmem>>, %arg11: memref<1x128xf32, #tpu.memory_space<vmem>>, %arg12: memref<128x256xbf16, #tpu.memory_space<vmem>>, %arg13: memref<1x256xf32, #tpu.memory_space<vmem>>, %arg14: memref<1x256xbf16, #tpu.memory_space<vmem>>, %arg15: memref<1x1xf32, #tpu.memory_space<vmem>>, %arg16: memref<1x1x8xf32, #tpu.memory_space<vmem>>) attributes {dimension_semantics = [#tpu.dimension_semantics<parallel>], iteration_bounds = array<i64: 2>, scalar_prefetch = 0 : i64, scratch_operands = 0 : i64, tpu.core_type = #tpu.core_type<tc>, window_params = [{transform_indices = @transform_0, window_bounds = array<i64: 1, 8, 128>}, {transform_indices = @transform_1, window_bounds = array<i64: 1, 1, 128>}, {transform_indices = @transform_2, window_bounds = array<i64: 1, 1, 8>}, {pipeline_mode = #tpu.pipeline_mode<synchronous>, transform_indices = @transform_3, window_bounds = array<i64: 128, 256>}, {pipeline_mode = #tpu.pipeline_mode<synchronous>, transform_indices = @transform_4, window_bounds = array<i64: 1, 256>}, {pipeline_mode = #tpu.pipeline_mode<synchronous>, transform_indices = @transform_5, window_bounds = array<i64: 256, 128>}, {pipeline_mode = #tpu.pipeline_mode<synchronous>, transform_indices = @transform_6, window_bounds = array<i64: 1, 128>}, {pipeline_mode = #tpu.pipeline_mode<synchronous>, transform_indices = @transform_7, window_bounds = array<i64: 128, 256>}, {pipeline_mode = #tpu.pipeline_mode<synchronous>, transform_indices = @transform_8, window_bounds = array<i64: 1, 256>}, {pipeline_mode = #tpu.pipeline_mode<synchronous>, transform_indices = @transform_9, window_bounds = array<i64: 256, 128>}, {pipeline_mode = #tpu.pipeline_mode<synchronous>, transform_indices = @transform_10, window_bounds = array<i64: 1, 128>}, {pipeline_mode = #tpu.pipeline_mode<synchronous>, transform_indices = @transform_11, window_bounds = array<i64: 128, 256>}, {pipeline_mode = #tpu.pipeline_mode<synchronous>, transform_indices = @transform_12, window_bounds = array<i64: 1, 256>}, {pipeline_mode = #tpu.pipeline_mode<synchronous>, transform_indices = @transform_13, window_bounds = array<i64: 1, 256>}, {pipeline_mode = #tpu.pipeline_mode<synchronous>, transform_indices = @transform_14, window_bounds = array<i64: 1, 1>}, {transform_indices = @transform_15, window_bounds = array<i64: 1, 1, 8>}]} {
    %c0 = arith.constant 0 : index
    %c0_0 = arith.constant 0 : index
    %c0_1 = arith.constant 0 : index
    %0 = vector.load %arg1[%c0, %c0_0, %c0_1] : memref<1x8x128xbf16, #tpu.memory_space<vmem>>, vector<1x8x128xbf16>
    %1 = vector.shape_cast %0 : vector<1x8x128xbf16> to vector<8x128xbf16>
    %c0_2 = arith.constant 0 : index
    %c0_3 = arith.constant 0 : index
    %2 = vector.load %arg4[%c0_2, %c0_3] : memref<128x256xbf16, #tpu.memory_space<vmem>>, vector<128x256xbf16>
    %cst = arith.constant dense<0.000000e+00> : vector<8x256xf32>
    %3 = tpu.matmul %1, %2, %cst {dimension_numbers = #tpu.dot_dimension_numbers<[1], [0], [0], [1], [0, 0, 1, 1], [], []>} : vector<8x128xbf16>, vector<128x256xbf16>, vector<8x256xf32> -> vector<8x256xf32>
    %c0_4 = arith.constant 0 : index
    %c0_5 = arith.constant 0 : index
    %4 = vector.load %arg5[%c0_4, %c0_5] : memref<1x256xf32, #tpu.memory_space<vmem>>, vector<1x256xf32>
    %5 = vector.broadcast %4 : vector<1x256xf32> to vector<8x256xf32>
    %6 = arith.addf %3, %5 : vector<8x256xf32>
    %cst_6 = arith.constant 0.000000e+00 : f32
    %7 = vector.broadcast %cst_6 : f32 to vector<8x256xf32>
    %8 = arith.maximumf %6, %7 : vector<8x256xf32>
    %9 = arith.truncf %8 : vector<8x256xf32> to vector<8x256xbf16>
    %c0_7 = arith.constant 0 : index
    %c0_8 = arith.constant 0 : index
    %10 = vector.load %arg6[%c0_7, %c0_8] : memref<256x128xbf16, #tpu.memory_space<vmem>>, vector<256x128xbf16>
    %cst_9 = arith.constant dense<0.000000e+00> : vector<8x128xf32>
    %11 = tpu.matmul %9, %10, %cst_9 {dimension_numbers = #tpu.dot_dimension_numbers<[1], [0], [0], [1], [0, 0, 1, 1], [], []>} : vector<8x256xbf16>, vector<256x128xbf16>, vector<8x128xf32> -> vector<8x128xf32>
    %c0_10 = arith.constant 0 : index
    %c0_11 = arith.constant 0 : index
    %12 = vector.load %arg7[%c0_10, %c0_11] : memref<1x128xf32, #tpu.memory_space<vmem>>, vector<1x128xf32>
    %13 = vector.broadcast %12 : vector<1x128xf32> to vector<8x128xf32>
    %14 = arith.addf %11, %13 : vector<8x128xf32>
    %c0_12 = arith.constant 0 : index
    %c0_13 = arith.constant 0 : index
    %c0_14 = arith.constant 0 : index
    %15 = vector.load %arg2[%c0_12, %c0_13, %c0_14] : memref<1x1x128xbf16, #tpu.memory_space<vmem>>, vector<1x1x128xbf16>
    %16 = vector.shape_cast %15 : vector<1x1x128xbf16> to vector<1x128xbf16>
    %c0_15 = arith.constant 0 : index
    %c0_16 = arith.constant 0 : index
    %17 = vector.load %arg8[%c0_15, %c0_16] : memref<128x256xbf16, #tpu.memory_space<vmem>>, vector<128x256xbf16>
    %cst_17 = arith.constant dense<0.000000e+00> : vector<1x256xf32>
    %18 = tpu.matmul %16, %17, %cst_17 {dimension_numbers = #tpu.dot_dimension_numbers<[1], [0], [0], [1], [0, 0, 1, 1], [], []>} : vector<1x128xbf16>, vector<128x256xbf16>, vector<1x256xf32> -> vector<1x256xf32>
    %c0_18 = arith.constant 0 : index
    %c0_19 = arith.constant 0 : index
    %19 = vector.load %arg9[%c0_18, %c0_19] : memref<1x256xf32, #tpu.memory_space<vmem>>, vector<1x256xf32>
    %20 = arith.addf %18, %19 : vector<1x256xf32>
    %cst_20 = arith.constant 0.000000e+00 : f32
    %21 = vector.broadcast %cst_20 : f32 to vector<1x256xf32>
    %22 = arith.maximumf %20, %21 : vector<1x256xf32>
    %23 = arith.truncf %22 : vector<1x256xf32> to vector<1x256xbf16>
    %c0_21 = arith.constant 0 : index
    %c0_22 = arith.constant 0 : index
    %24 = vector.load %arg10[%c0_21, %c0_22] : memref<256x128xbf16, #tpu.memory_space<vmem>>, vector<256x128xbf16>
    %cst_23 = arith.constant dense<0.000000e+00> : vector<1x128xf32>
    %25 = tpu.matmul %23, %24, %cst_23 {dimension_numbers = #tpu.dot_dimension_numbers<[1], [0], [0], [1], [0, 0, 1, 1], [], []>} : vector<1x256xbf16>, vector<256x128xbf16>, vector<1x128xf32> -> vector<1x128xf32>
    %c0_24 = arith.constant 0 : index
    %c0_25 = arith.constant 0 : index
    %26 = vector.load %arg11[%c0_24, %c0_25] : memref<1x128xf32, #tpu.memory_space<vmem>>, vector<1x128xf32>
    %27 = arith.addf %25, %26 : vector<1x128xf32>
    %28 = vector.shape_cast %14 : vector<8x128xf32> to vector<1x8x128xf32>
    %29 = vector.shape_cast %27 : vector<1x128xf32> to vector<1x1x128xf32>
    %30 = vector.broadcast %29 : vector<1x1x128xf32> to vector<1x8x128xf32>
    %31 = arith.mulf %28, %30 : vector<1x8x128xf32>
    %32 = vector.shape_cast %31 : vector<1x8x128xf32> to vector<8x128xf32>
    %33 = arith.truncf %32 : vector<8x128xf32> to vector<8x128xbf16>
    %c0_26 = arith.constant 0 : index
    %c0_27 = arith.constant 0 : index
    %34 = vector.load %arg12[%c0_26, %c0_27] : memref<128x256xbf16, #tpu.memory_space<vmem>>, vector<128x256xbf16>
    %cst_28 = arith.constant dense<0.000000e+00> : vector<8x256xf32>
    %35 = tpu.matmul %33, %34, %cst_28 {dimension_numbers = #tpu.dot_dimension_numbers<[1], [0], [0], [1], [0, 0, 1, 1], [], []>} : vector<8x128xbf16>, vector<128x256xbf16>, vector<8x256xf32> -> vector<8x256xf32>
    %c0_29 = arith.constant 0 : index
    %c0_30 = arith.constant 0 : index
    %36 = vector.load %arg13[%c0_29, %c0_30] : memref<1x256xf32, #tpu.memory_space<vmem>>, vector<1x256xf32>
    %37 = vector.broadcast %36 : vector<1x256xf32> to vector<8x256xf32>
    %38 = arith.addf %35, %37 : vector<8x256xf32>
    %cst_31 = arith.constant 0.000000e+00 : f32
    %39 = vector.broadcast %cst_31 : f32 to vector<8x256xf32>
    %40 = arith.maximumf %38, %39 : vector<8x256xf32>
    %41 = vector.shape_cast %40 : vector<8x256xf32> to vector<1x8x256xf32>
    %c0_32 = arith.constant 0 : index
    %c0_33 = arith.constant 0 : index
    %42 = vector.load %arg14[%c0_32, %c0_33] : memref<1x256xbf16, #tpu.memory_space<vmem>>, vector<1x256xbf16>
    %43 = arith.extf %42 : vector<1x256xbf16> to vector<1x256xf32>
    %44 = vector.shape_cast %43 : vector<1x256xf32> to vector<1x1x256xf32>
    %45 = vector.broadcast %44 : vector<1x1x256xf32> to vector<1x8x256xf32>
    %46 = arith.mulf %41, %45 : vector<1x8x256xf32>
    %cst_34 = arith.constant dense<0.000000e+00> : vector<1x8xf32>
    %47 = vector.multi_reduction <add>, %46, %cst_34 [2] : vector<1x8x256xf32> to vector<1x8xf32>
    %c0_35 = arith.constant 0 : index
    %c0_36 = arith.constant 0 : index
    %48 = vector.load %arg15[%c0_35, %c0_36] : memref<1x1xf32, #tpu.memory_space<vmem>>, vector<1x1xf32>
    %49 = vector.broadcast %48 : vector<1x1xf32> to vector<1x8xf32>
    %50 = arith.addf %47, %49 : vector<1x8xf32>
    %c0_37 = arith.constant 0 : index
    %c0_38 = arith.constant 0 : index
    %c0_39 = arith.constant 0 : index
    %51 = vector.load %arg3[%c0_37, %c0_38, %c0_39] : memref<1x1x8xi32, #tpu.memory_space<vmem>>, vector<1x1x8xi32>
    %52 = vector.shape_cast %51 : vector<1x1x8xi32> to vector<1x8xi32>
    %c0_i32 = arith.constant 0 : i32
    %53 = vector.broadcast %c0_i32 : i32 to vector<1x8xi32>
    %54 = arith.cmpi ne, %52, %53 : vector<1x8xi32>
    %cst_40 = arith.constant -6.550400e+04 : f32
    %55 = vector.broadcast %cst_40 : f32 to vector<1x8xf32>
    %56 = arith.select %54, %55, %50 : vector<1x8xi1>, vector<1x8xf32>
    %cst_41 = arith.constant dense<0xFF800000> : vector<1xf32>
    %57 = vector.multi_reduction <maximumf>, %56, %cst_41 [1] : vector<1x8xf32> to vector<1xf32>
    %58 = vector.shape_cast %57 : vector<1xf32> to vector<1x1xf32>
    %59 = vector.broadcast %58 : vector<1x1xf32> to vector<1x8xf32>
    %60 = arith.subf %56, %59 : vector<1x8xf32>
    %61 = math.exp %60 : vector<1x8xf32>
    %cst_42 = arith.constant dense<0.000000e+00> : vector<1xf32>
    %62 = vector.multi_reduction <add>, %61, %cst_42 [1] : vector<1x8xf32> to vector<1xf32>
    %63 = vector.shape_cast %62 : vector<1xf32> to vector<1x1xf32>
    %64 = tpu.reciprocal %63 {approx = true} : vector<1x1xf32> -> vector<1x1xf32>
    %65 = arith.mulf %63, %64 : vector<1x1xf32>
    %cst_43 = arith.constant 2.000000e+00 : f32
    %66 = vector.broadcast %cst_43 : f32 to vector<1x1xf32>
    %67 = arith.subf %66, %65 : vector<1x1xf32>
    %68 = arith.mulf %64, %67 : vector<1x1xf32>
    %69 = vector.broadcast %68 : vector<1x1xf32> to vector<1x8xf32>
    %70 = arith.mulf %61, %69 : vector<1x8xf32>
    %71 = vector.shape_cast %70 : vector<1x8xf32> to vector<1x1x8xf32>
    %c0_44 = arith.constant 0 : index
    %c0_45 = arith.constant 0 : index
    %c0_46 = arith.constant 0 : index
    %72 = vector.load %arg16[%c0_44, %c0_45, %c0_46] : memref<1x1x8xf32, #tpu.memory_space<vmem>>, vector<1x1x8xf32>
    tpu.vector_store %arg16[%c0_44, %c0_45, %c0_46], %71 {strides = array<i32>} : memref<1x1x8xf32, #tpu.memory_space<vmem>>, vector<1x1x8xf32>,
    return
  }
  func.func @transform_0(%arg0: i32) -> (i32, i32, i32) {
    %c0_i32 = arith.constant 0 : i32
    %c0_i32_0 = arith.constant 0 : i32
    %c0_i32_1 = arith.constant 0 : i32
    return %arg0, %c0_i32, %c0_i32_0 : i32, i32, i32
  }
  func.func @transform_1(%arg0: i32) -> (i32, i32, i32) {
    %c0_i32 = arith.constant 0 : i32
    %c0_i32_0 = arith.constant 0 : i32
    %c0_i32_1 = arith.constant 0 : i32
    return %arg0, %c0_i32, %c0_i32_0 : i32, i32, i32
  }
  func.func @transform_2(%arg0: i32) -> (i32, i32, i32) {
    %c0_i32 = arith.constant 0 : i32
    %c0_i32_0 = arith.constant 0 : i32
    %c0_i32_1 = arith.constant 0 : i32
    return %arg0, %c0_i32, %c0_i32_0 : i32, i32, i32
  }
  func.func @transform_3(%arg0: i32) -> (i32, i32) {
    %c0_i32 = arith.constant 0 : i32
    %c0_i32_0 = arith.constant 0 : i32
    %c0_i32_1 = arith.constant 0 : i32
    return %c0_i32, %c0_i32_0 : i32, i32
  }
  func.func @transform_4(%arg0: i32) -> (i32, i32) {
    %c0_i32 = arith.constant 0 : i32
    %c0_i32_0 = arith.constant 0 : i32
    %c0_i32_1 = arith.constant 0 : i32
    return %c0_i32, %c0_i32_0 : i32, i32
  }
  func.func @transform_5(%arg0: i32) -> (i32, i32) {
    %c0_i32 = arith.constant 0 : i32
    %c0_i32_0 = arith.constant 0 : i32
    %c0_i32_1 = arith.constant 0 : i32
    return %c0_i32, %c0_i32_0 : i32, i32
  }
  func.func @transform_6(%arg0: i32) -> (i32, i32) {
    %c0_i32 = arith.constant 0 : i32
    %c0_i32_0 = arith.constant 0 : i32
    %c0_i32_1 = arith.constant 0 : i32
    return %c0_i32, %c0_i32_0 : i32, i32
  }
  func.func @transform_7(%arg0: i32) -> (i32, i32) {
    %c0_i32 = arith.constant 0 : i32
    %c0_i32_0 = arith.constant 0 : i32
    %c0_i32_1 = arith.constant 0 : i32
    return %c0_i32, %c0_i32_0 : i32, i32
  }
  func.func @transform_8(%arg0: i32) -> (i32, i32) {
    %c0_i32 = arith.constant 0 : i32
    %c0_i32_0 = arith.constant 0 : i32
    %c0_i32_1 = arith.constant 0 : i32
    return %c0_i32, %c0_i32_0 : i32, i32
  }
  func.func @transform_9(%arg0: i32) -> (i32, i32) {
    %c0_i32 = arith.constant 0 : i32
    %c0_i32_0 = arith.constant 0 : i32
    %c0_i32_1 = arith.constant 0 : i32
    return %c0_i32, %c0_i32_0 : i32, i32
  }
  func.func @transform_10(%arg0: i32) -> (i32, i32) {
    %c0_i32 = arith.constant 0 : i32
    %c0_i32_0 = arith.constant 0 : i32
    %c0_i32_1 = arith.constant 0 : i32
    return %c0_i32, %c0_i32_0 : i32, i32
  }
  func.func @transform_11(%arg0: i32) -> (i32, i32) {
    %c0_i32 = arith.constant 0 : i32
    %c0_i32_0 = arith.constant 0 : i32
    %c0_i32_1 = arith.constant 0 : i32
    return %c0_i32, %c0_i32_0 : i32, i32
  }
  func.func @transform_12(%arg0: i32) -> (i32, i32) {
    %c0_i32 = arith.constant 0 : i32
    %c0_i32_0 = arith.constant 0 : i32
    %c0_i32_1 = arith.constant 0 : i32
    return %c0_i32, %c0_i32_0 : i32, i32
  }
  func.func @transform_13(%arg0: i32) -> (i32, i32) {
    %c0_i32 = arith.constant 0 : i32
    %c0_i32_0 = arith.constant 0 : i32
    %c0_i32_1 = arith.constant 0 : i32
    return %c0_i32, %c0_i32_0 : i32, i32
  }
  func.func @transform_14(%arg0: i32) -> (i32, i32) {
    %c0_i32 = arith.constant 0 : i32
    %c0_i32_0 = arith.constant 0 : i32
    %c0_i32_1 = arith.constant 0 : i32
    return %c0_i32, %c0_i32_0 : i32, i32
  }
  func.func @transform_15(%arg0: i32) -> (i32, i32, i32) {
    %c0_i32 = arith.constant 0 : i32
    %c0_i32_0 = arith.constant 0 : i32
    %c0_i32_1 = arith.constant 0 : i32
    return %arg0, %c0_i32, %c0_i32_0 : i32, i32, i32
  }
}

module attributes {stable_mosaic.version = 11 : i64} {
  func.func @agatt_kernel(%arg0: i32, %arg1: memref<1x8x128xbf16, #tpu.memory_space<vmem>>, %arg2: memref<1x1x128xbf16, #tpu.memory_space<vmem>>, %arg3: memref<1x1x8xi32, #tpu.memory_space<vmem>>, %arg4: memref<128x256xbf16, #tpu.memory_space<vmem>>, %arg5: memref<1x256xf32, #tpu.memory_space<vmem>>, %arg6: memref<256x128xbf16, #tpu.memory_space<vmem>>, %arg7: memref<1x128xf32, #tpu.memory_space<vmem>>, %arg8: memref<128x256xbf16, #tpu.memory_space<vmem>>, %arg9: memref<1x256xf32, #tpu.memory_space<vmem>>, %arg10: memref<256x128xbf16, #tpu.memory_space<vmem>>, %arg11: memref<1x128xf32, #tpu.memory_space<vmem>>, %arg12: memref<128x256xbf16, #tpu.memory_space<vmem>>, %arg13: memref<1x256xf32, #tpu.memory_space<vmem>>, %arg14: memref<1x256xbf16, #tpu.memory_space<vmem>>, %arg15: memref<1x1xf32, #tpu.memory_space<vmem>>, %arg16: memref<1x1x8xf32, #tpu.memory_space<vmem>>) attributes {dimension_semantics = [#tpu.dimension_semantics<parallel>], iteration_bounds = array<i64: 2>, scalar_prefetch = 0 : i64, scratch_operands = 0 : i64, tpu.core_type = #tpu.core_type<tc>, window_params = [{transform_indices = @transform_0, window_bounds = array<i64: 1, 8, 128>}, {transform_indices = @transform_1, window_bounds = array<i64: 1, 1, 128>}, {transform_indices = @transform_2, window_bounds = array<i64: 1, 1, 8>}, {pipeline_mode = #tpu.pipeline_mode<synchronous>, transform_indices = @transform_3, window_bounds = array<i64: 128, 256>}, {pipeline_mode = #tpu.pipeline_mode<synchronous>, transform_indices = @transform_4, window_bounds = array<i64: 1, 256>}, {pipeline_mode = #tpu.pipeline_mode<synchronous>, transform_indices = @transform_5, window_bounds = array<i64: 256, 128>}, {pipeline_mode = #tpu.pipeline_mode<synchronous>, transform_indices = @transform_6, window_bounds = array<i64: 1, 128>}, {pipeline_mode = #tpu.pipeline_mode<synchronous>, transform_indices = @transform_7, window_bounds = array<i64: 128, 256>}, {pipeline_mode = #tpu.pipeline_mode<synchronous>, transform_indices = @transform_8, window_bounds = array<i64: 1, 256>}, {pipeline_mode = #tpu.pipeline_mode<synchronous>, transform_indices = @transform_9, window_bounds = array<i64: 256, 128>}, {pipeline_mode = #tpu.pipeline_mode<synchronous>, transform_indices = @transform_10, window_bounds = array<i64: 1, 128>}, {pipeline_mode = #tpu.pipeline_mode<synchronous>, transform_indices = @transform_11, window_bounds = array<i64: 128, 256>}, {pipeline_mode = #tpu.pipeline_mode<synchronous>, transform_indices = @transform_12, window_bounds = array<i64: 1, 256>}, {pipeline_mode = #tpu.pipeline_mode<synchronous>, transform_indices = @transform_13, window_bounds = array<i64: 1, 256>}, {pipeline_mode = #tpu.pipeline_mode<synchronous>, transform_indices = @transform_14, window_bounds = array<i64: 1, 1>}, {transform_indices = @transform_15, window_bounds = array<i64: 1, 1, 8>}]} {
    %c0 = arith.constant 0 : index
    %c0_0 = arith.constant 0 : index
    %c0_1 = arith.constant 0 : index
    %0 = vector.load %arg1[%c0, %c0_0, %c0_1] : memref<1x8x128xbf16, #tpu.memory_space<vmem>>, vector<1x8x128xbf16>
    %1 = vector.shape_cast %0 : vector<1x8x128xbf16> to vector<8x128xbf16>
    %c0_2 = arith.constant 0 : index
    %c0_3 = arith.constant 0 : index
    %2 = vector.load %arg4[%c0_2, %c0_3] : memref<128x256xbf16, #tpu.memory_space<vmem>>, vector<128x256xbf16>
    %cst = arith.constant dense<0.000000e+00> : vector<8x256xf32>
    %3 = tpu.matmul %1, %2, %cst {dimension_numbers = #tpu.dot_dimension_numbers<[1], [0], [0], [1], [0, 0, 1, 1], [], []>} : vector<8x128xbf16>, vector<128x256xbf16>, vector<8x256xf32> -> vector<8x256xf32>
    %c0_4 = arith.constant 0 : index
    %c0_5 = arith.constant 0 : index
    %4 = vector.load %arg5[%c0_4, %c0_5] : memref<1x256xf32, #tpu.memory_space<vmem>>, vector<1x256xf32>
    %5 = vector.broadcast %4 : vector<1x256xf32> to vector<8x256xf32>
    %6 = arith.addf %3, %5 : vector<8x256xf32>
    %cst_6 = arith.constant 0.000000e+00 : f32
    %7 = vector.broadcast %cst_6 : f32 to vector<8x256xf32>
    %8 = arith.maximumf %6, %7 : vector<8x256xf32>
    %9 = arith.truncf %8 : vector<8x256xf32> to vector<8x256xbf16>
    %c0_7 = arith.constant 0 : index
    %c0_8 = arith.constant 0 : index
    %10 = vector.load %arg6[%c0_7, %c0_8] : memref<256x128xbf16, #tpu.memory_space<vmem>>, vector<256x128xbf16>
    %cst_9 = arith.constant dense<0.000000e+00> : vector<8x128xf32>
    %11 = tpu.matmul %9, %10, %cst_9 {dimension_numbers = #tpu.dot_dimension_numbers<[1], [0], [0], [1], [0, 0, 1, 1], [], []>} : vector<8x256xbf16>, vector<256x128xbf16>, vector<8x128xf32> -> vector<8x128xf32>
    %c0_10 = arith.constant 0 : index
    %c0_11 = arith.constant 0 : index
    %12 = vector.load %arg7[%c0_10, %c0_11] : memref<1x128xf32, #tpu.memory_space<vmem>>, vector<1x128xf32>
    %13 = vector.broadcast %12 : vector<1x128xf32> to vector<8x128xf32>
    %14 = arith.addf %11, %13 : vector<8x128xf32>
    %c0_12 = arith.constant 0 : index
    %c0_13 = arith.constant 0 : index
    %c0_14 = arith.constant 0 : index
    %15 = vector.load %arg2[%c0_12, %c0_13, %c0_14] : memref<1x1x128xbf16, #tpu.memory_space<vmem>>, vector<1x1x128xbf16>
    %16 = vector.shape_cast %15 : vector<1x1x128xbf16> to vector<1x128xbf16>
    %c0_15 = arith.constant 0 : index
    %c0_16 = arith.constant 0 : index
    %17 = vector.load %arg8[%c0_15, %c0_16] : memref<128x256xbf16, #tpu.memory_space<vmem>>, vector<128x256xbf16>
    %cst_17 = arith.constant dense<0.000000e+00> : vector<1x256xf32>
    %18 = tpu.matmul %16, %17, %cst_17 {dimension_numbers = #tpu.dot_dimension_numbers<[1], [0], [0], [1], [0, 0, 1, 1], [], []>} : vector<1x128xbf16>, vector<128x256xbf16>, vector<1x256xf32> -> vector<1x256xf32>
    %c0_18 = arith.constant 0 : index
    %c0_19 = arith.constant 0 : index
    %19 = vector.load %arg9[%c0_18, %c0_19] : memref<1x256xf32, #tpu.memory_space<vmem>>, vector<1x256xf32>
    %20 = arith.addf %18, %19 : vector<1x256xf32>
    %cst_20 = arith.constant 0.000000e+00 : f32
    %21 = vector.broadcast %cst_20 : f32 to vector<1x256xf32>
    %22 = arith.maximumf %20, %21 : vector<1x256xf32>
    %23 = arith.truncf %22 : vector<1x256xf32> to vector<1x256xbf16>
    %c0_21 = arith.constant 0 : index
    %c0_22 = arith.constant 0 : index
    %24 = vector.load %arg10[%c0_21, %c0_22] : memref<256x128xbf16, #tpu.memory_space<vmem>>, vector<256x128xbf16>
    %cst_23 = arith.constant dense<0.000000e+00> : vector<1x128xf32>
    %25 = tpu.matmul %23, %24, %cst_23 {dimension_numbers = #tpu.dot_dimension_numbers<[1], [0], [0], [1], [0, 0, 1, 1], [], []>} : vector<1x256xbf16>, vector<256x128xbf16>, vector<1x128xf32> -> vector<1x128xf32>
    %c0_24 = arith.constant 0 : index
    %c0_25 = arith.constant 0 : index
    %26 = vector.load %arg11[%c0_24, %c0_25] : memref<1x128xf32, #tpu.memory_space<vmem>>, vector<1x128xf32>
    %27 = arith.addf %25, %26 : vector<1x128xf32>
    %28 = vector.shape_cast %14 : vector<8x128xf32> to vector<1x8x128xf32>
    %29 = vector.shape_cast %27 : vector<1x128xf32> to vector<1x1x128xf32>
    %30 = vector.broadcast %29 : vector<1x1x128xf32> to vector<1x8x128xf32>
    %31 = arith.mulf %28, %30 : vector<1x8x128xf32>
    %32 = vector.shape_cast %31 : vector<1x8x128xf32> to vector<8x128xf32>
    %33 = arith.truncf %32 : vector<8x128xf32> to vector<8x128xbf16>
    %c0_26 = arith.constant 0 : index
    %c0_27 = arith.constant 0 : index
    %34 = vector.load %arg12[%c0_26, %c0_27] : memref<128x256xbf16, #tpu.memory_space<vmem>>, vector<128x256xbf16>
    %cst_28 = arith.constant dense<0.000000e+00> : vector<8x256xf32>
    %35 = tpu.matmul %33, %34, %cst_28 {dimension_numbers = #tpu.dot_dimension_numbers<[1], [0], [0], [1], [0, 0, 1, 1], [], []>} : vector<8x128xbf16>, vector<128x256xbf16>, vector<8x256xf32> -> vector<8x256xf32>
    %c0_29 = arith.constant 0 : index
    %c0_30 = arith.constant 0 : index
    %36 = vector.load %arg13[%c0_29, %c0_30] : memref<1x256xf32, #tpu.memory_space<vmem>>, vector<1x256xf32>
    %37 = vector.broadcast %36 : vector<1x256xf32> to vector<8x256xf32>
    %38 = arith.addf %35, %37 : vector<8x256xf32>
    %cst_31 = arith.constant 0.000000e+00 : f32
    %39 = vector.broadcast %cst_31 : f32 to vector<8x256xf32>
    %40 = arith.maximumf %38, %39 : vector<8x256xf32>
    %41 = vector.shape_cast %40 : vector<8x256xf32> to vector<1x8x256xf32>
    %c0_32 = arith.constant 0 : index
    %c0_33 = arith.constant 0 : index
    %42 = vector.load %arg14[%c0_32, %c0_33] : memref<1x256xbf16, #tpu.memory_space<vmem>>, vector<1x256xbf16>
    %43 = arith.extf %42 : vector<1x256xbf16> to vector<1x256xf32>
    %44 = vector.shape_cast %43 : vector<1x256xf32> to vector<1x1x256xf32>
    %45 = vector.broadcast %44 : vector<1x1x256xf32> to vector<1x8x256xf32>
    %46 = arith.mulf %41, %45 : vector<1x8x256xf32>
    %cst_34 = arith.constant dense<0.000000e+00> : vector<1x8xf32>
    %47 = vector.multi_reduction <add>, %46, %cst_34 [2] : vector<1x8x256xf32> to vector<1x8xf32>
    %c0_35 = arith.constant 0 : index
    %c0_36 = arith.constant 0 : index
    %48 = vector.load %arg15[%c0_35, %c0_36] : memref<1x1xf32, #tpu.memory_space<vmem>>, vector<1x1xf32>
    %49 = vector.broadcast %48 : vector<1x1xf32> to vector<1x8xf32>
    %50 = arith.addf %47, %49 : vector<1x8xf32>
    %c0_37 = arith.constant 0 : index
    %c0_38 = arith.constant 0 : index
    %c0_39 = arith.constant 0 : index
    %51 = vector.load %arg3[%c0_37, %c0_38, %c0_39] : memref<1x1x8xi32, #tpu.memory_space<vmem>>, vector<1x1x8xi32>
    %52 = vector.shape_cast %51 : vector<1x1x8xi32> to vector<1x8xi32>
    %c0_i32 = arith.constant 0 : i32
    %53 = vector.broadcast %c0_i32 : i32 to vector<1x8xi32>
    %54 = arith.cmpi ne, %52, %53 : vector<1x8xi32>
    %cst_40 = arith.constant -6.550400e+04 : f32
    %55 = vector.broadcast %cst_40 : f32 to vector<1x8xf32>
    %56 = arith.select %54, %55, %50 : vector<1x8xi1>, vector<1x8xf32>
    %cst_41 = arith.constant dense<0xFF800000> : vector<1xf32>
    %57 = vector.multi_reduction <maximumf>, %56, %cst_41 [1] : vector<1x8xf32> to vector<1xf32>
    %58 = vector.shape_cast %57 : vector<1xf32> to vector<1x1xf32>
    %59 = vector.broadcast %58 : vector<1x1xf32> to vector<1x8xf32>
    %60 = arith.subf %56, %59 : vector<1x8xf32>
    %61 = math.exp %60 : vector<1x8xf32>
    %cst_42 = arith.constant dense<0.000000e+00> : vector<1xf32>
    %62 = vector.multi_reduction <add>, %61, %cst_42 [1] : vector<1x8xf32> to vector<1xf32>
    %63 = vector.shape_cast %62 : vector<1xf32> to vector<1x1xf32>
    %64 = tpu.reciprocal %63 {approx = true} : vector<1x1xf32> -> vector<1x1xf32>
    %65 = arith.mulf %63, %64 : vector<1x1xf32>
    %cst_43 = arith.constant 2.000000e+00 : f32
    %66 = vector.broadcast %cst_43 : f32 to vector<1x1xf32>
    %67 = arith.subf %66, %65 : vector<1x1xf32>
    %68 = arith.mulf %64, %67 : vector<1x1xf32>
    %69 = vector.broadcast %68 : vector<1x1xf32> to vector<1x8xf32>
    %70 = arith.mulf %61, %69 : vector<1x8xf32>
    %71 = vector.shape_cast %70 : vector<1x8xf32> to vector<1x1x8xf32>
    %c0_44 = arith.constant 0 : index
    %c0_45 = arith.constant 0 : index
    %c0_46 = arith.constant 0 : index
    %72 = vector.load %arg16[%c0_44, %c0_45, %c0_46] : memref<1x1x8xf32, #tpu.memory_space<vmem>>, vector<1x1x8xf32>
    tpu.vector_store %arg16[%c0_44, %c0_45, %c0_46], %71 {strides = array<i32>} : memref<1x1x8xf32, #tpu.memory_space<vmem>>, vector<1x1x8xf32>,
    return
  }
  func.func @transform_0(%arg0: i32) -> (i32, i32, i32) {
    %c0_i32 = arith.constant 0 : i32
    %c0_i32_0 = arith.constant 0 : i32
    %c0_i32_1 = arith.constant 0 : i32
    return %arg0, %c0_i32, %c0_i32_0 : i32, i32, i32
  }
  func.func @transform_1(%arg0: i32) -> (i32, i32, i32) {
    %c0_i32 = arith.constant 0 : i32
    %c0_i32_0 = arith.constant 0 : i32
    %c0_i32_1 = arith.constant 0 : i32
    return %arg0, %c0_i32, %c0_i32_0 : i32, i32, i32
  }
  func.func @transform_2(%arg0: i32) -> (i32, i32, i32) {
    %c0_i32 = arith.constant 0 : i32
    %c0_i32_0 = arith.constant 0 : i32
    %c0_i32_1 = arith.constant 0 : i32
    return %arg0, %c0_i32, %c0_i32_0 : i32, i32, i32
  }
  func.func @transform_3(%arg0: i32) -> (i32, i32) {
    %c0_i32 = arith.constant 0 : i32
    %c0_i32_0 = arith.constant 0 : i32
    %c0_i32_1 = arith.constant 0 : i32
    return %c0_i32, %c0_i32_0 : i32, i32
  }
  func.func @transform_4(%arg0: i32) -> (i32, i32) {
    %c0_i32 = arith.constant 0 : i32
    %c0_i32_0 = arith.constant 0 : i32
    %c0_i32_1 = arith.constant 0 : i32
    return %c0_i32, %c0_i32_0 : i32, i32
  }
  func.func @transform_5(%arg0: i32) -> (i32, i32) {
    %c0_i32 = arith.constant 0 : i32
    %c0_i32_0 = arith.constant 0 : i32
    %c0_i32_1 = arith.constant 0 : i32
    return %c0_i32, %c0_i32_0 : i32, i32
  }
  func.func @transform_6(%arg0: i32) -> (i32, i32) {
    %c0_i32 = arith.constant 0 : i32
    %c0_i32_0 = arith.constant 0 : i32
    %c0_i32_1 = arith.constant 0 : i32
    return %c0_i32, %c0_i32_0 : i32, i32
  }
  func.func @transform_7(%arg0: i32) -> (i32, i32) {
    %c0_i32 = arith.constant 0 : i32
    %c0_i32_0 = arith.constant 0 : i32
    %c0_i32_1 = arith.constant 0 : i32
    return %c0_i32, %c0_i32_0 : i32, i32
  }
  func.func @transform_8(%arg0: i32) -> (i32, i32) {
    %c0_i32 = arith.constant 0 : i32
    %c0_i32_0 = arith.constant 0 : i32
    %c0_i32_1 = arith.constant 0 : i32
    return %c0_i32, %c0_i32_0 : i32, i32
  }
  func.func @transform_9(%arg0: i32) -> (i32, i32) {
    %c0_i32 = arith.constant 0 : i32
    %c0_i32_0 = arith.constant 0 : i32
    %c0_i32_1 = arith.constant 0 : i32
    return %c0_i32, %c0_i32_0 : i32, i32
  }
  func.func @transform_10(%arg0: i32) -> (i32, i32) {
    %c0_i32 = arith.constant 0 : i32
    %c0_i32_0 = arith.constant 0 : i32
    %c0_i32_1 = arith.constant 0 : i32
    return %c0_i32, %c0_i32_0 : i32, i32
  }
  func.func @transform_11(%arg0: i32) -> (i32, i32) {
    %c0_i32 = arith.constant 0 : i32
    %c0_i32_0 = arith.constant 0 : i32
    %c0_i32_1 = arith.constant 0 : i32
    return %c0_i32, %c0_i32_0 : i32, i32
  }
  func.func @transform_12(%arg0: i32) -> (i32, i32) {
    %c0_i32 = arith.constant 0 : i32
    %c0_i32_0 = arith.constant 0 : i32
    %c0_i32_1 = arith.constant 0 : i32
    return %c0_i32, %c0_i32_0 : i32, i32
  }
  func.func @transform_13(%arg0: i32) -> (i32, i32) {
    %c0_i32 = arith.constant 0 : i32
    %c0_i32_0 = arith.constant 0 : i32
    %c0_i32_1 = arith.constant 0 : i32
    return %c0_i32, %c0_i32_0 : i32, i32
  }
  func.func @transform_14(%arg0: i32) -> (i32, i32) {
    %c0_i32 = arith.constant 0 : i32
    %c0_i32_0 = arith.constant 0 : i32
    %c0_i32_1 = arith.constant 0 : i32
    return %c0_i32, %c0_i32_0 : i32, i32
  }
  func.func @transform_15(%arg0: i32) -> (i32, i32, i32) {
    %c0_i32 = arith.constant 0 : i32
    %c0_i32_0 = arith.constant 0 : i32
    %c0_i32_1 = arith.constant 0 : i32
    return %arg0, %c0_i32, %c0_i32_0 : i32, i32, i32
  }
}

</mosaic_0001>

<llo_original>
// kernel: tpu_custom_call.1
$region0: #{tpu_custom_call.1}
  #allocation0 [shape = 'u32[]', space=smem, size = 0x4, offset = 0x4, fixed_abs, tag = 'smem constant byte address 0x4 - core index']
  #allocation1 [shape = 'u32[144,128]{1,0:T(1,128)}', space=vmem, size = 0x12000, scoped, tag = 'internal scratch']
  #allocation2 [shape = 'f32[1,1]{1,0:T(1,128)S(1)}', space=vmem, size = 0x200, scoped, tag = 'scoped memory for tpu_custom_call.1']
  %s0 = inlined_call_operand.hbm [shape: bf16[2,8,128], index: 0, kind: input, shape index: {}]
  %s1 = inlined_call_operand.vmem [shape: bf16[2,1,128], index: 1, kind: input, shape index: {}]
  %s2 = inlined_call_operand.vmem [shape: s32[2,1,8], index: 2, kind: input, shape index: {}]
  %s3 = inlined_call_operand.hbm [shape: bf16[128,256], index: 3, kind: input, shape index: {}]
  %s4 = inlined_call_operand.vmem [shape: f32[1,256], index: 4, kind: input, shape index: {}]
  %s5 = inlined_call_operand.hbm [shape: bf16[256,128], index: 5, kind: input, shape index: {}]
  %s6 = inlined_call_operand.vmem [shape: f32[1,128], index: 6, kind: input, shape index: {}]
  %s7 = inlined_call_operand.hbm [shape: bf16[128,256], index: 7, kind: input, shape index: {}]
  %s8 = inlined_call_operand.vmem [shape: f32[1,256], index: 8, kind: input, shape index: {}]
  %s9 = inlined_call_operand.hbm [shape: bf16[256,128], index: 9, kind: input, shape index: {}]
  %s10 = inlined_call_operand.vmem [shape: f32[1,128], index: 10, kind: input, shape index: {}]
  %s11 = inlined_call_operand.hbm [shape: bf16[128,256], index: 11, kind: input, shape index: {}]
  %s12 = inlined_call_operand.vmem [shape: f32[1,256], index: 12, kind: input, shape index: {}]
  %s13 = inlined_call_operand.vmem [shape: bf16[1,256], index: 13, kind: input, shape index: {}]
  %s14 = inlined_call_operand.<no memory space> [shape: f32[1,1], index: 14, kind: input, shape index: {}]
  %s15 = inlined_call_operand.hbm [shape: f32[2,1,8], index: 15, kind: output, shape index: {}]
  %s16 = sld [smem:[#allocation0]]
  $region117: #{tpu_custom_call.1} parent=0
    _
  %s18 = ssub.s32 1, %s16
  %s19 = scalar_select 0, %s18, %s16
  %v20 = vstv %s14
  %21 = vst [vmem:[#allocation2] sm:$0x1] %v20
  $region1: #{tpu_custom_call.1} parent=0
    #allocation3 [shape = 'u8[4096]{0}', space=vmem, size = 0x1000, scoped, tag = 'input window, operand 0']
    #allocation4 [shape = 's32[2]{0}', space=sflag, size = 0x8, scoped, tag = 'scoped memory for tpu_custom_call.1']
    #allocation5 [shape = 's32[2]{0}', space=sflag, size = 0x8, scoped, tag = 'scoped memory for tpu_custom_call.1']
    #allocation6 [shape = 'u8[65536]{0}', space=vmem, size = 0x10000, scoped, tag = 'input window, operand 3, single buffered']
    #allocation7 [shape = 's32[1]{0}', space=sflag, size = 0x4, scoped, tag = 'scoped memory for tpu_custom_call.1']
    #allocation8 [shape = 'u8[65536]{0}', space=vmem, size = 0x10000, scoped, tag = 'input window, operand 5, single buffered']
    #allocation9 [shape = 'u8[65536]{0}', space=vmem, size = 0x10000, scoped, tag = 'input window, operand 7, single buffered']
    #allocation10 [shape = 's32[1]{0}', space=sflag, size = 0x4, scoped, tag = 'scoped memory for tpu_custom_call.1']
    #allocation11 [shape = 'u8[65536]{0}', space=vmem, size = 0x10000, scoped, tag = 'input window, operand 9, single buffered']
    #allocation12 [shape = 'u8[65536]{0}', space=vmem, size = 0x10000, scoped, tag = 'input window, operand 11, single buffered']
    #allocation13 [shape = 's32[1]{0}', space=sflag, size = 0x4, scoped, tag = 'scoped memory for tpu_custom_call.1']
    #allocation14 [shape = 'u8[1024]{0}', space=vmem, size = 0x400, scoped, tag = 'output window, operand 0']
    %22 = vsyncpa [#allocation4], 0
    %s23 = scalar_lea.sflag [#allocation4], 1
    %24 = vsyncpa %s23, 0
    %25 = vsyncpa [#allocation7], 0
    %26 = vsyncpa [#allocation10], 0
    %27 = vsyncpa [#allocation13], 0
    %28 = vsyncpa [#allocation5], 0
    %s29 = scalar_lea.sflag [#allocation5], 1
    %30 = vsyncpa %s29, 0
    loop: start=0, step=1, limit=4
    $region2: #{tpu_custom_call.1} parent=1 // loop_pre_header
      _
    $region3: #{tpu_custom_call.1} parent=1 // loop_header
      %s32 = sphi 0, %s36
      %p33 = scmp.ge.s32.totalorder %s32, 4
      %s42 = sphi 0, %s44
      %s45 = sphi 0, %s42
      %s46 = sphi 0, %s45
      %s62 = sphi 0, %s46
      %s68 = sphi 0, %s70
      %s71 = sphi 0, %s68
      %s72 = sphi 0, %s71
      %s88 = sphi 0, %s72
      %s94 = sphi 0, %s96
      %s97 = sphi 0, %s94
      %s98 = sphi 0, %s97
      %s114 = sphi 0, %s98
      %s118 = sphi 0, %s118
      %s120 = sphi 0, %s118
      %s121 = sphi 0, %s120
      %s135 = sphi 0, %s121
      %s139 = sphi 0, %s139
      %s141 = sphi 0, %s139
      %s142 = sphi 0, %s141
      %s156 = sphi 0, %s142
      %s160 = sphi 0, %s160
      %s162 = sphi 0, %s160
      %s163 = sphi 0, %s162
      %s177 = sphi 0, %s163
      %s181 = sphi 0, %s181
      %s183 = sphi 0, %s181
      %s184 = sphi 0, %s183
      %s198 = sphi 0, %s184
      %s202 = sphi 0, %s202
      %s204 = sphi 0, %s202
      %s205 = sphi 0, %s204
      %s219 = sphi 0, %s205
      %s223 = sphi 0, %s223
      %s225 = sphi 0, %s223
      %s226 = sphi 0, %s225
      %s240 = sphi 0, %s226
      %s244 = sphi 0, %s244
      %s246 = sphi 0, %s244
      %s247 = sphi 0, %s246
      %s261 = sphi 0, %s247
      %s265 = sphi 0, %s265
      %s267 = sphi 0, %s265
      %s268 = sphi 0, %s267
      %s282 = sphi 0, %s268
      %s286 = sphi 0, %s286
      %s288 = sphi 0, %s286
      %s289 = sphi 0, %s288
      %s303 = sphi 0, %s289
      %s307 = sphi 0, %s307
      %s309 = sphi 0, %s307
      %s310 = sphi 0, %s309
      %s324 = sphi 0, %s310
      %s328 = sphi 0, %s328
      %s330 = sphi 0, %s328
      %s331 = sphi 0, %s330
      %s345 = sphi 0, %s331
      %s349 = sphi 0, %s349
      %s351 = sphi 0, %s349
      %s352 = sphi 0, %s351
      %s366 = sphi 0, %s352
      %s372 = sphi 0, %s374
      %s375 = sphi 0, %s372
      %s376 = sphi 0, %s375
      %s392 = sphi 0, %s376
    $region4: #{tpu_custom_call.1} parent=1 // loop_header_branch
      %35 = sbr.rel (%p33) target = $region8
    $region5: #{tpu_custom_call.1} parent=1 // loop_body
      %s37 = ssub.s32 %s32, 1
      %s38 = ssub.s32 %s32, 2
      %s39 = sadd.s32 %s32, 1
      %s40 = ssub.s32 %s32, %s39
      %p41 = scmp.eq.s32.totalorder %s40, 0
      %s43 = sadd.s32 %s42, 1
      %s44 = scalar_select %p41, %s42, %s43
      %p47 = pneg %p41
      %p48 = scmp.eq.s32.totalorder %s32, 1
      %p49 = por %p47, %p48
      %p50 = scmp.ne.s32.totalorder %s42, %s45
      %p51 = scmp.eq.s32.totalorder %s32, 0
      %p52 = por %p50, %p51
      %p53 = scmp.ne.s32.totalorder %s42, %s45
      %p54 = scmp.eq.s32.totalorder %s37, 1
      %p55 = por %p53, %p54
      %p56 = scmp.ne.s32.totalorder %s45, %s46
      %p57 = scmp.eq.s32.totalorder %s37, 0
      %p58 = por %p56, %p57
      %p59 = scmp.ne.s32.totalorder %s45, %s46
      %p60 = scmp.eq.s32.totalorder %s38, 1
      %p61 = por %p59, %p60
      %p63 = scmp.ne.s32.totalorder %s46, %s62
      %p64 = scmp.eq.s32.totalorder %s38, 0
      %p65 = por %p63, %p64
      %s66 = ssub.s32 %s32, %s39
      %p67 = scmp.eq.s32.totalorder %s66, 0
      %s69 = sadd.s32 %s68, 1
      %s70 = scalar_select %p67, %s68, %s69
      %p73 = pneg %p67
      %p74 = scmp.eq.s32.totalorder %s32, 1
      %p75 = por %p73, %p74
      %p76 = scmp.ne.s32.totalorder %s68, %s71
      %p77 = scmp.eq.s32.totalorder %s32, 0
      %p78 = por %p76, %p77
      %p79 = scmp.ne.s32.totalorder %s68, %s71
      %p80 = scmp.eq.s32.totalorder %s37, 1
      %p81 = por %p79, %p80
      %p82 = scmp.ne.s32.totalorder %s71, %s72
      %p83 = scmp.eq.s32.totalorder %s37, 0
      %p84 = por %p82, %p83
      %p85 = scmp.ne.s32.totalorder %s71, %s72
      %p86 = scmp.eq.s32.totalorder %s38, 1
      %p87 = por %p85, %p86
      %p89 = scmp.ne.s32.totalorder %s72, %s88
      %p90 = scmp.eq.s32.totalorder %s38, 0
      %p91 = por %p89, %p90
      %s92 = ssub.s32 %s32, %s39
      %p93 = scmp.eq.s32.totalorder %s92, 0
      %s95 = sadd.s32 %s94, 1
      %s96 = scalar_select %p93, %s94, %s95
      %p99 = pneg %p93
      %p100 = scmp.eq.s32.totalorder %s32, 1
      %p101 = por %p99, %p100
      %p102 = scmp.ne.s32.totalorder %s94, %s97
      %p103 = scmp.eq.s32.totalorder %s32, 0
      %p104 = por %p102, %p103
      %p105 = scmp.ne.s32.totalorder %s94, %s97
      %p106 = scmp.eq.s32.totalorder %s37, 1
      %p107 = por %p105, %p106
      %p108 = scmp.ne.s32.totalorder %s97, %s98
      %p109 = scmp.eq.s32.totalorder %s37, 0
      %p110 = por %p108, %p109
      %p111 = scmp.ne.s32.totalorder %s97, %s98
      %p112 = scmp.eq.s32.totalorder %s38, 1
      %p113 = por %p111, %p112
      %p115 = scmp.ne.s32.totalorder %s98, %s114
      %p116 = scmp.eq.s32.totalorder %s38, 0
      %p117 = por %p115, %p116
      %s119 = sadd.s32 %s118, 1
      %p122 = scmp.eq.s32.totalorder %s32, 1
      %p123 = scmp.ne.s32.totalorder %s118, %s120
      %p124 = scmp.eq.s32.totalorder %s32, 0
      %p125 = por %p123, %p124
      %p126 = scmp.ne.s32.totalorder %s118, %s120
      %p127 = scmp.eq.s32.totalorder %s37, 1
      %p128 = por %p126, %p127
      %p129 = scmp.ne.s32.totalorder %s120, %s121
      %p130 = scmp.eq.s32.totalorder %s37, 0
      %p131 = por %p129, %p130
      %p132 = scmp.ne.s32.totalorder %s120, %s121
      %p133 = scmp.eq.s32.totalorder %s38, 1
      %p134 = por %p132, %p133
      %p136 = scmp.ne.s32.totalorder %s121, %s135
      %p137 = scmp.eq.s32.totalorder %s38, 0
      %p138 = por %p136, %p137
      %s140 = sadd.s32 %s139, 1
      %p143 = scmp.eq.s32.totalorder %s32, 1
      %p144 = scmp.ne.s32.totalorder %s139, %s141
      %p145 = scmp.eq.s32.totalorder %s32, 0
      %p146 = por %p144, %p145
      %p147 = scmp.ne.s32.totalorder %s139, %s141
      %p148 = scmp.eq.s32.totalorder %s37, 1
      %p149 = por %p147, %p148
      %p150 = scmp.ne.s32.totalorder %s141, %s142
      %p151 = scmp.eq.s32.totalorder %s37, 0
      %p152 = por %p150, %p151
      %p153 = scmp.ne.s32.totalorder %s141, %s142
      %p154 = scmp.eq.s32.totalorder %s38, 1
      %p155 = por %p153, %p154
      %p157 = scmp.ne.s32.totalorder %s142, %s156
      %p158 = scmp.eq.s32.totalorder %s38, 0
      %p159 = por %p157, %p158
      %s161 = sadd.s32 %s160, 1
      %p164 = scmp.eq.s32.totalorder %s32, 1
      %p165 = scmp.ne.s32.totalorder %s160, %s162
      %p166 = scmp.eq.s32.totalorder %s32, 0
      %p167 = por %p165, %p166
      %p168 = scmp.ne.s32.totalorder %s160, %s162
      %p169 = scmp.eq.s32.totalorder %s37, 1
      %p170 = por %p168, %p169
      %p171 = scmp.ne.s32.totalorder %s162, %s163
      %p172 = scmp.eq.s32.totalorder %s37, 0
      %p173 = por %p171, %p172
      %p174 = scmp.ne.s32.totalorder %s162, %s163
      %p175 = scmp.eq.s32.totalorder %s38, 1
      %p176 = por %p174, %p175
      %p178 = scmp.ne.s32.totalorder %s163, %s177
      %p179 = scmp.eq.s32.totalorder %s38, 0
      %p180 = por %p178, %p179
      %s182 = sadd.s32 %s181, 1
      %p185 = scmp.eq.s32.totalorder %s32, 1
      %p186 = scmp.ne.s32.totalorder %s181, %s183
      %p187 = scmp.eq.s32.totalorder %s32, 0
      %p188 = por %p186, %p187
      %p189 = scmp.ne.s32.totalorder %s181, %s183
      %p190 = scmp.eq.s32.totalorder %s37, 1
      %p191 = por %p189, %p190
      %p192 = scmp.ne.s32.totalorder %s183, %s184
      %p193 = scmp.eq.s32.totalorder %s37, 0
      %p194 = por %p192, %p193
      %p195 = scmp.ne.s32.totalorder %s183, %s184
      %p196 = scmp.eq.s32.totalorder %s38, 1
      %p197 = por %p195, %p196
      %p199 = scmp.ne.s32.totalorder %s184, %s198
      %p200 = scmp.eq.s32.totalorder %s38, 0
      %p201 = por %p199, %p200
      %s203 = sadd.s32 %s202, 1
      %p206 = scmp.eq.s32.totalorder %s32, 1
      %p207 = scmp.ne.s32.totalorder %s202, %s204
      %p208 = scmp.eq.s32.totalorder %s32, 0
      %p209 = por %p207, %p208
      %p210 = scmp.ne.s32.totalorder %s202, %s204
      %p211 = scmp.eq.s32.totalorder %s37, 1
      %p212 = por %p210, %p211
      %p213 = scmp.ne.s32.totalorder %s204, %s205
      %p214 = scmp.eq.s32.totalorder %s37, 0
      %p215 = por %p213, %p214
      %p216 = scmp.ne.s32.totalorder %s204, %s205
      %p217 = scmp.eq.s32.totalorder %s38, 1
      %p218 = por %p216, %p217
      %p220 = scmp.ne.s32.totalorder %s205, %s219
      %p221 = scmp.eq.s32.totalorder %s38, 0
      %p222 = por %p220, %p221
      %s224 = sadd.s32 %s223, 1
      %p227 = scmp.eq.s32.totalorder %s32, 1
      %p228 = scmp.ne.s32.totalorder %s223, %s225
      %p229 = scmp.eq.s32.totalorder %s32, 0
      %p230 = por %p228, %p229
      %p231 = scmp.ne.s32.totalorder %s223, %s225
      %p232 = scmp.eq.s32.totalorder %s37, 1
      %p233 = por %p231, %p232
      %p234 = scmp.ne.s32.totalorder %s225, %s226
      %p235 = scmp.eq.s32.totalorder %s37, 0
      %p236 = por %p234, %p235
      %p237 = scmp.ne.s32.totalorder %s225, %s226
      %p238 = scmp.eq.s32.totalorder %s38, 1
      %p239 = por %p237, %p238
      %p241 = scmp.ne.s32.totalorder %s226, %s240
      %p242 = scmp.eq.s32.totalorder %s38, 0
      %p243 = por %p241, %p242
      %s245 = sadd.s32 %s244, 1
      %p248 = scmp.eq.s32.totalorder %s32, 1
      %p249 = scmp.ne.s32.totalorder %s244, %s246
      %p250 = scmp.eq.s32.totalorder %s32, 0
      %p251 = por %p249, %p250
      %p252 = scmp.ne.s32.totalorder %s244, %s246
      %p253 = scmp.eq.s32.totalorder %s37, 1
      %p254 = por %p252, %p253
      %p255 = scmp.ne.s32.totalorder %s246, %s247
      %p256 = scmp.eq.s32.totalorder %s37, 0
      %p257 = por %p255, %p256
      %p258 = scmp.ne.s32.totalorder %s246, %s247
      %p259 = scmp.eq.s32.totalorder %s38, 1
      %p260 = por %p258, %p259
      %p262 = scmp.ne.s32.totalorder %s247, %s261
      %p263 = scmp.eq.s32.totalorder %s38, 0
      %p264 = por %p262, %p263
      %s266 = sadd.s32 %s265, 1
      %p269 = scmp.eq.s32.totalorder %s32, 1
      %p270 = scmp.ne.s32.totalorder %s265, %s267
      %p271 = scmp.eq.s32.totalorder %s32, 0
      %p272 = por %p270, %p271
      %p273 = scmp.ne.s32.totalorder %s265, %s267
      %p274 = scmp.eq.s32.totalorder %s37, 1
      %p275 = por %p273, %p274
      %p276 = scmp.ne.s32.totalorder %s267, %s268
      %p277 = scmp.eq.s32.totalorder %s37, 0
      %p278 = por %p276, %p277
      %p279 = scmp.ne.s32.totalorder %s267, %s268
      %p280 = scmp.eq.s32.totalorder %s38, 1
      %p281 = por %p279, %p280
      %p283 = scmp.ne.s32.totalorder %s268, %s282
      %p284 = scmp.eq.s32.totalorder %s38, 0
      %p285 = por %p283, %p284
      %s287 = sadd.s32 %s286, 1
      %p290 = scmp.eq.s32.totalorder %s32, 1
      %p291 = scmp.ne.s32.totalorder %s286, %s288
      %p292 = scmp.eq.s32.totalorder %s32, 0
      %p293 = por %p291, %p292
      %p294 = scmp.ne.s32.totalorder %s286, %s288
      %p295 = scmp.eq.s32.totalorder %s37, 1
      %p296 = por %p294, %p295
      %p297 = scmp.ne.s32.totalorder %s288, %s289
      %p298 = scmp.eq.s32.totalorder %s37, 0
      %p299 = por %p297, %p298
      %p300 = scmp.ne.s32.totalorder %s288, %s289
      %p301 = scmp.eq.s32.totalorder %s38, 1
      %p302 = por %p300, %p301
      %p304 = scmp.ne.s32.totalorder %s289, %s303
      %p305 = scmp.eq.s32.totalorder %s38, 0
      %p306 = por %p304, %p305
      %s308 = sadd.s32 %s307, 1
      %p311 = scmp.eq.s32.totalorder %s32, 1
      %p312 = scmp.ne.s32.totalorder %s307, %s309
      %p313 = scmp.eq.s32.totalorder %s32, 0
      %p314 = por %p312, %p313
      %p315 = scmp.ne.s32.totalorder %s307, %s309
      %p316 = scmp.eq.s32.totalorder %s37, 1
      %p317 = por %p315, %p316
      %p318 = scmp.ne.s32.totalorder %s309, %s310
      %p319 = scmp.eq.s32.totalorder %s37, 0
      %p320 = por %p318, %p319
      %p321 = scmp.ne.s32.totalorder %s309, %s310
      %p322 = scmp.eq.s32.totalorder %s38, 1
      %p323 = por %p321, %p322
      %p325 = scmp.ne.s32.totalorder %s310, %s324
      %p326 = scmp.eq.s32.totalorder %s38, 0
      %p327 = por %p325, %p326
      %s329 = sadd.s32 %s328, 1
      %p332 = scmp.eq.s32.totalorder %s32, 1
      %p333 = scmp.ne.s32.totalorder %s328, %s330
      %p334 = scmp.eq.s32.totalorder %s32, 0
      %p335 = por %p333, %p334
      %p336 = scmp.ne.s32.totalorder %s328, %s330
      %p337 = scmp.eq.s32.totalorder %s37, 1
      %p338 = por %p336, %p337
      %p339 = scmp.ne.s32.totalorder %s330, %s331
      %p340 = scmp.eq.s32.totalorder %s37, 0
      %p341 = por %p339, %p340
      %p342 = scmp.ne.s32.totalorder %s330, %s331
      %p343 = scmp.eq.s32.totalorder %s38, 1
      %p344 = por %p342, %p343
      %p346 = scmp.ne.s32.totalorder %s331, %s345
      %p347 = scmp.eq.s32.totalorder %s38, 0
      %p348 = por %p346, %p347
      %s350 = sadd.s32 %s349, 1
      %p353 = scmp.eq.s32.totalorder %s32, 1
      %p354 = scmp.ne.s32.totalorder %s349, %s351
      %p355 = scmp.eq.s32.totalorder %s32, 0
      %p356 = por %p354, %p355
      %p357 = scmp.ne.s32.totalorder %s349, %s351
      %p358 = scmp.eq.s32.totalorder %s37, 1
      %p359 = por %p357, %p358
      %p360 = scmp.ne.s32.totalorder %s351, %s352
      %p361 = scmp.eq.s32.totalorder %s37, 0
      %p362 = por %p360, %p361
      %p363 = scmp.ne.s32.totalorder %s351, %s352
      %p364 = scmp.eq.s32.totalorder %s38, 1
      %p365 = por %p363, %p364
      %p367 = scmp.ne.s32.totalorder %s352, %s366
      %p368 = scmp.eq.s32.totalorder %s38, 0
      %p369 = por %p367, %p368
      %s370 = ssub.s32 %s32, %s39
      %p371 = scmp.eq.s32.totalorder %s370, 0
      %s373 = sadd.s32 %s372, 1
      %s374 = scalar_select %p371, %s372, %s373
      %p377 = pneg %p371
      %p378 = scmp.eq.s32.totalorder %s32, 1
      %p379 = por %p377, %p378
      %p380 = scmp.ne.s32.totalorder %s372, %s375
      %p381 = scmp.eq.s32.totalorder %s32, 0
      %p382 = por %p380, %p381
      %p383 = scmp.ne.s32.totalorder %s372, %s375
      %p384 = scmp.eq.s32.totalorder %s37, 1
      %p385 = por %p383, %p384
      %p386 = scmp.ne.s32.totalorder %s375, %s376
      %p387 = scmp.eq.s32.totalorder %s37, 0
      %p388 = por %p386, %p387
      %p389 = scmp.ne.s32.totalorder %s375, %s376
      %p390 = scmp.eq.s32.totalorder %s38, 1
      %p391 = por %p389, %p390
      %p393 = scmp.ne.s32.totalorder %s376, %s392
      %p394 = scmp.eq.s32.totalorder %s38, 0
      %p395 = por %p393, %p394
      %p396 = scmp.le.s32.totalorder 1, %s32
      %p397 = scmp.lt.s32.totalorder %s32, 3
      %p398 = pnand %p396, %p397
      %p399 = pneg %p398
      // Predicated region
      $region9: #{tpu_custom_call.1} parent=5 // pred_check
        _
      $region10: #{tpu_custom_call.1} parent=5 // pred_check_branch
        %401 = sbr.rel (%p398) target = $region12
      $region11: #{tpu_custom_call.1} parent=5 // pred_region
        %s402 = ssub.s32 %s32, 1
        // Predicated region
        $region13: #{tpu_custom_call.1} parent=11 // pred_check
          %p403 = pneg %p131
        $region14: #{tpu_custom_call.1} parent=11 // pred_check_branch
          %405 = sbr.rel (%p403) target = $region16
        $region15: #{tpu_custom_call.1} parent=11 // pred_region
          %s407 = ssub.s32 2048, 2048
          %408 = vsyncadd [#allocation7], %s407
          %s409 = sshll.u32 [#allocation6], 4
          %s410 = int_to_ptr.vmem [resolvable:$true] %s409
          %415 = dma.hbm_to_vmem [thread:$0]  %s3, 2048, %s410, [#allocation7], 128, 128, 8
        $region16: #{tpu_custom_call.1} parent=11 // pred_fallthru
          _
        // Predicated region
        $region17: #{tpu_custom_call.1} parent=11 // pred_check
          %p416 = pneg %p152
        $region18: #{tpu_custom_call.1} parent=11 // pred_check_branch
          %418 = sbr.rel (%p416) target = $region20
        $region19: #{tpu_custom_call.1} parent=11 // pred_region
          _
        $region20: #{tpu_custom_call.1} parent=11 // pred_fallthru
          _
        // Predicated region
        $region21: #{tpu_custom_call.1} parent=11 // pred_check
          %p419 = pneg %p173
        $region22: #{tpu_custom_call.1} parent=11 // pred_check_branch
          %421 = sbr.rel (%p419) target = $region24
        $region23: #{tpu_custom_call.1} parent=11 // pred_region
          %s423 = ssub.s32 2048, 2048
          %424 = vsyncadd [#allocation7], %s423
          %s425 = sshll.u32 [#allocation8], 4
          %s426 = int_to_ptr.vmem [resolvable:$true] %s425
          %431 = dma.hbm_to_vmem [thread:$0]  %s5, 2048, %s426, [#allocation7], 64, 64, 4
        $region24: #{tpu_custom_call.1} parent=11 // pred_fallthru
          _
        // Predicated region
        $region25: #{tpu_custom_call.1} parent=11 // pred_check
          %p432 = pneg %p194
        $region26: #{tpu_custom_call.1} parent=11 // pred_check_branch
          %434 = sbr.rel (%p432) target = $region28
        $region27: #{tpu_custom_call.1} parent=11 // pred_region
          _
        $region28: #{tpu_custom_call.1} parent=11 // pred_fallthru
          _
        // Predicated region
        $region29: #{tpu_custom_call.1} parent=11 // pred_check
          %p435 = pneg %p215
        $region30: #{tpu_custom_call.1} parent=11 // pred_check_branch
          %437 = sbr.rel (%p435) target = $region32
        $region31: #{tpu_custom_call.1} parent=11 // pred_region
          %s439 = ssub.s32 2048, 2048
          %440 = vsyncadd [#allocation10], %s439
          %s441 = sshll.u32 [#allocation9], 4
          %s442 = int_to_ptr.vmem [resolvable:$true] %s441
          %447 = dma.hbm_to_vmem [thread:$0]  %s7, 2048, %s442, [#allocation10], 128, 128, 8
        $region32: #{tpu_custom_call.1} parent=11 // pred_fallthru
          _
        // Predicated region
        $region33: #{tpu_custom_call.1} parent=11 // pred_check
          %p448 = pneg %p236
        $region34: #{tpu_custom_call.1} parent=11 // pred_check_branch
          %450 = sbr.rel (%p448) target = $region36
        $region35: #{tpu_custom_call.1} parent=11 // pred_region
          _
        $region36: #{tpu_custom_call.1} parent=11 // pred_fallthru
          _
        // Predicated region
        $region37: #{tpu_custom_call.1} parent=11 // pred_check
          %p451 = pneg %p257
        $region38: #{tpu_custom_call.1} parent=11 // pred_check_branch
          %453 = sbr.rel (%p451) target = $region40
        $region39: #{tpu_custom_call.1} parent=11 // pred_region
          %s455 = ssub.s32 2048, 2048
          %456 = vsyncadd [#allocation10], %s455
          %s457 = sshll.u32 [#allocation11], 4
          %s458 = int_to_ptr.vmem [resolvable:$true] %s457
          %463 = dma.hbm_to_vmem [thread:$0]  %s9, 2048, %s458, [#allocation10], 64, 64, 4
        $region40: #{tpu_custom_call.1} parent=11 // pred_fallthru
          _
        // Predicated region
        $region41: #{tpu_custom_call.1} parent=11 // pred_check
          %p464 = pneg %p278
        $region42: #{tpu_custom_call.1} parent=11 // pred_check_branch
          %466 = sbr.rel (%p464) target = $region44
        $region43: #{tpu_custom_call.1} parent=11 // pred_region
          _
        $region44: #{tpu_custom_call.1} parent=11 // pred_fallthru
          _
        // Predicated region
        $region45: #{tpu_custom_call.1} parent=11 // pred_check
          %p467 = pneg %p299
        $region46: #{tpu_custom_call.1} parent=11 // pred_check_branch
          %469 = sbr.rel (%p467) target = $region48
        $region47: #{tpu_custom_call.1} parent=11 // pred_region
          %s471 = ssub.s32 2048, 2048
          %472 = vsyncadd [#allocation13], %s471
          %s473 = sshll.u32 [#allocation12], 4
          %s474 = int_to_ptr.vmem [resolvable:$true] %s473
          %479 = dma.hbm_to_vmem [thread:$0]  %s11, 2048, %s474, [#allocation13], 128, 128, 8
        $region48: #{tpu_custom_call.1} parent=11 // pred_fallthru
          _
        // Predicated region
        $region49: #{tpu_custom_call.1} parent=11 // pred_check
          %p480 = pneg %p320
        $region50: #{tpu_custom_call.1} parent=11 // pred_check_branch
          %482 = sbr.rel (%p480) target = $region52
        $region51: #{tpu_custom_call.1} parent=11 // pred_region
          _
        $region52: #{tpu_custom_call.1} parent=11 // pred_fallthru
          _
        // Predicated region
        $region53: #{tpu_custom_call.1} parent=11 // pred_check
          %p483 = pneg %p341
        $region54: #{tpu_custom_call.1} parent=11 // pred_check_branch
          %485 = sbr.rel (%p483) target = $region56
        $region55: #{tpu_custom_call.1} parent=11 // pred_region
          _
        $region56: #{tpu_custom_call.1} parent=11 // pred_fallthru
          _
        // Predicated region
        $region57: #{tpu_custom_call.1} parent=11 // pred_check
          %p486 = pneg %p362
        $region58: #{tpu_custom_call.1} parent=11 // pred_check_branch
          %488 = sbr.rel (%p486) target = $region60
        $region59: #{tpu_custom_call.1} parent=11 // pred_region
          _
        $region60: #{tpu_custom_call.1} parent=11 // pred_fallthru
          _
      $region12: #{tpu_custom_call.1} parent=5 // pred_fallthru
        _
      %p489 = scmp.lt.s32.totalorder %s32, 2
      // Predicated region
      $region61: #{tpu_custom_call.1} parent=5 // pred_check
        %p490 = pneg %p489
      $region62: #{tpu_custom_call.1} parent=5 // pred_check_branch
        %492 = sbr.rel (%p490) target = $region64
      $region63: #{tpu_custom_call.1} parent=5 // pred_region
        // Predicated region
        $region65: #{tpu_custom_call.1} parent=63 // pred_check
          %p493 = pneg %p52
        $region66: #{tpu_custom_call.1} parent=63 // pred_check_branch
          %495 = sbr.rel (%p493) target = $region68
        $region67: #{tpu_custom_call.1} parent=63 // pred_region
          %s496 = sand.u32 %s42, 1
          %s497 = scalar_lea.sflag [#allocation4], %s496
          %s498 = sand.u32 %s42, 1
          %s499 = smul.addr %s498, 4
          %s500 = scalar_lea.vmem [#allocation3], %s499
          %s502 = ssub.s32 64, 64
          %503 = vsyncadd %s497, %s502
          %s504 = smul.addr %s32, 64
          %s505 = scalar_lea.hbm %s0, %s504
          %s507 = sshll.u32 %s500, 4
          %s508 = int_to_ptr.vmem [resolvable:$true] %s507
          %510 = dma.hbm_to_vmem [thread:$0]  %s505, 64, %s508, %s497
        $region68: #{tpu_custom_call.1} parent=63 // pred_fallthru
          _
        // Predicated region
        $region69: #{tpu_custom_call.1} parent=63 // pred_check
          %p511 = pneg %p78
        $region70: #{tpu_custom_call.1} parent=63 // pred_check_branch
          %513 = sbr.rel (%p511) target = $region72
        $region71: #{tpu_custom_call.1} parent=63 // pred_region
          %p514 = scmp.lt.s32.totalorder %s32, 1
          %s515 = scalar_select %p514, %s32, 1
          %s516 = scalar_lea.vmem %s1, %s515
        $region72: #{tpu_custom_call.1} parent=63 // pred_fallthru
          _
        // Predicated region
        $region73: #{tpu_custom_call.1} parent=63 // pred_check
          %p517 = pneg %p104
        $region74: #{tpu_custom_call.1} parent=63 // pred_check_branch
          %519 = sbr.rel (%p517) target = $region76
        $region75: #{tpu_custom_call.1} parent=63 // pred_region
          %p520 = scmp.lt.s32.totalorder %s32, 1
          %s521 = scalar_select %p520, %s32, 1
          %s522 = scalar_lea.vmem %s2, %s521
        $region76: #{tpu_custom_call.1} parent=63 // pred_fallthru
          _
      $region64: #{tpu_custom_call.1} parent=5 // pred_fallthru
        _
      %p523 = scmp.le.s32.totalorder 1, %s32
      %p524 = scmp.lt.s32.totalorder %s32, 3
      %p525 = pnand %p523, %p524
      %p526 = pneg %p525
      // Predicated region
      $region77: #{tpu_custom_call.1} parent=5 // pred_check
        _
      $region78: #{tpu_custom_call.1} parent=5 // pred_check_branch
        %528 = sbr.rel (%p525) target = $region80
      $region79: #{tpu_custom_call.1} parent=5 // pred_region
        %s529 = ssub.s32 %s32, 1
        %s530 = sand.u32 %s45, 1
        %s531 = scalar_lea.sflag [#allocation4], %s530
        %s532 = sand.u32 %s45, 1
        %s533 = smul.addr %s532, 4
        %s534 = scalar_lea.vmem [#allocation3], %s533
        // Predicated region
        $region81: #{tpu_custom_call.1} parent=79 // pred_check
          %p535 = pneg %p58
        $region82: #{tpu_custom_call.1} parent=79 // pred_check_branch
          %537 = sbr.rel (%p535) target = $region84
        $region83: #{tpu_custom_call.1} parent=79 // pred_region
          %538 = dma.done %s531, 64
        $region84: #{tpu_custom_call.1} parent=79 // pred_fallthru
          _
        // Predicated region
        $region85: #{tpu_custom_call.1} parent=79 // pred_check
          %p539 = pneg %p131
        $region86: #{tpu_custom_call.1} parent=79 // pred_check_branch
          %541 = sbr.rel (%p539) target = $region88
        $region87: #{tpu_custom_call.1} parent=79 // pred_region
          %542 = dma.done [#allocation7], 2048
        $region88: #{tpu_custom_call.1} parent=79 // pred_fallthru
          _
        // Predicated region
        $region89: #{tpu_custom_call.1} parent=79 // pred_check
          %p543 = pneg %p173
        $region90: #{tpu_custom_call.1} parent=79 // pred_check_branch
          %545 = sbr.rel (%p543) target = $region92
        $region91: #{tpu_custom_call.1} parent=79 // pred_region
          %546 = dma.done [#allocation7], 2048
        $region92: #{tpu_custom_call.1} parent=79 // pred_fallthru
          _
        // Predicated region
        $region93: #{tpu_custom_call.1} parent=79 // pred_check
          %p547 = pneg %p215
        $region94: #{tpu_custom_call.1} parent=79 // pred_check_branch
          %549 = sbr.rel (%p547) target = $region96
        $region95: #{tpu_custom_call.1} parent=79 // pred_region
          %550 = dma.done [#allocation10], 2048
        $region96: #{tpu_custom_call.1} parent=79 // pred_fallthru
          _
        // Predicated region
        $region97: #{tpu_custom_call.1} parent=79 // pred_check
          %p551 = pneg %p257
        $region98: #{tpu_custom_call.1} parent=79 // pred_check_branch
          %553 = sbr.rel (%p551) target = $region100
        $region99: #{tpu_custom_call.1} parent=79 // pred_region
          %554 = dma.done [#allocation10], 2048
        $region100: #{tpu_custom_call.1} parent=79 // pred_fallthru
          _
        // Predicated region
        $region101: #{tpu_custom_call.1} parent=79 // pred_check
          %p555 = pneg %p299
        $region102: #{tpu_custom_call.1} parent=79 // pred_check_branch
          %557 = sbr.rel (%p555) target = $region104
        $region103: #{tpu_custom_call.1} parent=79 // pred_region
          %558 = dma.done [#allocation13], 2048
        $region104: #{tpu_custom_call.1} parent=79 // pred_fallthru
          _
        %s559 = sand.u32 %s45, 1
        %s560 = scalar_lea.sflag [#allocation4], %s559
        %s561 = sand.u32 %s45, 1
        %s562 = smul.addr %s561, 4
        %s563 = scalar_lea.vmem [#allocation3], %s562
        %p564 = pneg %p58
        %p565 = pneg %p55
        %p566 = scmp.lt.s32.totalorder %s37, 1
        %s567 = scalar_select %p566, %s37, 1
        %s568 = scalar_lea.vmem %s1, %s567
        %p569 = pneg %p84
        %p570 = pneg %p81
        %p571 = scmp.lt.s32.totalorder %s37, 1
        %s572 = scalar_select %p571, %s37, 1
        %s573 = scalar_lea.vmem %s2, %s572
        %p574 = pneg %p110
        %p575 = pneg %p107
        %p576 = pneg %p131
        %p577 = pneg %p128
        %p578 = pneg %p152
        %p579 = pneg %p149
        %p580 = pneg %p173
        %p581 = pneg %p170
        %p582 = pneg %p194
        %p583 = pneg %p191
        %p584 = pneg %p215
        %p585 = pneg %p212
        %p586 = pneg %p236
        %p587 = pneg %p233
        %p588 = pneg %p257
        %p589 = pneg %p254
        %p590 = pneg %p278
        %p591 = pneg %p275
        %p592 = pneg %p299
        %p593 = pneg %p296
        %p594 = pneg %p320
        %p595 = pneg %p317
        %p596 = pneg %p341
        %p597 = pneg %p338
        %p598 = pneg %p362
        %p599 = pneg %p359
        %p600 = pneg %p388
        %p601 = pneg %p385
        %s602 = sand.u32 %s375, 1
        %s603 = scalar_lea.sflag [#allocation5], %s602
        %s604 = sand.u32 %s375, 1
        %s605 = scalar_lea.vmem [#allocation14], %s604
        %p606 = scmp.lt.s32.totalorder %s37, 1
        %s607 = scalar_select %p606, %s37, 1
        %s608 = scalar_lea.vmem %s1, %s607
        %p609 = scmp.lt.s32.totalorder %s37, 1
        %s610 = scalar_select %p609, %s37, 1
        %s611 = scalar_lea.vmem %s2, %s610
        %v613 = vld [vmem:[%s534] sm:$0xf]
        %v614 = vld [vmem:[#allocation6] sm:$0xff]
        %v615 = vld [vmem:[#allocation6 + $0x8] sm:$0xff]
        %v616 = vld [vmem:[#allocation6 + $0x10] sm:$0xff]
        %v617 = vld [vmem:[#allocation6 + $0x18] sm:$0xff]
        %v618 = vld [vmem:[#allocation6 + $0x20] sm:$0xff]
        %v619 = vld [vmem:[#allocation6 + $0x28] sm:$0xff]
        %v620 = vld [vmem:[#allocation6 + $0x30] sm:$0xff]
        %v621 = vld [vmem:[#allocation6 + $0x38] sm:$0xff]
        %v622 = vld [vmem:[#allocation6 + $0x40] sm:$0xff]
        %v623 = vld [vmem:[#allocation6 + $0x48] sm:$0xff]
        %v624 = vld [vmem:[#allocation6 + $0x50] sm:$0xff]
        %v625 = vld [vmem:[#allocation6 + $0x58] sm:$0xff]
        %v626 = vld [vmem:[#allocation6 + $0x60] sm:$0xff]
        %v627 = vld [vmem:[#allocation6 + $0x68] sm:$0xff]
        %v628 = vld [vmem:[#allocation6 + $0x70] sm:$0xff]
        %v629 = vld [vmem:[#allocation6 + $0x78] sm:$0xff]
        %v630 = vld [vmem:[%s4] sm:$0x3]
        %v632 = vlaneseq
        %v633 = vshrl.u32 %v632, 7
        %v634 = vsub.s32 0, %v633
        %v635 = vrot.slane %v630, %v634
        %v636 = vlaneseq
        %v637 = vshrl.u32 %v636, 7
        %v638 = vsub.s32 1, %v637
        %v639 = vrot.slane %v630, %v638
        %v658 = vunpack.c.l.b16 %v614
        %v659 = vunpack.c.h.b16 %v614
        %v660 = vunpack.c.l.b16 %v615
        %v661 = vunpack.c.h.b16 %v615
        %v662 = vunpack.c.l.b16 %v616
        %v663 = vunpack.c.h.b16 %v616
        %v664 = vunpack.c.l.b16 %v617
        %v665 = vunpack.c.h.b16 %v617
        %v666 = vunpack.c.l.b16 %v618
        %v667 = vunpack.c.h.b16 %v618
        %v668 = vunpack.c.l.b16 %v619
        %v669 = vunpack.c.h.b16 %v619
        %v670 = vunpack.c.l.b16 %v620
        %v671 = vunpack.c.h.b16 %v620
        %v672 = vunpack.c.l.b16 %v621
        %v673 = vunpack.c.h.b16 %v621
        %v674 = vunpack.c.l.b16 %v622
        %v675 = vunpack.c.h.b16 %v622
        %v676 = vunpack.c.l.b16 %v623
        %v677 = vunpack.c.h.b16 %v623
        %v678 = vunpack.c.l.b16 %v624
        %v679 = vunpack.c.h.b16 %v624
        %v680 = vunpack.c.l.b16 %v625
        %v681 = vunpack.c.h.b16 %v625
        %v682 = vunpack.c.l.b16 %v626
        %v683 = vunpack.c.h.b16 %v626
        %v684 = vunpack.c.l.b16 %v627
        %v685 = vunpack.c.h.b16 %v627
        %v686 = vunpack.c.l.b16 %v628
        %v687 = vunpack.c.h.b16 %v628
        %v688 = vunpack.c.l.b16 %v629
        %v689 = vunpack.c.h.b16 %v629
        %v690 = vpack.c.b16 %v660, %v658
        %v691 = vpack.c.b16 %v661, %v659
        %v692 = vpack.c.b16 %v664, %v662
        %v693 = vpack.c.b16 %v665, %v663
        %v694 = vpack.c.b16 %v668, %v666
        %v695 = vpack.c.b16 %v669, %v667
        %v696 = vpack.c.b16 %v672, %v670
        %v697 = vpack.c.b16 %v673, %v671
        %v698 = vpack.c.b16 %v676, %v674
        %v699 = vpack.c.b16 %v677, %v675
        %v700 = vpack.c.b16 %v680, %v678
        %v701 = vpack.c.b16 %v681, %v679
        %v702 = vpack.c.b16 %v684, %v682
        %v703 = vpack.c.b16 %v685, %v683
        %v704 = vpack.c.b16 %v688, %v686
        %v705 = vpack.c.b16 %v689, %v687
        %722 = vmatprep.subr.bf16.mxu0 %v691
        %723 = vmatpush1.bf16.msra.mxu0 %v690
        %724 = vmatprep.subr.bf16.mxu0 %v693
        %725 = vmatpush1.bf16.msra.mxu0 %v692
        %726 = vmatprep.subr.bf16.mxu0 %v695
        %727 = vmatpush1.bf16.msra.mxu0 %v694
        %728 = vmatprep.subr.bf16.mxu0 %v697
        %729 = vmatpush1.bf16.msra.mxu0 %v696
        %730 = vmatprep.subr.bf16.mxu0 %v699
        %731 = vmatpush1.bf16.msra.mxu0 %v698
        %732 = vmatprep.subr.bf16.mxu0 %v701
        %733 = vmatpush1.bf16.msra.mxu0 %v700
        %734 = vmatprep.subr.bf16.mxu0 %v703
        %735 = vmatpush1.bf16.msra.mxu0 %v702
        %736 = vmatprep.subr.bf16.mxu0 %v705
        %737 = vmatpush1.bf16.msra.mxu0 %v704
        %738 = vmatprep.subr.bf16.mxu0 0
        %739 = vmatpush1.bf16.msra.mxu0 0
        %740 = vmatprep.subr.bf16.mxu0 0
        %741 = vmatpush1.bf16.msra.mxu0 0
        %742 = vmatprep.subr.bf16.mxu0 0
        %743 = vmatpush1.bf16.msra.mxu0 0
        %744 = vmatprep.subr.bf16.mxu0 0
        %745 = vmatpush1.bf16.msra.mxu0 0
        %746 = vmatprep.subr.bf16.mxu0 0
        %747 = vmatpush1.bf16.msra.mxu0 0
        %748 = vmatprep.subr.bf16.mxu0 0
        %749 = vmatpush1.bf16.msra.mxu0 0
        %750 = vmatprep.subr.bf16.mxu0 0
        %751 = vmatpush1.bf16.msra.mxu0 0
        %752 = vmatprep.subr.bf16.mxu0 0
        %753 = vmatpush1.bf16.msra.mxu0 0
        %754 = vmatprep.mubr.bf16.mxu0 0
        %755 = vmatmul.mubr.bf16.gmra.mrb[0].mxu0 %v613
        %v756 = vpop.f32.mrb[0].mxu0
        %v757 = vadd.f32 %v635, %v756
        %v758 = vpop.f32.mrb[0].mxu0
        %v759 = vadd.f32 %v639, %v758
        %v760 = vpop.f32.mrb[0].mxu0
        %v761 = vpop.f32.mrb[0].mxu0
        %762 = vdwg.mxu0
        %v763 = vmax.f32 %v757, 0.0
        %v764 = vmax.f32 %v759, 0.0
        %v765 = vpack.c.bf16 %v763, %v763
        %v766 = vpack.c.bf16 %v764, %v764
        %v767 = vld [vmem:[#allocation8] sm:$0xf]
        %v768 = vld [vmem:[#allocation8 + $0x4] sm:$0xf]
        %v769 = vld [vmem:[#allocation8 + $0x8] sm:$0xf]
        %v770 = vld [vmem:[#allocation8 + $0xc] sm:$0xf]
        %v771 = vld [vmem:[#allocation8 + $0x10] sm:$0xf]
        %v772 = vld [vmem:[#allocation8 + $0x14] sm:$0xf]
        %v773 = vld [vmem:[#allocation8 + $0x18] sm:$0xf]
        %v774 = vld [vmem:[#allocation8 + $0x1c] sm:$0xf]
        %v775 = vld [vmem:[#allocation8 + $0x20] sm:$0xf]
        %v776 = vld [vmem:[#allocation8 + $0x24] sm:$0xf]
        %v777 = vld [vmem:[#allocation8 + $0x28] sm:$0xf]
        %v778 = vld [vmem:[#allocation8 + $0x2c] sm:$0xf]
        %v779 = vld [vmem:[#allocation8 + $0x30] sm:$0xf]
        %v780 = vld [vmem:[#allocation8 + $0x34] sm:$0xf]
        %v781 = vld [vmem:[#allocation8 + $0x38] sm:$0xf]
        %v782 = vld [vmem:[#allocation8 + $0x3c] sm:$0xf]
        %v783 = vld [vmem:[#allocation8 + $0x40] sm:$0xf]
        %v784 = vld [vmem:[#allocation8 + $0x44] sm:$0xf]
        %v785 = vld [vmem:[#allocation8 + $0x48] sm:$0xf]
        %v786 = vld [vmem:[#allocation8 + $0x4c] sm:$0xf]
        %v787 = vld [vmem:[#allocation8 + $0x50] sm:$0xf]
        %v788 = vld [vmem:[#allocation8 + $0x54] sm:$0xf]
        %v789 = vld [vmem:[#allocation8 + $0x58] sm:$0xf]
        %v790 = vld [vmem:[#allocation8 + $0x5c] sm:$0xf]
        %v791 = vld [vmem:[#allocation8 + $0x60] sm:$0xf]
        %v792 = vld [vmem:[#allocation8 + $0x64] sm:$0xf]
        %v793 = vld [vmem:[#allocation8 + $0x68] sm:$0xf]
        %v794 = vld [vmem:[#allocation8 + $0x6c] sm:$0xf]
        %v795 = vld [vmem:[#allocation8 + $0x70] sm:$0xf]
        %v796 = vld [vmem:[#allocation8 + $0x74] sm:$0xf]
        %v797 = vld [vmem:[#allocation8 + $0x78] sm:$0xf]
        %v798 = vld [vmem:[#allocation8 + $0x7c] sm:$0xf]
        %v799 = vld [vmem:[%s6] sm:$0x1]
        %v801 = vlaneseq
        %v802 = vshrl.u32 %v801, 7
        %v803 = vsub.s32 0, %v802
        %v804 = vrot.slane %v799, %v803
        %v838 = vunpack.c.l.b16 %v767
        %v839 = vunpack.c.l.b16 %v768
        %v840 = vunpack.c.l.b16 %v769
        %v841 = vunpack.c.l.b16 %v770
        %v842 = vunpack.c.l.b16 %v771
        %v843 = vunpack.c.l.b16 %v772
        %v844 = vunpack.c.l.b16 %v773
        %v845 = vunpack.c.l.b16 %v774
        %v846 = vunpack.c.l.b16 %v775
        %v847 = vunpack.c.l.b16 %v776
        %v848 = vunpack.c.l.b16 %v777
        %v849 = vunpack.c.l.b16 %v778
        %v850 = vunpack.c.l.b16 %v779
        %v851 = vunpack.c.l.b16 %v780
        %v852 = vunpack.c.l.b16 %v781
        %v853 = vunpack.c.l.b16 %v782
        %v854 = vunpack.c.l.b16 %v783
        %v855 = vunpack.c.l.b16 %v784
        %v856 = vunpack.c.l.b16 %v785
        %v857 = vunpack.c.l.b16 %v786
        %v858 = vunpack.c.l.b16 %v787
        %v859 = vunpack.c.l.b16 %v788
        %v860 = vunpack.c.l.b16 %v789
        %v861 = vunpack.c.l.b16 %v790
        %v862 = vunpack.c.l.b16 %v791
        %v863 = vunpack.c.l.b16 %v792
        %v864 = vunpack.c.l.b16 %v793
        %v865 = vunpack.c.l.b16 %v794
        %v866 = vunpack.c.l.b16 %v795
        %v867 = vunpack.c.l.b16 %v796
        %v868 = vunpack.c.l.b16 %v797
        %v869 = vunpack.c.l.b16 %v798
        %v870 = vpack.c.b16 %v839, %v838
        %v871 = vpack.c.b16 %v841, %v840
        %v872 = vpack.c.b16 %v843, %v842
        %v873 = vpack.c.b16 %v845, %v844
        %v874 = vpack.c.b16 %v847, %v846
        %v875 = vpack.c.b16 %v849, %v848
        %v876 = vpack.c.b16 %v851, %v850
        %v877 = vpack.c.b16 %v853, %v852
        %v878 = vpack.c.b16 %v855, %v854
        %v879 = vpack.c.b16 %v857, %v856
        %v880 = vpack.c.b16 %v859, %v858
        %v881 = vpack.c.b16 %v861, %v860
        %v882 = vpack.c.b16 %v863, %v862
        %v883 = vpack.c.b16 %v865, %v864
        %v884 = vpack.c.b16 %v867, %v866
        %v885 = vpack.c.b16 %v869, %v868
        %902 = vmatprep.subr.bf16.mxu0 0
        %903 = vmatpush1.bf16.msra.mxu0 %v870
        %904 = vmatprep.subr.bf16.mxu0 0
        %905 = vmatpush1.bf16.msra.mxu0 %v871
        %906 = vmatprep.subr.bf16.mxu0 0
        %907 = vmatpush1.bf16.msra.mxu0 %v872
        %908 = vmatprep.subr.bf16.mxu0 0
        %909 = vmatpush1.bf16.msra.mxu0 %v873
        %910 = vmatprep.subr.bf16.mxu0 0
        %911 = vmatpush1.bf16.msra.mxu0 %v874
        %912 = vmatprep.subr.bf16.mxu0 0
        %913 = vmatpush1.bf16.msra.mxu0 %v875
        %914 = vmatprep.subr.bf16.mxu0 0
        %915 = vmatpush1.bf16.msra.mxu0 %v876
        %916 = vmatprep.subr.bf16.mxu0 0
        %917 = vmatpush1.bf16.msra.mxu0 %v877
        %918 = vmatprep.subr.bf16.mxu0 0
        %919 = vmatpush1.bf16.msra.mxu0 %v878
        %920 = vmatprep.subr.bf16.mxu0 0
        %921 = vmatpush1.bf16.msra.mxu0 %v879
        %922 = vmatprep.subr.bf16.mxu0 0
        %923 = vmatpush1.bf16.msra.mxu0 %v880
        %924 = vmatprep.subr.bf16.mxu0 0
        %925 = vmatpush1.bf16.msra.mxu0 %v881
        %926 = vmatprep.subr.bf16.mxu0 0
        %927 = vmatpush1.bf16.msra.mxu0 %v882
        %928 = vmatprep.subr.bf16.mxu0 0
        %929 = vmatpush1.bf16.msra.mxu0 %v883
        %930 = vmatprep.subr.bf16.mxu0 0
        %931 = vmatpush1.bf16.msra.mxu0 %v884
        %932 = vmatprep.subr.bf16.mxu0 0
        %933 = vmatpush1.bf16.msra.mxu0 %v885
        %934 = vmatprep.mubr.bf16.mxu0 %v766
        %935 = vmatmul.mubr.bf16.gmra.mrb[0].mxu0 %v765
        %v936 = vpop.f32.mrb[0].mxu0
        %v937 = vadd.f32 %v804, %v936
        %v938 = vpop.f32.mrb[0].mxu0
        %v939 = vpop.f32.mrb[0].mxu0
        %v940 = vpop.f32.mrb[0].mxu0
        %941 = vdwg.mxu0
        %v942 = vld [vmem:[%s608] sm:$0x1]
        %v943 = vld [vmem:[#allocation9] sm:$0xff]
        %v944 = vld [vmem:[#allocation9 + $0x8] sm:$0xff]
        %v945 = vld [vmem:[#allocation9 + $0x10] sm:$0xff]
        %v946 = vld [vmem:[#allocation9 + $0x18] sm:$0xff]
        %v947 = vld [vmem:[#allocation9 + $0x20] sm:$0xff]
        %v948 = vld [vmem:[#allocation9 + $0x28] sm:$0xff]
        %v949 = vld [vmem:[#allocation9 + $0x30] sm:$0xff]
        %v950 = vld [vmem:[#allocation9 + $0x38] sm:$0xff]
        %v951 = vld [vmem:[#allocation9 + $0x40] sm:$0xff]
        %v952 = vld [vmem:[#allocation9 + $0x48] sm:$0xff]
        %v953 = vld [vmem:[#allocation9 + $0x50] sm:$0xff]
        %v954 = vld [vmem:[#allocation9 + $0x58] sm:$0xff]
        %v955 = vld [vmem:[#allocation9 + $0x60] sm:$0xff]
        %v956 = vld [vmem:[#allocation9 + $0x68] sm:$0xff]
        %v957 = vld [vmem:[#allocation9 + $0x70] sm:$0xff]
        %v958 = vld [vmem:[#allocation9 + $0x78] sm:$0xff]
        %v959 = vld [vmem:[%s8] sm:$0x3]
        %v976 = vunpack.c.l.b16 %v943
        %v977 = vunpack.c.h.b16 %v943
        %v978 = vunpack.c.l.b16 %v944
        %v979 = vunpack.c.h.b16 %v944
        %v980 = vunpack.c.l.b16 %v945
        %v981 = vunpack.c.h.b16 %v945
        %v982 = vunpack.c.l.b16 %v946
        %v983 = vunpack.c.h.b16 %v946
        %v984 = vunpack.c.l.b16 %v947
        %v985 = vunpack.c.h.b16 %v947
        %v986 = vunpack.c.l.b16 %v948
        %v987 = vunpack.c.h.b16 %v948
        %v988 = vunpack.c.l.b16 %v949
        %v989 = vunpack.c.h.b16 %v949
        %v990 = vunpack.c.l.b16 %v950
        %v991 = vunpack.c.h.b16 %v950
        %v992 = vunpack.c.l.b16 %v951
        %v993 = vunpack.c.h.b16 %v951
        %v994 = vunpack.c.l.b16 %v952
        %v995 = vunpack.c.h.b16 %v952
        %v996 = vunpack.c.l.b16 %v953
        %v997 = vunpack.c.h.b16 %v953
        %v998 = vunpack.c.l.b16 %v954
        %v999 = vunpack.c.h.b16 %v954
        %v1000 = vunpack.c.l.b16 %v955
        %v1001 = vunpack.c.h.b16 %v955
        %v1002 = vunpack.c.l.b16 %v956
        %v1003 = vunpack.c.h.b16 %v956
        %v1004 = vunpack.c.l.b16 %v957
        %v1005 = vunpack.c.h.b16 %v957
        %v1006 = vunpack.c.l.b16 %v958
        %v1007 = vunpack.c.h.b16 %v958
        %v1008 = vpack.c.b16 %v978, %v976
        %v1009 = vpack.c.b16 %v979, %v977
        %v1010 = vpack.c.b16 %v982, %v980
        %v1011 = vpack.c.b16 %v983, %v981
        %v1012 = vpack.c.b16 %v986, %v984
        %v1013 = vpack.c.b16 %v987, %v985
        %v1014 = vpack.c.b16 %v990, %v988
        %v1015 = vpack.c.b16 %v991, %v989
        %v1016 = vpack.c.b16 %v994, %v992
        %v1017 = vpack.c.b16 %v995, %v993
        %v1018 = vpack.c.b16 %v998, %v996
        %v1019 = vpack.c.b16 %v999, %v997
        %v1020 = vpack.c.b16 %v1002, %v1000
        %v1021 = vpack.c.b16 %v1003, %v1001
        %v1022 = vpack.c.b16 %v1006, %v1004
        %v1023 = vpack.c.b16 %v1007, %v1005
        %v1041 = vlaneseq
        %v1042 = vshrl.u32 %v1041, 7
        %v1043 = vsub.s32 0, %v1042
        %v1044 = vrot.slane %v959, %v1043
        %v1045 = vlaneseq
        %v1046 = vshrl.u32 %v1045, 7
        %v1047 = vsub.s32 1, %v1046
        %v1048 = vrot.slane %v959, %v1047
        %1051 = vmatprep.subr.bf16.mxu0 %v1009
        %1052 = vmatpush1.bf16.msra.mxu0 %v1008
        %1053 = vmatprep.subr.bf16.mxu0 %v1011
        %1054 = vmatpush1.bf16.msra.mxu0 %v1010
        %1055 = vmatprep.subr.bf16.mxu0 %v1013
        %1056 = vmatpush1.bf16.msra.mxu0 %v1012
        %1057 = vmatprep.subr.bf16.mxu0 %v1015
        %1058 = vmatpush1.bf16.msra.mxu0 %v1014
        %1059 = vmatprep.subr.bf16.mxu0 %v1017
        %1060 = vmatpush1.bf16.msra.mxu0 %v1016
        %1061 = vmatprep.subr.bf16.mxu0 %v1019
        %1062 = vmatpush1.bf16.msra.mxu0 %v1018
        %1063 = vmatprep.subr.bf16.mxu0 %v1021
        %1064 = vmatpush1.bf16.msra.mxu0 %v1020
        %1065 = vmatprep.subr.bf16.mxu0 %v1023
        %1066 = vmatpush1.bf16.msra.mxu0 %v1022
        %1067 = vmatprep.subr.bf16.mxu0 0
        %1068 = vmatpush1.bf16.msra.mxu0 0
        %1069 = vmatprep.subr.bf16.mxu0 0
        %1070 = vmatpush1.bf16.msra.mxu0 0
        %1071 = vmatprep.subr.bf16.mxu0 0
        %1072 = vmatpush1.bf16.msra.mxu0 0
        %1073 = vmatprep.subr.bf16.mxu0 0
        %1074 = vmatpush1.bf16.msra.mxu0 0
        %1075 = vmatprep.subr.bf16.mxu0 0
        %1076 = vmatpush1.bf16.msra.mxu0 0
        %1077 = vmatprep.subr.bf16.mxu0 0
        %1078 = vmatpush1.bf16.msra.mxu0 0
        %1079 = vmatprep.subr.bf16.mxu0 0
        %1080 = vmatpush1.bf16.msra.mxu0 0
        %1081 = vmatprep.subr.bf16.mxu0 0
        %1082 = vmatpush1.bf16.msra.mxu0 0
        %1083 = vmatprep.mubr.bf16.mxu0 0
        %1084 = vmatmul.mubr.bf16.gmra.mrb[0].mxu0 %v942
        %v1085 = vpop.f32.mrb[0].mxu0
        %v1086 = vadd.f32 %v1044, %v1085
        %v1087 = vpop.f32.mrb[0].mxu0
        %v1088 = vadd.f32 %v1048, %v1087
        %v1089 = vpop.f32.mrb[0].mxu0
        %v1090 = vpop.f32.mrb[0].mxu0
        %1091 = vdwg.mxu0
        %v1092 = vmax.f32 %v1086, 0.0
        %v1093 = vmax.f32 %v1088, 0.0
        %v1094 = vpack.c.bf16 %v1092, %v1092
        %v1095 = vpack.c.bf16 %v1093, %v1093
        %v1096 = vld [vmem:[#allocation11] sm:$0xf]
        %v1097 = vld [vmem:[#allocation11 + $0x4] sm:$0xf]
        %v1098 = vld [vmem:[#allocation11 + $0x8] sm:$0xf]
        %v1099 = vld [vmem:[#allocation11 + $0xc] sm:$0xf]
        %v1100 = vld [vmem:[#allocation11 + $0x10] sm:$0xf]
        %v1101 = vld [vmem:[#allocation11 + $0x14] sm:$0xf]
        %v1102 = vld [vmem:[#allocation11 + $0x18] sm:$0xf]
        %v1103 = vld [vmem:[#allocation11 + $0x1c] sm:$0xf]
        %v1104 = vld [vmem:[#allocation11 + $0x20] sm:$0xf]
        %v1105 = vld [vmem:[#allocation11 + $0x24] sm:$0xf]
        %v1106 = vld [vmem:[#allocation11 + $0x28] sm:$0xf]
        %v1107 = vld [vmem:[#allocation11 + $0x2c] sm:$0xf]
        %v1108 = vld [vmem:[#allocation11 + $0x30] sm:$0xf]
        %v1109 = vld [vmem:[#allocation11 + $0x34] sm:$0xf]
        %v1110 = vld [vmem:[#allocation11 + $0x38] sm:$0xf]
        %v1111 = vld [vmem:[#allocation11 + $0x3c] sm:$0xf]
        %v1112 = vld [vmem:[#allocation11 + $0x40] sm:$0xf]
        %v1113 = vld [vmem:[#allocation11 + $0x44] sm:$0xf]
        %v1114 = vld [vmem:[#allocation11 + $0x48] sm:$0xf]
        %v1115 = vld [vmem:[#allocation11 + $0x4c] sm:$0xf]
        %v1116 = vld [vmem:[#allocation11 + $0x50] sm:$0xf]
        %v1117 = vld [vmem:[#allocation11 + $0x54] sm:$0xf]
        %v1118 = vld [vmem:[#allocation11 + $0x58] sm:$0xf]
        %v1119 = vld [vmem:[#allocation11 + $0x5c] sm:$0xf]
        %v1120 = vld [vmem:[#allocation11 + $0x60] sm:$0xf]
        %v1121 = vld [vmem:[#allocation11 + $0x64] sm:$0xf]
        %v1122 = vld [vmem:[#allocation11 + $0x68] sm:$0xf]
        %v1123 = vld [vmem:[#allocation11 + $0x6c] sm:$0xf]
        %v1124 = vld [vmem:[#allocation11 + $0x70] sm:$0xf]
        %v1125 = vld [vmem:[#allocation11 + $0x74] sm:$0xf]
        %v1126 = vld [vmem:[#allocation11 + $0x78] sm:$0xf]
        %v1127 = vld [vmem:[#allocation11 + $0x7c] sm:$0xf]
        %v1128 = vld [vmem:[%s10] sm:$0x1]
        %v1161 = vunpack.c.l.b16 %v1096
        %v1162 = vunpack.c.l.b16 %v1097
        %v1163 = vunpack.c.l.b16 %v1098
        %v1164 = vunpack.c.l.b16 %v1099
        %v1165 = vunpack.c.l.b16 %v1100
        %v1166 = vunpack.c.l.b16 %v1101
        %v1167 = vunpack.c.l.b16 %v1102
        %v1168 = vunpack.c.l.b16 %v1103
        %v1169 = vunpack.c.l.b16 %v1104
        %v1170 = vunpack.c.l.b16 %v1105
        %v1171 = vunpack.c.l.b16 %v1106
        %v1172 = vunpack.c.l.b16 %v1107
        %v1173 = vunpack.c.l.b16 %v1108
        %v1174 = vunpack.c.l.b16 %v1109
        %v1175 = vunpack.c.l.b16 %v1110
        %v1176 = vunpack.c.l.b16 %v1111
        %v1177 = vunpack.c.l.b16 %v1112
        %v1178 = vunpack.c.l.b16 %v1113
        %v1179 = vunpack.c.l.b16 %v1114
        %v1180 = vunpack.c.l.b16 %v1115
        %v1181 = vunpack.c.l.b16 %v1116
        %v1182 = vunpack.c.l.b16 %v1117
        %v1183 = vunpack.c.l.b16 %v1118
        %v1184 = vunpack.c.l.b16 %v1119
        %v1185 = vunpack.c.l.b16 %v1120
        %v1186 = vunpack.c.l.b16 %v1121
        %v1187 = vunpack.c.l.b16 %v1122
        %v1188 = vunpack.c.l.b16 %v1123
        %v1189 = vunpack.c.l.b16 %v1124
        %v1190 = vunpack.c.l.b16 %v1125
        %v1191 = vunpack.c.l.b16 %v1126
        %v1192 = vunpack.c.l.b16 %v1127
        %v1193 = vpack.c.b16 %v1162, %v1161
        %v1194 = vpack.c.b16 %v1164, %v1163
        %v1195 = vpack.c.b16 %v1166, %v1165
        %v1196 = vpack.c.b16 %v1168, %v1167
        %v1197 = vpack.c.b16 %v1170, %v1169
        %v1198 = vpack.c.b16 %v1172, %v1171
        %v1199 = vpack.c.b16 %v1174, %v1173
        %v1200 = vpack.c.b16 %v1176, %v1175
        %v1201 = vpack.c.b16 %v1178, %v1177
        %v1202 = vpack.c.b16 %v1180, %v1179
        %v1203 = vpack.c.b16 %v1182, %v1181
        %v1204 = vpack.c.b16 %v1184, %v1183
        %v1205 = vpack.c.b16 %v1186, %v1185
        %v1206 = vpack.c.b16 %v1188, %v1187
        %v1207 = vpack.c.b16 %v1190, %v1189
        %v1208 = vpack.c.b16 %v1192, %v1191
        %1225 = vmatprep.subr.bf16.mxu0 0
        %1226 = vmatpush1.bf16.msra.mxu0 %v1193
        %1227 = vmatprep.subr.bf16.mxu0 0
        %1228 = vmatpush1.bf16.msra.mxu0 %v1194
        %1229 = vmatprep.subr.bf16.mxu0 0
        %1230 = vmatpush1.bf16.msra.mxu0 %v1195
        %1231 = vmatprep.subr.bf16.mxu0 0
        %1232 = vmatpush1.bf16.msra.mxu0 %v1196
        %1233 = vmatprep.subr.bf16.mxu0 0
        %1234 = vmatpush1.bf16.msra.mxu0 %v1197
        %1235 = vmatprep.subr.bf16.mxu0 0
        %1236 = vmatpush1.bf16.msra.mxu0 %v1198
        %1237 = vmatprep.subr.bf16.mxu0 0
        %1238 = vmatpush1.bf16.msra.mxu0 %v1199
        %1239 = vmatprep.subr.bf16.mxu0 0
        %1240 = vmatpush1.bf16.msra.mxu0 %v1200
        %1241 = vmatprep.subr.bf16.mxu0 0
        %1242 = vmatpush1.bf16.msra.mxu0 %v1201
        %1243 = vmatprep.subr.bf16.mxu0 0
        %1244 = vmatpush1.bf16.msra.mxu0 %v1202
        %1245 = vmatprep.subr.bf16.mxu0 0
        %1246 = vmatpush1.bf16.msra.mxu0 %v1203
        %1247 = vmatprep.subr.bf16.mxu0 0
        %1248 = vmatpush1.bf16.msra.mxu0 %v1204
        %1249 = vmatprep.subr.bf16.mxu0 0
        %1250 = vmatpush1.bf16.msra.mxu0 %v1205
        %1251 = vmatprep.subr.bf16.mxu0 0
        %1252 = vmatpush1.bf16.msra.mxu0 %v1206
        %1253 = vmatprep.subr.bf16.mxu0 0
        %1254 = vmatpush1.bf16.msra.mxu0 %v1207
        %1255 = vmatprep.subr.bf16.mxu0 0
        %1256 = vmatpush1.bf16.msra.mxu0 %v1208
        %1257 = vmatprep.mubr.bf16.mxu0 %v1095
        %1258 = vmatmul.mubr.bf16.gmra.mrb[0].mxu0 %v1094
        %v1259 = vpop.f32.mrb[0].mxu0
        %v1260 = vadd.f32 %v1128, %v1259
        %v1261 = vpop.f32.mrb[0].mxu0
        %v1262 = vpop.f32.mrb[0].mxu0
        %v1263 = vpop.f32.mrb[0].mxu0
        %1264 = vdwg.mxu0
        %v1265 = vlaneseq
        %v1266 = vshrl.u32 %v1265, 7
        %v1267 = vsub.s32 0, %v1266
        %v1268 = vrot.slane %v1260, %v1267
        %v1269 = vmul.f32 %v937, %v1268
        %v1270 = vpack.c.bf16 %v1269, %v1269
        %v1271 = vld [vmem:[#allocation12] sm:$0xff]
        %v1272 = vld [vmem:[#allocation12 + $0x8] sm:$0xff]
        %v1273 = vld [vmem:[#allocation12 + $0x10] sm:$0xff]
        %v1274 = vld [vmem:[#allocation12 + $0x18] sm:$0xff]
        %v1275 = vld [vmem:[#allocation12 + $0x20] sm:$0xff]
        %v1276 = vld [vmem:[#allocation12 + $0x28] sm:$0xff]
        %v1277 = vld [vmem:[#allocation12 + $0x30] sm:$0xff]
        %v1278 = vld [vmem:[#allocation12 + $0x38] sm:$0xff]
        %v1279 = vld [vmem:[#allocation12 + $0x40] sm:$0xff]
        %v1280 = vld [vmem:[#allocation12 + $0x48] sm:$0xff]
        %v1281 = vld [vmem:[#allocation12 + $0x50] sm:$0xff]
        %v1282 = vld [vmem:[#allocation12 + $0x58] sm:$0xff]
        %v1283 = vld [vmem:[#allocation12 + $0x60] sm:$0xff]
        %v1284 = vld [vmem:[#allocation12 + $0x68] sm:$0xff]
        %v1285 = vld [vmem:[#allocation12 + $0x70] sm:$0xff]
        %v1286 = vld [vmem:[#allocation12 + $0x78] sm:$0xff]
        %v1287 = vld [vmem:[%s12] sm:$0x3]
        %v1289 = vlaneseq
        %v1290 = vshrl.u32 %v1289, 7
        %v1291 = vsub.s32 0, %v1290
        %v1292 = vrot.slane %v1287, %v1291
        %v1293 = vlaneseq
        %v1294 = vshrl.u32 %v1293, 7
        %v1295 = vsub.s32 1, %v1294
        %v1296 = vrot.slane %v1287, %v1295
        %v1315 = vunpack.c.l.b16 %v1271
        %v1316 = vunpack.c.h.b16 %v1271
        %v1317 = vunpack.c.l.b16 %v1272
        %v1318 = vunpack.c.h.b16 %v1272
        %v1319 = vunpack.c.l.b16 %v1273
        %v1320 = vunpack.c.h.b16 %v1273
        %v1321 = vunpack.c.l.b16 %v1274
        %v1322 = vunpack.c.h.b16 %v1274
        %v1323 = vunpack.c.l.b16 %v1275
        %v1324 = vunpack.c.h.b16 %v1275
        %v1325 = vunpack.c.l.b16 %v1276
        %v1326 = vunpack.c.h.b16 %v1276
        %v1327 = vunpack.c.l.b16 %v1277
        %v1328 = vunpack.c.h.b16 %v1277
        %v1329 = vunpack.c.l.b16 %v1278
        %v1330 = vunpack.c.h.b16 %v1278
        %v1331 = vunpack.c.l.b16 %v1279
        %v1332 = vunpack.c.h.b16 %v1279
        %v1333 = vunpack.c.l.b16 %v1280
        %v1334 = vunpack.c.h.b16 %v1280
        %v1335 = vunpack.c.l.b16 %v1281
        %v1336 = vunpack.c.h.b16 %v1281
        %v1337 = vunpack.c.l.b16 %v1282
        %v1338 = vunpack.c.h.b16 %v1282
        %v1339 = vunpack.c.l.b16 %v1283
        %v1340 = vunpack.c.h.b16 %v1283
        %v1341 = vunpack.c.l.b16 %v1284
        %v1342 = vunpack.c.h.b16 %v1284
        %v1343 = vunpack.c.l.b16 %v1285
        %v1344 = vunpack.c.h.b16 %v1285
        %v1345 = vunpack.c.l.b16 %v1286
        %v1346 = vunpack.c.h.b16 %v1286
        %v1347 = vpack.c.b16 %v1317, %v1315
        %v1348 = vpack.c.b16 %v1318, %v1316
        %v1349 = vpack.c.b16 %v1321, %v1319
        %v1350 = vpack.c.b16 %v1322, %v1320
        %v1351 = vpack.c.b16 %v1325, %v1323
        %v1352 = vpack.c.b16 %v1326, %v1324
        %v1353 = vpack.c.b16 %v1329, %v1327
        %v1354 = vpack.c.b16 %v1330, %v1328
        %v1355 = vpack.c.b16 %v1333, %v1331
        %v1356 = vpack.c.b16 %v1334, %v1332
        %v1357 = vpack.c.b16 %v1337, %v1335
        %v1358 = vpack.c.b16 %v1338, %v1336
        %v1359 = vpack.c.b16 %v1341, %v1339
        %v1360 = vpack.c.b16 %v1342, %v1340
        %v1361 = vpack.c.b16 %v1345, %v1343
        %v1362 = vpack.c.b16 %v1346, %v1344
        %1379 = vmatprep.subr.bf16.mxu0 %v1348
        %1380 = vmatpush1.bf16.msra.mxu0 %v1347
        %1381 = vmatprep.subr.bf16.mxu0 %v1350
        %1382 = vmatpush1.bf16.msra.mxu0 %v1349
        %1383 = vmatprep.subr.bf16.mxu0 %v1352
        %1384 = vmatpush1.bf16.msra.mxu0 %v1351
        %1385 = vmatprep.subr.bf16.mxu0 %v1354
        %1386 = vmatpush1.bf16.msra.mxu0 %v1353
        %1387 = vmatprep.subr.bf16.mxu0 %v1356
        %1388 = vmatpush1.bf16.msra.mxu0 %v1355
        %1389 = vmatprep.subr.bf16.mxu0 %v1358
        %1390 = vmatpush1.bf16.msra.mxu0 %v1357
        %1391 = vmatprep.subr.bf16.mxu0 %v1360
        %1392 = vmatpush1.bf16.msra.mxu0 %v1359
        %1393 = vmatprep.subr.bf16.mxu0 %v1362
        %1394 = vmatpush1.bf16.msra.mxu0 %v1361
        %1395 = vmatprep.subr.bf16.mxu0 0
        %1396 = vmatpush1.bf16.msra.mxu0 0
        %1397 = vmatprep.subr.bf16.mxu0 0
        %1398 = vmatpush1.bf16.msra.mxu0 0
        %1399 = vmatprep.subr.bf16.mxu0 0
        %1400 = vmatpush1.bf16.msra.mxu0 0
        %1401 = vmatprep.subr.bf16.mxu0 0
        %1402 = vmatpush1.bf16.msra.mxu0 0
        %1403 = vmatprep.subr.bf16.mxu0 0
        %1404 = vmatpush1.bf16.msra.mxu0 0
        %1405 = vmatprep.subr.bf16.mxu0 0
        %1406 = vmatpush1.bf16.msra.mxu0 0
        %1407 = vmatprep.subr.bf16.mxu0 0
        %1408 = vmatpush1.bf16.msra.mxu0 0
        %1409 = vmatprep.subr.bf16.mxu0 0
        %1410 = vmatpush1.bf16.msra.mxu0 0
        %1411 = vmatprep.mubr.bf16.mxu0 0
        %1412 = vmatmul.mubr.bf16.gmra.mrb[0].mxu0 %v1270
        %v1413 = vpop.f32.mrb[0].mxu0
        %v1414 = vadd.f32 %v1292, %v1413
        %v1415 = vpop.f32.mrb[0].mxu0
        %v1416 = vadd.f32 %v1296, %v1415
        %v1417 = vpop.f32.mrb[0].mxu0
        %v1418 = vpop.f32.mrb[0].mxu0
        %1419 = vdwg.mxu0
        %v1420 = vmax.f32 %v1414, 0.0
        %v1421 = vmax.f32 %v1416, 0.0
        %v1422 = vld [vmem:[%s13] sm:$0x3]
        %v1423 = vunpack.c.l.bf16 %v1422
        %v1425 = vlaneseq
        %v1426 = vshrl.u32 %v1425, 7
        %v1427 = vsub.s32 0, %v1426
        %v1428 = vrot.slane %v1423, %v1427
        %v1429 = vlaneseq
        %v1430 = vshrl.u32 %v1429, 7
        %v1431 = vsub.s32 2, %v1430
        %v1432 = vrot.slane %v1423, %v1431
        %v1435 = vlaneseq
        %v1436 = vshrl.u32 %v1435, 7
        %v1437 = vsub.s32 0, %v1436
        %v1438 = vrot.slane %v1428, %v1437
        %v1439 = vlaneseq
        %v1440 = vshrl.u32 %v1439, 7
        %v1441 = vsub.s32 0, %v1440
        %v1442 = vrot.slane %v1432, %v1441
        %v1443 = vmul.f32 %v1420, %v1438
        %v1444 = vmul.f32 %v1421, %v1442
        %v1445 = vadd.f32 %v1443, %v1444
        %1446 = vadd.xlane.f32.xlu0 %v1445
        %v1447 = vpop.xlane.xlu0 %1446
        %v1448 = vld [vmem:[#allocation2] sm:$0x1]
        %1450 = vset.pattern.permute.xlu0 0
        %1451 = vperm.xlu0 %1450, %v1448
        %v1452 = vpop.permute.xlu0 %1451
        %v1454 = vlaneseq
        %v1455 = vshrl.u32 %v1454, 7
        %v1456 = vsub.s32 0, %v1455
        %v1457 = vrot.slane %v1452, %v1456
        %v1458 = vadd.f32 %v1447, %v1457
        %v1459 = vld [vmem:[%s611] sm:$0x1]
        %vm1460 = vcmp.ne.s32.totalorder %v1459, 0
        %v1462 = vlaneseq
        %v1463 = vshrl.u32 %v1462, 7
        %v1464 = vsub.s32 0, %v1463
        %v1465 = vrot.slane %v1458, %v1464
        %v1466 = vlaneseq
        %v1467 = vshrl.u32 %v1466, 7
        %v1468 = vsub.s32 1, %v1467
        %v1469 = vrot.slane %v1458, %v1468
        %v1470 = vlaneseq
        %v1471 = vshrl.u32 %v1470, 7
        %v1472 = vsub.s32 2, %v1471
        %v1473 = vrot.slane %v1458, %v1472
        %v1474 = vlaneseq
        %v1475 = vshrl.u32 %v1474, 7
        %v1476 = vsub.s32 3, %v1475
        %v1477 = vrot.slane %v1458, %v1476
        %v1478 = vlaneseq
        %v1479 = vshrl.u32 %v1478, 7
        %v1480 = vsub.s32 4, %v1479
        %v1481 = vrot.slane %v1458, %v1480
        %v1482 = vlaneseq
        %v1483 = vshrl.u32 %v1482, 7
        %v1484 = vsub.s32 5, %v1483
        %v1485 = vrot.slane %v1458, %v1484
        %v1486 = vlaneseq
        %v1487 = vshrl.u32 %v1486, 7
        %v1488 = vsub.s32 6, %v1487
        %v1489 = vrot.slane %v1458, %v1488
        %v1490 = vlaneseq
        %v1491 = vshrl.u32 %v1490, 7
        %v1492 = vsub.s32 7, %v1491
        %v1493 = vrot.slane %v1458, %v1492
        %v1494 = vcombine.low %v1465, %v1469
        %v1495 = vcombine.low %v1473, %v1477
        %v1496 = vcombine.low %v1481, %v1485
        %v1497 = vcombine.low %v1489, %v1493
        %v1499 = vunpack.c.l.s4 1966171168
        %v1500 = vunpack.c.0.s8 %v1499
        %v1501 = vlaneseq
        %v1502 = vshrl.u32 %v1501, 7
        %v1503 = vsub.s32 %v1500, %v1502
        %v1504 = vrot.slane %v1494, %v1503
        %v1506 = vunpack.c.l.s4 1966171168
        %v1507 = vunpack.c.0.s8 %v1506
        %v1508 = vlaneseq
        %v1509 = vshrl.u32 %v1508, 7
        %v1510 = vsub.s32 %v1507, %v1509
        %v1511 = vrot.slane %v1495, %v1510
        %v1513 = vunpack.c.l.s4 1966171168
        %v1514 = vunpack.c.0.s8 %v1513
        %v1515 = vlaneseq
        %v1516 = vshrl.u32 %v1515, 7
        %v1517 = vsub.s32 %v1514, %v1516
        %v1518 = vrot.slane %v1496, %v1517
        %v1520 = vunpack.c.l.s4 1966171168
        %v1521 = vunpack.c.0.s8 %v1520
        %v1522 = vlaneseq
        %v1523 = vshrl.u32 %v1522, 7
        %v1524 = vsub.s32 %v1521, %v1523
        %v1525 = vrot.slane %v1497, %v1524
        %v1526 = vcombine.low %v1504, %v1511
        %v1527 = vcombine.low %v1518, %v1525
        %v1529 = vunpack.c.l.s4 1966171168
        %v1530 = vunpack.c.0.s8 %v1529
        %v1531 = vlaneseq
        %v1532 = vshrl.u32 %v1531, 7
        %v1533 = vsub.s32 %v1530, %v1532
        %v1534 = vrot.slane %v1526, %v1533
        %v1536 = vunpack.c.l.s4 1966171168
        %v1537 = vunpack.c.0.s8 %v1536
        %v1538 = vlaneseq
        %v1539 = vshrl.u32 %v1538, 7
        %v1540 = vsub.s32 %v1537, %v1539
        %v1541 = vrot.slane %v1527, %v1540
        %v1542 = vcombine.low %v1534, %v1541
        %1543 = vset.pattern.permute.xlu0 0
        %1544 = vperm.xlu0 %1543, %v1542
        %v1545 = vpop.permute.xlu0 %1544
        %v1546 = vlaneseq
        %v1547 = vand.u32 %v1546, 127
        %v1548 = vlaneseq
        %v1549 = vshrl.u32 %v1548, 7
        %v1550 = vsub.s32 %v1547, %v1549
        %v1551 = vrot.slane %v1545, %v1550
        %v1553 = vunpack.c.l.s4 1966171168
        %v1554 = vunpack.c.0.s8 %v1553
        %v1555 = vlaneseq
        %v1556 = vshrl.u32 %v1555, 7
        %v1557 = vsub.s32 %v1554, %v1556
        %v1558 = vrot.slane %v1551, %v1557
        %v1560 = vunpack.c.l.s4 1966171168
        %v1561 = vunpack.c.0.s8 %v1560
        %v1562 = vlaneseq
        %v1563 = vshrl.u32 %v1562, 7
        %v1564 = vsub.s32 %v1561, %v1563
        %v1565 = vrot.slane %v1558, %v1564
        %v1567 = vsel %vm1460, -65504.0, %v1565
        %vm1568 = vcmask 57344
        %v1569 = vsel %vm1568, %v1567, -inf
        %1570 = vmax.xlane.f32.xlu0 %v1569
        %v1571 = vpop.xlane.xlu0 %1570
        %v1572 = vsub.f32 %v1567, %v1571
        %v1573 = vmul.f32 %v1572, 1.442695
        %v1574 = vpow.pop %v1573
        %v1575 = vsel %vm1568, %v1574, 0.0
        %1576 = vadd.xlane.f32.xlu0 %v1575
        %v1577 = vpop.xlane.xlu0 %1576
        %v1578 = vrcp.pop %v1577
        %v1579 = vmul.f32 %v1577, %v1578
        %v1580 = vsub.f32 2.0, %v1579
        %v1581 = vmul.f32 %v1578, %v1580
        %v1582 = vmul.f32 %v1574, %v1581
        %1583 = vst.msk [vmem:[%s605] sm:$0x1] %vm1568, %v1582
        %s1584 = sand.u32 %s375, 1
        %s1585 = scalar_lea.sflag [#allocation5], %s1584
        %s1586 = sand.u32 %s375, 1
        %s1587 = scalar_lea.vmem [#allocation14], %s1586
        // Predicated region
        $region105: #{tpu_custom_call.1} parent=79 // pred_check
          %p1588 = pneg %p385
        $region106: #{tpu_custom_call.1} parent=79 // pred_check_branch
          %1590 = sbr.rel (%p1588) target = $region108
        $region107: #{tpu_custom_call.1} parent=79 // pred_region
          %s1592 = ssub.s32 16, 16
          %1593 = vsyncadd %s1585, %s1592
          %s1594 = smul.addr %s37, 16
          %s1595 = scalar_lea.hbm %s15, %s1594
          %s1597 = sshll.u32 %s1587, 4
          %s1598 = int_to_ptr.vmem [resolvable:$true] %s1597
          %1600 = dma.vmem_to_hbm [thread:$0]  %s1598, 16, %s1595, %s1585
        $region108: #{tpu_custom_call.1} parent=79 // pred_fallthru
          _
      $region80: #{tpu_custom_call.1} parent=5 // pred_fallthru
        _
      %p1601 = scmp.le.s32.totalorder 2, %s32
      // Predicated region
      $region109: #{tpu_custom_call.1} parent=5 // pred_check
        %p1602 = pneg %p1601
      $region110: #{tpu_custom_call.1} parent=5 // pred_check_branch
        %1604 = sbr.rel (%p1602) target = $region112
      $region111: #{tpu_custom_call.1} parent=5 // pred_region
        %s1605 = ssub.s32 %s32, 2
        // Predicated region
        $region113: #{tpu_custom_call.1} parent=111 // pred_check
          %p1606 = pneg %p391
        $region114: #{tpu_custom_call.1} parent=111 // pred_check_branch
          %1608 = sbr.rel (%p1606) target = $region116
        $region115: #{tpu_custom_call.1} parent=111 // pred_region
          %s1609 = sand.u32 %s376, 1
          %s1610 = scalar_lea.sflag [#allocation5], %s1609
          %s1611 = sand.u32 %s376, 1
          %s1612 = scalar_lea.vmem [#allocation14], %s1611
          %1613 = dma.done %s1610, 16
        $region116: #{tpu_custom_call.1} parent=111 // pred_fallthru
          _
      $region112: #{tpu_custom_call.1} parent=5 // pred_fallthru
        _
    $region6: #{tpu_custom_call.1} parent=1 // loop_footer
      %s36 = sadd.s32 1, %s32
    $region7: #{tpu_custom_call.1} parent=1 // loop_footer_branch
      %31 = sbr.rel target = $region3
    $region8: #{tpu_custom_call.1} parent=1 // loop_exit
      _
    %1614 = vsyncpa [#allocation4], 1
    %s1615 = scalar_lea.sflag [#allocation4], 1
    %1616 = vsyncpa %s1615, 1
    %1617 = vsyncpa [#allocation7], 1
    %1618 = vsyncpa [#allocation10], 1
    %1619 = vsyncpa [#allocation13], 1
    %1620 = vsyncpa [#allocation5], 1
    %s1621 = scalar_lea.sflag [#allocation5], 1
    %1622 = vsyncpa %s1621, 1

// kernel: tpu_custom_call.1
$region0: #{tpu_custom_call.1}
  #allocation0 [shape = 'u32[]', space=smem, size = 0x4, offset = 0x4, fixed_abs, tag = 'smem constant byte address 0x4 - core index']
  #allocation1 [shape = 'u32[144,128]{1,0:T(1,128)}', space=vmem, size = 0x12000, scoped, tag = 'internal scratch']
  #allocation2 [shape = 'f32[1,1]{1,0:T(1,128)S(1)}', space=vmem, size = 0x200, scoped, tag = 'scoped memory for tpu_custom_call.1']
  %s0 = inlined_call_operand.hbm [shape: bf16[2,8,128], index: 0, kind: input, shape index: {}]
  %s1 = inlined_call_operand.vmem [shape: bf16[2,1,128], index: 1, kind: input, shape index: {}]
  %s2 = inlined_call_operand.vmem [shape: s32[2,1,8], index: 2, kind: input, shape index: {}]
  %s3 = inlined_call_operand.hbm [shape: bf16[128,256], index: 3, kind: input, shape index: {}]
  %s4 = inlined_call_operand.vmem [shape: f32[1,256], index: 4, kind: input, shape index: {}]
  %s5 = inlined_call_operand.hbm [shape: bf16[256,128], index: 5, kind: input, shape index: {}]
  %s6 = inlined_call_operand.vmem [shape: f32[1,128], index: 6, kind: input, shape index: {}]
  %s7 = inlined_call_operand.hbm [shape: bf16[128,256], index: 7, kind: input, shape index: {}]
  %s8 = inlined_call_operand.vmem [shape: f32[1,256], index: 8, kind: input, shape index: {}]
  %s9 = inlined_call_operand.hbm [shape: bf16[256,128], index: 9, kind: input, shape index: {}]
  %s10 = inlined_call_operand.vmem [shape: f32[1,128], index: 10, kind: input, shape index: {}]
  %s11 = inlined_call_operand.hbm [shape: bf16[128,256], index: 11, kind: input, shape index: {}]
  %s12 = inlined_call_operand.vmem [shape: f32[1,256], index: 12, kind: input, shape index: {}]
  %s13 = inlined_call_operand.vmem [shape: bf16[1,256], index: 13, kind: input, shape index: {}]
  %s14 = inlined_call_operand.<no memory space> [shape: f32[1,1], index: 14, kind: input, shape index: {}]
  %s15 = inlined_call_operand.hbm [shape: f32[2,1,8], index: 15, kind: output, shape index: {}]
  %s16 = sld [smem:[#allocation0]]
  $region117: #{tpu_custom_call.1} parent=0
    _
  %s18 = ssub.s32 1, %s16
  %s19 = scalar_select 0, %s18, %s16
  %v20 = vstv %s14
  %21 = vst [vmem:[#allocation2] sm:$0x1] %v20
  $region1: #{tpu_custom_call.1} parent=0
    #allocation3 [shape = 'u8[4096]{0}', space=vmem, size = 0x1000, scoped, tag = 'input window, operand 0']
    #allocation4 [shape = 's32[2]{0}', space=sflag, size = 0x8, scoped, tag = 'scoped memory for tpu_custom_call.1']
    #allocation5 [shape = 's32[2]{0}', space=sflag, size = 0x8, scoped, tag = 'scoped memory for tpu_custom_call.1']
    #allocation6 [shape = 'u8[65536]{0}', space=vmem, size = 0x10000, scoped, tag = 'input window, operand 3, single buffered']
    #allocation7 [shape = 's32[1]{0}', space=sflag, size = 0x4, scoped, tag = 'scoped memory for tpu_custom_call.1']
    #allocation8 [shape = 'u8[65536]{0}', space=vmem, size = 0x10000, scoped, tag = 'input window, operand 5, single buffered']
    #allocation9 [shape = 'u8[65536]{0}', space=vmem, size = 0x10000, scoped, tag = 'input window, operand 7, single buffered']
    #allocation10 [shape = 's32[1]{0}', space=sflag, size = 0x4, scoped, tag = 'scoped memory for tpu_custom_call.1']
    #allocation11 [shape = 'u8[65536]{0}', space=vmem, size = 0x10000, scoped, tag = 'input window, operand 9, single buffered']
    #allocation12 [shape = 'u8[65536]{0}', space=vmem, size = 0x10000, scoped, tag = 'input window, operand 11, single buffered']
    #allocation13 [shape = 's32[1]{0}', space=sflag, size = 0x4, scoped, tag = 'scoped memory for tpu_custom_call.1']
    #allocation14 [shape = 'u8[1024]{0}', space=vmem, size = 0x400, scoped, tag = 'output window, operand 0']
    %22 = vsyncpa [#allocation4], 0
    %s23 = scalar_lea.sflag [#allocation4], 1
    %24 = vsyncpa %s23, 0
    %25 = vsyncpa [#allocation7], 0
    %26 = vsyncpa [#allocation10], 0
    %27 = vsyncpa [#allocation13], 0
    %28 = vsyncpa [#allocation5], 0
    %s29 = scalar_lea.sflag [#allocation5], 1
    %30 = vsyncpa %s29, 0
    loop: start=0, step=1, limit=4
    $region2: #{tpu_custom_call.1} parent=1 // loop_pre_header
      _
    $region3: #{tpu_custom_call.1} parent=1 // loop_header
      %s32 = sphi 0, %s36
      %p33 = scmp.ge.s32.totalorder %s32, 4
      %s42 = sphi 0, %s44
      %s45 = sphi 0, %s42
      %s46 = sphi 0, %s45
      %s62 = sphi 0, %s46
      %s68 = sphi 0, %s70
      %s71 = sphi 0, %s68
      %s72 = sphi 0, %s71
      %s88 = sphi 0, %s72
      %s94 = sphi 0, %s96
      %s97 = sphi 0, %s94
      %s98 = sphi 0, %s97
      %s114 = sphi 0, %s98
      %s118 = sphi 0, %s118
      %s120 = sphi 0, %s118
      %s121 = sphi 0, %s120
      %s135 = sphi 0, %s121
      %s139 = sphi 0, %s139
      %s141 = sphi 0, %s139
      %s142 = sphi 0, %s141
      %s156 = sphi 0, %s142
      %s160 = sphi 0, %s160
      %s162 = sphi 0, %s160
      %s163 = sphi 0, %s162
      %s177 = sphi 0, %s163
      %s181 = sphi 0, %s181
      %s183 = sphi 0, %s181
      %s184 = sphi 0, %s183
      %s198 = sphi 0, %s184
      %s202 = sphi 0, %s202
      %s204 = sphi 0, %s202
      %s205 = sphi 0, %s204
      %s219 = sphi 0, %s205
      %s223 = sphi 0, %s223
      %s225 = sphi 0, %s223
      %s226 = sphi 0, %s225
      %s240 = sphi 0, %s226
      %s244 = sphi 0, %s244
      %s246 = sphi 0, %s244
      %s247 = sphi 0, %s246
      %s261 = sphi 0, %s247
      %s265 = sphi 0, %s265
      %s267 = sphi 0, %s265
      %s268 = sphi 0, %s267
      %s282 = sphi 0, %s268
      %s286 = sphi 0, %s286
      %s288 = sphi 0, %s286
      %s289 = sphi 0, %s288
      %s303 = sphi 0, %s289
      %s307 = sphi 0, %s307
      %s309 = sphi 0, %s307
      %s310 = sphi 0, %s309
      %s324 = sphi 0, %s310
      %s328 = sphi 0, %s328
      %s330 = sphi 0, %s328
      %s331 = sphi 0, %s330
      %s345 = sphi 0, %s331
      %s349 = sphi 0, %s349
      %s351 = sphi 0, %s349
      %s352 = sphi 0, %s351
      %s366 = sphi 0, %s352
      %s372 = sphi 0, %s374
      %s375 = sphi 0, %s372
      %s376 = sphi 0, %s375
      %s392 = sphi 0, %s376
    $region4: #{tpu_custom_call.1} parent=1 // loop_header_branch
      %35 = sbr.rel (%p33) target = $region8
    $region5: #{tpu_custom_call.1} parent=1 // loop_body
      %s37 = ssub.s32 %s32, 1
      %s38 = ssub.s32 %s32, 2
      %s39 = sadd.s32 %s32, 1
      %s40 = ssub.s32 %s32, %s39
      %p41 = scmp.eq.s32.totalorder %s40, 0
      %s43 = sadd.s32 %s42, 1
      %s44 = scalar_select %p41, %s42, %s43
      %p47 = pneg %p41
      %p48 = scmp.eq.s32.totalorder %s32, 1
      %p49 = por %p47, %p48
      %p50 = scmp.ne.s32.totalorder %s42, %s45
      %p51 = scmp.eq.s32.totalorder %s32, 0
      %p52 = por %p50, %p51
      %p53 = scmp.ne.s32.totalorder %s42, %s45
      %p54 = scmp.eq.s32.totalorder %s37, 1
      %p55 = por %p53, %p54
      %p56 = scmp.ne.s32.totalorder %s45, %s46
      %p57 = scmp.eq.s32.totalorder %s37, 0
      %p58 = por %p56, %p57
      %p59 = scmp.ne.s32.totalorder %s45, %s46
      %p60 = scmp.eq.s32.totalorder %s38, 1
      %p61 = por %p59, %p60
      %p63 = scmp.ne.s32.totalorder %s46, %s62
      %p64 = scmp.eq.s32.totalorder %s38, 0
      %p65 = por %p63, %p64
      %s66 = ssub.s32 %s32, %s39
      %p67 = scmp.eq.s32.totalorder %s66, 0
      %s69 = sadd.s32 %s68, 1
      %s70 = scalar_select %p67, %s68, %s69
      %p73 = pneg %p67
      %p74 = scmp.eq.s32.totalorder %s32, 1
      %p75 = por %p73, %p74
      %p76 = scmp.ne.s32.totalorder %s68, %s71
      %p77 = scmp.eq.s32.totalorder %s32, 0
      %p78 = por %p76, %p77
      %p79 = scmp.ne.s32.totalorder %s68, %s71
      %p80 = scmp.eq.s32.totalorder %s37, 1
      %p81 = por %p79, %p80
      %p82 = scmp.ne.s32.totalorder %s71, %s72
      %p83 = scmp.eq.s32.totalorder %s37, 0
      %p84 = por %p82, %p83
      %p85 = scmp.ne.s32.totalorder %s71, %s72
      %p86 = scmp.eq.s32.totalorder %s38, 1
      %p87 = por %p85, %p86
      %p89 = scmp.ne.s32.totalorder %s72, %s88
      %p90 = scmp.eq.s32.totalorder %s38, 0
      %p91 = por %p89, %p90
      %s92 = ssub.s32 %s32, %s39
      %p93 = scmp.eq.s32.totalorder %s92, 0
      %s95 = sadd.s32 %s94, 1
      %s96 = scalar_select %p93, %s94, %s95
      %p99 = pneg %p93
      %p100 = scmp.eq.s32.totalorder %s32, 1
      %p101 = por %p99, %p100
      %p102 = scmp.ne.s32.totalorder %s94, %s97
      %p103 = scmp.eq.s32.totalorder %s32, 0
      %p104 = por %p102, %p103
      %p105 = scmp.ne.s32.totalorder %s94, %s97
      %p106 = scmp.eq.s32.totalorder %s37, 1
      %p107 = por %p105, %p106
      %p108 = scmp.ne.s32.totalorder %s97, %s98
      %p109 = scmp.eq.s32.totalorder %s37, 0
      %p110 = por %p108, %p109
      %p111 = scmp.ne.s32.totalorder %s97, %s98
      %p112 = scmp.eq.s32.totalorder %s38, 1
      %p113 = por %p111, %p112
      %p115 = scmp.ne.s32.totalorder %s98, %s114
      %p116 = scmp.eq.s32.totalorder %s38, 0
      %p117 = por %p115, %p116
      %s119 = sadd.s32 %s118, 1
      %p122 = scmp.eq.s32.totalorder %s32, 1
      %p123 = scmp.ne.s32.totalorder %s118, %s120
      %p124 = scmp.eq.s32.totalorder %s32, 0
      %p125 = por %p123, %p124
      %p126 = scmp.ne.s32.totalorder %s118, %s120
      %p127 = scmp.eq.s32.totalorder %s37, 1
      %p128 = por %p126, %p127
      %p129 = scmp.ne.s32.totalorder %s120, %s121
      %p130 = scmp.eq.s32.totalorder %s37, 0
      %p131 = por %p129, %p130
      %p132 = scmp.ne.s32.totalorder %s120, %s121
      %p133 = scmp.eq.s32.totalorder %s38, 1
      %p134 = por %p132, %p133
      %p136 = scmp.ne.s32.totalorder %s121, %s135
      %p137 = scmp.eq.s32.totalorder %s38, 0
      %p138 = por %p136, %p137
      %s140 = sadd.s32 %s139, 1
      %p143 = scmp.eq.s32.totalorder %s32, 1
      %p144 = scmp.ne.s32.totalorder %s139, %s141
      %p145 = scmp.eq.s32.totalorder %s32, 0
      %p146 = por %p144, %p145
      %p147 = scmp.ne.s32.totalorder %s139, %s141
      %p148 = scmp.eq.s32.totalorder %s37, 1
      %p149 = por %p147, %p148
      %p150 = scmp.ne.s32.totalorder %s141, %s142
      %p151 = scmp.eq.s32.totalorder %s37, 0
      %p152 = por %p150, %p151
      %p153 = scmp.ne.s32.totalorder %s141, %s142
      %p154 = scmp.eq.s32.totalorder %s38, 1
      %p155 = por %p153, %p154
      %p157 = scmp.ne.s32.totalorder %s142, %s156
      %p158 = scmp.eq.s32.totalorder %s38, 0
      %p159 = por %p157, %p158
      %s161 = sadd.s32 %s160, 1
      %p164 = scmp.eq.s32.totalorder %s32, 1
      %p165 = scmp.ne.s32.totalorder %s160, %s162
      %p166 = scmp.eq.s32.totalorder %s32, 0
      %p167 = por %p165, %p166
      %p168 = scmp.ne.s32.totalorder %s160, %s162
      %p169 = scmp.eq.s32.totalorder %s37, 1
      %p170 = por %p168, %p169
      %p171 = scmp.ne.s32.totalorder %s162, %s163
      %p172 = scmp.eq.s32.totalorder %s37, 0
      %p173 = por %p171, %p172
      %p174 = scmp.ne.s32.totalorder %s162, %s163
      %p175 = scmp.eq.s32.totalorder %s38, 1
      %p176 = por %p174, %p175
      %p178 = scmp.ne.s32.totalorder %s163, %s177
      %p179 = scmp.eq.s32.totalorder %s38, 0
      %p180 = por %p178, %p179
      %s182 = sadd.s32 %s181, 1
      %p185 = scmp.eq.s32.totalorder %s32, 1
      %p186 = scmp.ne.s32.totalorder %s181, %s183
      %p187 = scmp.eq.s32.totalorder %s32, 0
      %p188 = por %p186, %p187
      %p189 = scmp.ne.s32.totalorder %s181, %s183
      %p190 = scmp.eq.s32.totalorder %s37, 1
      %p191 = por %p189, %p190
      %p192 = scmp.ne.s32.totalorder %s183, %s184
      %p193 = scmp.eq.s32.totalorder %s37, 0
      %p194 = por %p192, %p193
      %p195 = scmp.ne.s32.totalorder %s183, %s184
      %p196 = scmp.eq.s32.totalorder %s38, 1
      %p197 = por %p195, %p196
      %p199 = scmp.ne.s32.totalorder %s184, %s198
      %p200 = scmp.eq.s32.totalorder %s38, 0
      %p201 = por %p199, %p200
      %s203 = sadd.s32 %s202, 1
      %p206 = scmp.eq.s32.totalorder %s32, 1
      %p207 = scmp.ne.s32.totalorder %s202, %s204
      %p208 = scmp.eq.s32.totalorder %s32, 0
      %p209 = por %p207, %p208
      %p210 = scmp.ne.s32.totalorder %s202, %s204
      %p211 = scmp.eq.s32.totalorder %s37, 1
      %p212 = por %p210, %p211
      %p213 = scmp.ne.s32.totalorder %s204, %s205
      %p214 = scmp.eq.s32.totalorder %s37, 0
      %p215 = por %p213, %p214
      %p216 = scmp.ne.s32.totalorder %s204, %s205
      %p217 = scmp.eq.s32.totalorder %s38, 1
      %p218 = por %p216, %p217
      %p220 = scmp.ne.s32.totalorder %s205, %s219
      %p221 = scmp.eq.s32.totalorder %s38, 0
      %p222 = por %p220, %p221
      %s224 = sadd.s32 %s223, 1
      %p227 = scmp.eq.s32.totalorder %s32, 1
      %p228 = scmp.ne.s32.totalorder %s223, %s225
      %p229 = scmp.eq.s32.totalorder %s32, 0
      %p230 = por %p228, %p229
      %p231 = scmp.ne.s32.totalorder %s223, %s225
      %p232 = scmp.eq.s32.totalorder %s37, 1
      %p233 = por %p231, %p232
      %p234 = scmp.ne.s32.totalorder %s225, %s226
      %p235 = scmp.eq.s32.totalorder %s37, 0
      %p236 = por %p234, %p235
      %p237 = scmp.ne.s32.totalorder %s225, %s226
      %p238 = scmp.eq.s32.totalorder %s38, 1
      %p239 = por %p237, %p238
      %p241 = scmp.ne.s32.totalorder %s226, %s240
      %p242 = scmp.eq.s32.totalorder %s38, 0
      %p243 = por %p241, %p242
      %s245 = sadd.s32 %s244, 1
      %p248 = scmp.eq.s32.totalorder %s32, 1
      %p249 = scmp.ne.s32.totalorder %s244, %s246
      %p250 = scmp.eq.s32.totalorder %s32, 0
      %p251 = por %p249, %p250
      %p252 = scmp.ne.s32.totalorder %s244, %s246
      %p253 = scmp.eq.s32.totalorder %s37, 1
      %p254 = por %p252, %p253
      %p255 = scmp.ne.s32.totalorder %s246, %s247
      %p256 = scmp.eq.s32.totalorder %s37, 0
      %p257 = por %p255, %p256
      %p258 = scmp.ne.s32.totalorder %s246, %s247
      %p259 = scmp.eq.s32.totalorder %s38, 1
      %p260 = por %p258, %p259
      %p262 = scmp.ne.s32.totalorder %s247, %s261
      %p263 = scmp.eq.s32.totalorder %s38, 0
      %p264 = por %p262, %p263
      %s266 = sadd.s32 %s265, 1
      %p269 = scmp.eq.s32.totalorder %s32, 1
      %p270 = scmp.ne.s32.totalorder %s265, %s267
      %p271 = scmp.eq.s32.totalorder %s32, 0
      %p272 = por %p270, %p271
      %p273 = scmp.ne.s32.totalorder %s265, %s267
      %p274 = scmp.eq.s32.totalorder %s37, 1
      %p275 = por %p273, %p274
      %p276 = scmp.ne.s32.totalorder %s267, %s268
      %p277 = scmp.eq.s32.totalorder %s37, 0
      %p278 = por %p276, %p277
      %p279 = scmp.ne.s32.totalorder %s267, %s268
      %p280 = scmp.eq.s32.totalorder %s38, 1
      %p281 = por %p279, %p280
      %p283 = scmp.ne.s32.totalorder %s268, %s282
      %p284 = scmp.eq.s32.totalorder %s38, 0
      %p285 = por %p283, %p284
      %s287 = sadd.s32 %s286, 1
      %p290 = scmp.eq.s32.totalorder %s32, 1
      %p291 = scmp.ne.s32.totalorder %s286, %s288
      %p292 = scmp.eq.s32.totalorder %s32, 0
      %p293 = por %p291, %p292
      %p294 = scmp.ne.s32.totalorder %s286, %s288
      %p295 = scmp.eq.s32.totalorder %s37, 1
      %p296 = por %p294, %p295
      %p297 = scmp.ne.s32.totalorder %s288, %s289
      %p298 = scmp.eq.s32.totalorder %s37, 0
      %p299 = por %p297, %p298
      %p300 = scmp.ne.s32.totalorder %s288, %s289
      %p301 = scmp.eq.s32.totalorder %s38, 1
      %p302 = por %p300, %p301
      %p304 = scmp.ne.s32.totalorder %s289, %s303
      %p305 = scmp.eq.s32.totalorder %s38, 0
      %p306 = por %p304, %p305
      %s308 = sadd.s32 %s307, 1
      %p311 = scmp.eq.s32.totalorder %s32, 1
      %p312 = scmp.ne.s32.totalorder %s307, %s309
      %p313 = scmp.eq.s32.totalorder %s32, 0
      %p314 = por %p312, %p313
      %p315 = scmp.ne.s32.totalorder %s307, %s309
      %p316 = scmp.eq.s32.totalorder %s37, 1
      %p317 = por %p315, %p316
      %p318 = scmp.ne.s32.totalorder %s309, %s310
      %p319 = scmp.eq.s32.totalorder %s37, 0
      %p320 = por %p318, %p319
      %p321 = scmp.ne.s32.totalorder %s309, %s310
      %p322 = scmp.eq.s32.totalorder %s38, 1
      %p323 = por %p321, %p322
      %p325 = scmp.ne.s32.totalorder %s310, %s324
      %p326 = scmp.eq.s32.totalorder %s38, 0
      %p327 = por %p325, %p326
      %s329 = sadd.s32 %s328, 1
      %p332 = scmp.eq.s32.totalorder %s32, 1
      %p333 = scmp.ne.s32.totalorder %s328, %s330
      %p334 = scmp.eq.s32.totalorder %s32, 0
      %p335 = por %p333, %p334
      %p336 = scmp.ne.s32.totalorder %s328, %s330
      %p337 = scmp.eq.s32.totalorder %s37, 1
      %p338 = por %p336, %p337
      %p339 = scmp.ne.s32.totalorder %s330, %s331
      %p340 = scmp.eq.s32.totalorder %s37, 0
      %p341 = por %p339, %p340
      %p342 = scmp.ne.s32.totalorder %s330, %s331
      %p343 = scmp.eq.s32.totalorder %s38, 1
      %p344 = por %p342, %p343
      %p346 = scmp.ne.s32.totalorder %s331, %s345
      %p347 = scmp.eq.s32.totalorder %s38, 0
      %p348 = por %p346, %p347
      %s350 = sadd.s32 %s349, 1
      %p353 = scmp.eq.s32.totalorder %s32, 1
      %p354 = scmp.ne.s32.totalorder %s349, %s351
      %p355 = scmp.eq.s32.totalorder %s32, 0
      %p356 = por %p354, %p355
      %p357 = scmp.ne.s32.totalorder %s349, %s351
      %p358 = scmp.eq.s32.totalorder %s37, 1
      %p359 = por %p357, %p358
      %p360 = scmp.ne.s32.totalorder %s351, %s352
      %p361 = scmp.eq.s32.totalorder %s37, 0
      %p362 = por %p360, %p361
      %p363 = scmp.ne.s32.totalorder %s351, %s352
      %p364 = scmp.eq.s32.totalorder %s38, 1
      %p365 = por %p363, %p364
      %p367 = scmp.ne.s32.totalorder %s352, %s366
      %p368 = scmp.eq.s32.totalorder %s38, 0
      %p369 = por %p367, %p368
      %s370 = ssub.s32 %s32, %s39
      %p371 = scmp.eq.s32.totalorder %s370, 0
      %s373 = sadd.s32 %s372, 1
      %s374 = scalar_select %p371, %s372, %s373
      %p377 = pneg %p371
      %p378 = scmp.eq.s32.totalorder %s32, 1
      %p379 = por %p377, %p378
      %p380 = scmp.ne.s32.totalorder %s372, %s375
      %p381 = scmp.eq.s32.totalorder %s32, 0
      %p382 = por %p380, %p381
      %p383 = scmp.ne.s32.totalorder %s372, %s375
      %p384 = scmp.eq.s32.totalorder %s37, 1
      %p385 = por %p383, %p384
      %p386 = scmp.ne.s32.totalorder %s375, %s376
      %p387 = scmp.eq.s32.totalorder %s37, 0
      %p388 = por %p386, %p387
      %p389 = scmp.ne.s32.totalorder %s375, %s376
      %p390 = scmp.eq.s32.totalorder %s38, 1
      %p391 = por %p389, %p390
      %p393 = scmp.ne.s32.totalorder %s376, %s392
      %p394 = scmp.eq.s32.totalorder %s38, 0
      %p395 = por %p393, %p394
      %p396 = scmp.le.s32.totalorder 1, %s32
      %p397 = scmp.lt.s32.totalorder %s32, 3
      %p398 = pnand %p396, %p397
      %p399 = pneg %p398
      // Predicated region
      $region9: #{tpu_custom_call.1} parent=5 // pred_check
        _
      $region10: #{tpu_custom_call.1} parent=5 // pred_check_branch
        %401 = sbr.rel (%p398) target = $region12
      $region11: #{tpu_custom_call.1} parent=5 // pred_region
        %s402 = ssub.s32 %s32, 1
        // Predicated region
        $region13: #{tpu_custom_call.1} parent=11 // pred_check
          %p403 = pneg %p131
        $region14: #{tpu_custom_call.1} parent=11 // pred_check_branch
          %405 = sbr.rel (%p403) target = $region16
        $region15: #{tpu_custom_call.1} parent=11 // pred_region
          %s407 = ssub.s32 2048, 2048
          %408 = vsyncadd [#allocation7], %s407
          %s409 = sshll.u32 [#allocation6], 4
          %s410 = int_to_ptr.vmem [resolvable:$true] %s409
          %415 = dma.hbm_to_vmem [thread:$0]  %s3, 2048, %s410, [#allocation7], 128, 128, 8
        $region16: #{tpu_custom_call.1} parent=11 // pred_fallthru
          _
        // Predicated region
        $region17: #{tpu_custom_call.1} parent=11 // pred_check
          %p416 = pneg %p152
        $region18: #{tpu_custom_call.1} parent=11 // pred_check_branch
          %418 = sbr.rel (%p416) target = $region20
        $region19: #{tpu_custom_call.1} parent=11 // pred_region
          _
        $region20: #{tpu_custom_call.1} parent=11 // pred_fallthru
          _
        // Predicated region
        $region21: #{tpu_custom_call.1} parent=11 // pred_check
          %p419 = pneg %p173
        $region22: #{tpu_custom_call.1} parent=11 // pred_check_branch
          %421 = sbr.rel (%p419) target = $region24
        $region23: #{tpu_custom_call.1} parent=11 // pred_region
          %s423 = ssub.s32 2048, 2048
          %424 = vsyncadd [#allocation7], %s423
          %s425 = sshll.u32 [#allocation8], 4
          %s426 = int_to_ptr.vmem [resolvable:$true] %s425
          %431 = dma.hbm_to_vmem [thread:$0]  %s5, 2048, %s426, [#allocation7], 64, 64, 4
        $region24: #{tpu_custom_call.1} parent=11 // pred_fallthru
          _
        // Predicated region
        $region25: #{tpu_custom_call.1} parent=11 // pred_check
          %p432 = pneg %p194
        $region26: #{tpu_custom_call.1} parent=11 // pred_check_branch
          %434 = sbr.rel (%p432) target = $region28
        $region27: #{tpu_custom_call.1} parent=11 // pred_region
          _
        $region28: #{tpu_custom_call.1} parent=11 // pred_fallthru
          _
        // Predicated region
        $region29: #{tpu_custom_call.1} parent=11 // pred_check
          %p435 = pneg %p215
        $region30: #{tpu_custom_call.1} parent=11 // pred_check_branch
          %437 = sbr.rel (%p435) target = $region32
        $region31: #{tpu_custom_call.1} parent=11 // pred_region
          %s439 = ssub.s32 2048, 2048
          %440 = vsyncadd [#allocation10], %s439
          %s441 = sshll.u32 [#allocation9], 4
          %s442 = int_to_ptr.vmem [resolvable:$true] %s441
          %447 = dma.hbm_to_vmem [thread:$0]  %s7, 2048, %s442, [#allocation10], 128, 128, 8
        $region32: #{tpu_custom_call.1} parent=11 // pred_fallthru
          _
        // Predicated region
        $region33: #{tpu_custom_call.1} parent=11 // pred_check
          %p448 = pneg %p236
        $region34: #{tpu_custom_call.1} parent=11 // pred_check_branch
          %450 = sbr.rel (%p448) target = $region36
        $region35: #{tpu_custom_call.1} parent=11 // pred_region
          _
        $region36: #{tpu_custom_call.1} parent=11 // pred_fallthru
          _
        // Predicated region
        $region37: #{tpu_custom_call.1} parent=11 // pred_check
          %p451 = pneg %p257
        $region38: #{tpu_custom_call.1} parent=11 // pred_check_branch
          %453 = sbr.rel (%p451) target = $region40
        $region39: #{tpu_custom_call.1} parent=11 // pred_region
          %s455 = ssub.s32 2048, 2048
          %456 = vsyncadd [#allocation10], %s455
          %s457 = sshll.u32 [#allocation11], 4
          %s458 = int_to_ptr.vmem [resolvable:$true] %s457
          %463 = dma.hbm_to_vmem [thread:$0]  %s9, 2048, %s458, [#allocation10], 64, 64, 4
        $region40: #{tpu_custom_call.1} parent=11 // pred_fallthru
          _
        // Predicated region
        $region41: #{tpu_custom_call.1} parent=11 // pred_check
          %p464 = pneg %p278
        $region42: #{tpu_custom_call.1} parent=11 // pred_check_branch
          %466 = sbr.rel (%p464) target = $region44
        $region43: #{tpu_custom_call.1} parent=11 // pred_region
          _
        $region44: #{tpu_custom_call.1} parent=11 // pred_fallthru
          _
        // Predicated region
        $region45: #{tpu_custom_call.1} parent=11 // pred_check
          %p467 = pneg %p299
        $region46: #{tpu_custom_call.1} parent=11 // pred_check_branch
          %469 = sbr.rel (%p467) target = $region48
        $region47: #{tpu_custom_call.1} parent=11 // pred_region
          %s471 = ssub.s32 2048, 2048
          %472 = vsyncadd [#allocation13], %s471
          %s473 = sshll.u32 [#allocation12], 4
          %s474 = int_to_ptr.vmem [resolvable:$true] %s473
          %479 = dma.hbm_to_vmem [thread:$0]  %s11, 2048, %s474, [#allocation13], 128, 128, 8
        $region48: #{tpu_custom_call.1} parent=11 // pred_fallthru
          _
        // Predicated region
        $region49: #{tpu_custom_call.1} parent=11 // pred_check
          %p480 = pneg %p320
        $region50: #{tpu_custom_call.1} parent=11 // pred_check_branch
          %482 = sbr.rel (%p480) target = $region52
        $region51: #{tpu_custom_call.1} parent=11 // pred_region
          _
        $region52: #{tpu_custom_call.1} parent=11 // pred_fallthru
          _
        // Predicated region
        $region53: #{tpu_custom_call.1} parent=11 // pred_check
          %p483 = pneg %p341
        $region54: #{tpu_custom_call.1} parent=11 // pred_check_branch
          %485 = sbr.rel (%p483) target = $region56
        $region55: #{tpu_custom_call.1} parent=11 // pred_region
          _
        $region56: #{tpu_custom_call.1} parent=11 // pred_fallthru
          _
        // Predicated region
        $region57: #{tpu_custom_call.1} parent=11 // pred_check
          %p486 = pneg %p362
        $region58: #{tpu_custom_call.1} parent=11 // pred_check_branch
          %488 = sbr.rel (%p486) target = $region60
        $region59: #{tpu_custom_call.1} parent=11 // pred_region
          _
        $region60: #{tpu_custom_call.1} parent=11 // pred_fallthru
          _
      $region12: #{tpu_custom_call.1} parent=5 // pred_fallthru
        _
      %p489 = scmp.lt.s32.totalorder %s32, 2
      // Predicated region
      $region61: #{tpu_custom_call.1} parent=5 // pred_check
        %p490 = pneg %p489
      $region62: #{tpu_custom_call.1} parent=5 // pred_check_branch
        %492 = sbr.rel (%p490) target = $region64
      $region63: #{tpu_custom_call.1} parent=5 // pred_region
        // Predicated region
        $region65: #{tpu_custom_call.1} parent=63 // pred_check
          %p493 = pneg %p52
        $region66: #{tpu_custom_call.1} parent=63 // pred_check_branch
          %495 = sbr.rel (%p493) target = $region68
        $region67: #{tpu_custom_call.1} parent=63 // pred_region
          %s496 = sand.u32 %s42, 1
          %s497 = scalar_lea.sflag [#allocation4], %s496
          %s498 = sand.u32 %s42, 1
          %s499 = smul.addr %s498, 4
          %s500 = scalar_lea.vmem [#allocation3], %s499
          %s502 = ssub.s32 64, 64
          %503 = vsyncadd %s497, %s502
          %s504 = smul.addr %s32, 64
          %s505 = scalar_lea.hbm %s0, %s504
          %s507 = sshll.u32 %s500, 4
          %s508 = int_to_ptr.vmem [resolvable:$true] %s507
          %510 = dma.hbm_to_vmem [thread:$0]  %s505, 64, %s508, %s497
        $region68: #{tpu_custom_call.1} parent=63 // pred_fallthru
          _
        // Predicated region
        $region69: #{tpu_custom_call.1} parent=63 // pred_check
          %p511 = pneg %p78
        $region70: #{tpu_custom_call.1} parent=63 // pred_check_branch
          %513 = sbr.rel (%p511) target = $region72
        $region71: #{tpu_custom_call.1} parent=63 // pred_region
          %p514 = scmp.lt.s32.totalorder %s32, 1
          %s515 = scalar_select %p514, %s32, 1
          %s516 = scalar_lea.vmem %s1, %s515
        $region72: #{tpu_custom_call.1} parent=63 // pred_fallthru
          _
        // Predicated region
        $region73: #{tpu_custom_call.1} parent=63 // pred_check
          %p517 = pneg %p104
        $region74: #{tpu_custom_call.1} parent=63 // pred_check_branch
          %519 = sbr.rel (%p517) target = $region76
        $region75: #{tpu_custom_call.1} parent=63 // pred_region
          %p520 = scmp.lt.s32.totalorder %s32, 1
          %s521 = scalar_select %p520, %s32, 1
          %s522 = scalar_lea.vmem %s2, %s521
        $region76: #{tpu_custom_call.1} parent=63 // pred_fallthru
          _
      $region64: #{tpu_custom_call.1} parent=5 // pred_fallthru
        _
      %p523 = scmp.le.s32.totalorder 1, %s32
      %p524 = scmp.lt.s32.totalorder %s32, 3
      %p525 = pnand %p523, %p524
      %p526 = pneg %p525
      // Predicated region
      $region77: #{tpu_custom_call.1} parent=5 // pred_check
        _
      $region78: #{tpu_custom_call.1} parent=5 // pred_check_branch
        %528 = sbr.rel (%p525) target = $region80
      $region79: #{tpu_custom_call.1} parent=5 // pred_region
        %s529 = ssub.s32 %s32, 1
        %s530 = sand.u32 %s45, 1
        %s531 = scalar_lea.sflag [#allocation4], %s530
        %s532 = sand.u32 %s45, 1
        %s533 = smul.addr %s532, 4
        %s534 = scalar_lea.vmem [#allocation3], %s533
        // Predicated region
        $region81: #{tpu_custom_call.1} parent=79 // pred_check
          %p535 = pneg %p58
        $region82: #{tpu_custom_call.1} parent=79 // pred_check_branch
          %537 = sbr.rel (%p535) target = $region84
        $region83: #{tpu_custom_call.1} parent=79 // pred_region
          %538 = dma.done %s531, 64
        $region84: #{tpu_custom_call.1} parent=79 // pred_fallthru
          _
        // Predicated region
        $region85: #{tpu_custom_call.1} parent=79 // pred_check
          %p539 = pneg %p131
        $region86: #{tpu_custom_call.1} parent=79 // pred_check_branch
          %541 = sbr.rel (%p539) target = $region88
        $region87: #{tpu_custom_call.1} parent=79 // pred_region
          %542 = dma.done [#allocation7], 2048
        $region88: #{tpu_custom_call.1} parent=79 // pred_fallthru
          _
        // Predicated region
        $region89: #{tpu_custom_call.1} parent=79 // pred_check
          %p543 = pneg %p173
        $region90: #{tpu_custom_call.1} parent=79 // pred_check_branch
          %545 = sbr.rel (%p543) target = $region92
        $region91: #{tpu_custom_call.1} parent=79 // pred_region
          %546 = dma.done [#allocation7], 2048
        $region92: #{tpu_custom_call.1} parent=79 // pred_fallthru
          _
        // Predicated region
        $region93: #{tpu_custom_call.1} parent=79 // pred_check
          %p547 = pneg %p215
        $region94: #{tpu_custom_call.1} parent=79 // pred_check_branch
          %549 = sbr.rel (%p547) target = $region96
        $region95: #{tpu_custom_call.1} parent=79 // pred_region
          %550 = dma.done [#allocation10], 2048
        $region96: #{tpu_custom_call.1} parent=79 // pred_fallthru
          _
        // Predicated region
        $region97: #{tpu_custom_call.1} parent=79 // pred_check
          %p551 = pneg %p257
        $region98: #{tpu_custom_call.1} parent=79 // pred_check_branch
          %553 = sbr.rel (%p551) target = $region100
        $region99: #{tpu_custom_call.1} parent=79 // pred_region
          %554 = dma.done [#allocation10], 2048
        $region100: #{tpu_custom_call.1} parent=79 // pred_fallthru
          _
        // Predicated region
        $region101: #{tpu_custom_call.1} parent=79 // pred_check
          %p555 = pneg %p299
        $region102: #{tpu_custom_call.1} parent=79 // pred_check_branch
          %557 = sbr.rel (%p555) target = $region104
        $region103: #{tpu_custom_call.1} parent=79 // pred_region
          %558 = dma.done [#allocation13], 2048
        $region104: #{tpu_custom_call.1} parent=79 // pred_fallthru
          _
        %s559 = sand.u32 %s45, 1
        %s560 = scalar_lea.sflag [#allocation4], %s559
        %s561 = sand.u32 %s45, 1
        %s562 = smul.addr %s561, 4
        %s563 = scalar_lea.vmem [#allocation3], %s562
        %p564 = pneg %p58
        %p565 = pneg %p55
        %p566 = scmp.lt.s32.totalorder %s37, 1
        %s567 = scalar_select %p566, %s37, 1
        %s568 = scalar_lea.vmem %s1, %s567
        %p569 = pneg %p84
        %p570 = pneg %p81
        %p571 = scmp.lt.s32.totalorder %s37, 1
        %s572 = scalar_select %p571, %s37, 1
        %s573 = scalar_lea.vmem %s2, %s572
        %p574 = pneg %p110
        %p575 = pneg %p107
        %p576 = pneg %p131
        %p577 = pneg %p128
        %p578 = pneg %p152
        %p579 = pneg %p149
        %p580 = pneg %p173
        %p581 = pneg %p170
        %p582 = pneg %p194
        %p583 = pneg %p191
        %p584 = pneg %p215
        %p585 = pneg %p212
        %p586 = pneg %p236
        %p587 = pneg %p233
        %p588 = pneg %p257
        %p589 = pneg %p254
        %p590 = pneg %p278
        %p591 = pneg %p275
        %p592 = pneg %p299
        %p593 = pneg %p296
        %p594 = pneg %p320
        %p595 = pneg %p317
        %p596 = pneg %p341
        %p597 = pneg %p338
        %p598 = pneg %p362
        %p599 = pneg %p359
        %p600 = pneg %p388
        %p601 = pneg %p385
        %s602 = sand.u32 %s375, 1
        %s603 = scalar_lea.sflag [#allocation5], %s602
        %s604 = sand.u32 %s375, 1
        %s605 = scalar_lea.vmem [#allocation14], %s604
        %p606 = scmp.lt.s32.totalorder %s37, 1
        %s607 = scalar_select %p606, %s37, 1
        %s608 = scalar_lea.vmem %s1, %s607
        %p609 = scmp.lt.s32.totalorder %s37, 1
        %s610 = scalar_select %p609, %s37, 1
        %s611 = scalar_lea.vmem %s2, %s610
        %v613 = vld [vmem:[%s534] sm:$0xf]
        %v614 = vld [vmem:[#allocation6] sm:$0xff]
        %v615 = vld [vmem:[#allocation6 + $0x8] sm:$0xff]
        %v616 = vld [vmem:[#allocation6 + $0x10] sm:$0xff]
        %v617 = vld [vmem:[#allocation6 + $0x18] sm:$0xff]
        %v618 = vld [vmem:[#allocation6 + $0x20] sm:$0xff]
        %v619 = vld [vmem:[#allocation6 + $0x28] sm:$0xff]
        %v620 = vld [vmem:[#allocation6 + $0x30] sm:$0xff]
        %v621 = vld [vmem:[#allocation6 + $0x38] sm:$0xff]
        %v622 = vld [vmem:[#allocation6 + $0x40] sm:$0xff]
        %v623 = vld [vmem:[#allocation6 + $0x48] sm:$0xff]
        %v624 = vld [vmem:[#allocation6 + $0x50] sm:$0xff]
        %v625 = vld [vmem:[#allocation6 + $0x58] sm:$0xff]
        %v626 = vld [vmem:[#allocation6 + $0x60] sm:$0xff]
        %v627 = vld [vmem:[#allocation6 + $0x68] sm:$0xff]
        %v628 = vld [vmem:[#allocation6 + $0x70] sm:$0xff]
        %v629 = vld [vmem:[#allocation6 + $0x78] sm:$0xff]
        %v630 = vld [vmem:[%s4] sm:$0x3]
        %v632 = vlaneseq
        %v633 = vshrl.u32 %v632, 7
        %v634 = vsub.s32 0, %v633
        %v635 = vrot.slane %v630, %v634
        %v636 = vlaneseq
        %v637 = vshrl.u32 %v636, 7
        %v638 = vsub.s32 1, %v637
        %v639 = vrot.slane %v630, %v638
        %v658 = vunpack.c.l.b16 %v614
        %v659 = vunpack.c.h.b16 %v614
        %v660 = vunpack.c.l.b16 %v615
        %v661 = vunpack.c.h.b16 %v615
        %v662 = vunpack.c.l.b16 %v616
        %v663 = vunpack.c.h.b16 %v616
        %v664 = vunpack.c.l.b16 %v617
        %v665 = vunpack.c.h.b16 %v617
        %v666 = vunpack.c.l.b16 %v618
        %v667 = vunpack.c.h.b16 %v618
        %v668 = vunpack.c.l.b16 %v619
        %v669 = vunpack.c.h.b16 %v619
        %v670 = vunpack.c.l.b16 %v620
        %v671 = vunpack.c.h.b16 %v620
        %v672 = vunpack.c.l.b16 %v621
        %v673 = vunpack.c.h.b16 %v621
        %v674 = vunpack.c.l.b16 %v622
        %v675 = vunpack.c.h.b16 %v622
        %v676 = vunpack.c.l.b16 %v623
        %v677 = vunpack.c.h.b16 %v623
        %v678 = vunpack.c.l.b16 %v624
        %v679 = vunpack.c.h.b16 %v624
        %v680 = vunpack.c.l.b16 %v625
        %v681 = vunpack.c.h.b16 %v625
        %v682 = vunpack.c.l.b16 %v626
        %v683 = vunpack.c.h.b16 %v626
        %v684 = vunpack.c.l.b16 %v627
        %v685 = vunpack.c.h.b16 %v627
        %v686 = vunpack.c.l.b16 %v628
        %v687 = vunpack.c.h.b16 %v628
        %v688 = vunpack.c.l.b16 %v629
        %v689 = vunpack.c.h.b16 %v629
        %v690 = vpack.c.b16 %v660, %v658
        %v691 = vpack.c.b16 %v661, %v659
        %v692 = vpack.c.b16 %v664, %v662
        %v693 = vpack.c.b16 %v665, %v663
        %v694 = vpack.c.b16 %v668, %v666
        %v695 = vpack.c.b16 %v669, %v667
        %v696 = vpack.c.b16 %v672, %v670
        %v697 = vpack.c.b16 %v673, %v671
        %v698 = vpack.c.b16 %v676, %v674
        %v699 = vpack.c.b16 %v677, %v675
        %v700 = vpack.c.b16 %v680, %v678
        %v701 = vpack.c.b16 %v681, %v679
        %v702 = vpack.c.b16 %v684, %v682
        %v703 = vpack.c.b16 %v685, %v683
        %v704 = vpack.c.b16 %v688, %v686
        %v705 = vpack.c.b16 %v689, %v687
        %722 = vmatprep.subr.bf16.mxu0 %v691
        %723 = vmatpush1.bf16.msra.mxu0 %v690
        %724 = vmatprep.subr.bf16.mxu0 %v693
        %725 = vmatpush1.bf16.msra.mxu0 %v692
        %726 = vmatprep.subr.bf16.mxu0 %v695
        %727 = vmatpush1.bf16.msra.mxu0 %v694
        %728 = vmatprep.subr.bf16.mxu0 %v697
        %729 = vmatpush1.bf16.msra.mxu0 %v696
        %730 = vmatprep.subr.bf16.mxu0 %v699
        %731 = vmatpush1.bf16.msra.mxu0 %v698
        %732 = vmatprep.subr.bf16.mxu0 %v701
        %733 = vmatpush1.bf16.msra.mxu0 %v700
        %734 = vmatprep.subr.bf16.mxu0 %v703
        %735 = vmatpush1.bf16.msra.mxu0 %v702
        %736 = vmatprep.subr.bf16.mxu0 %v705
        %737 = vmatpush1.bf16.msra.mxu0 %v704
        %738 = vmatprep.subr.bf16.mxu0 0
        %739 = vmatpush1.bf16.msra.mxu0 0
        %740 = vmatprep.subr.bf16.mxu0 0
        %741 = vmatpush1.bf16.msra.mxu0 0
        %742 = vmatprep.subr.bf16.mxu0 0
        %743 = vmatpush1.bf16.msra.mxu0 0
        %744 = vmatprep.subr.bf16.mxu0 0
        %745 = vmatpush1.bf16.msra.mxu0 0
        %746 = vmatprep.subr.bf16.mxu0 0
        %747 = vmatpush1.bf16.msra.mxu0 0
        %748 = vmatprep.subr.bf16.mxu0 0
        %749 = vmatpush1.bf16.msra.mxu0 0
        %750 = vmatprep.subr.bf16.mxu0 0
        %751 = vmatpush1.bf16.msra.mxu0 0
        %752 = vmatprep.subr.bf16.mxu0 0
        %753 = vmatpush1.bf16.msra.mxu0 0
        %754 = vmatprep.mubr.bf16.mxu0 0
        %755 = vmatmul.mubr.bf16.gmra.mrb[0].mxu0 %v613
        %v756 = vpop.f32.mrb[0].mxu0
        %v757 = vadd.f32 %v635, %v756
        %v758 = vpop.f32.mrb[0].mxu0
        %v759 = vadd.f32 %v639, %v758
        %v760 = vpop.f32.mrb[0].mxu0
        %v761 = vpop.f32.mrb[0].mxu0
        %762 = vdwg.mxu0
        %v763 = vmax.f32 %v757, 0.0
        %v764 = vmax.f32 %v759, 0.0
        %v765 = vpack.c.bf16 %v763, %v763
        %v766 = vpack.c.bf16 %v764, %v764
        %v767 = vld [vmem:[#allocation8] sm:$0xf]
        %v768 = vld [vmem:[#allocation8 + $0x4] sm:$0xf]
        %v769 = vld [vmem:[#allocation8 + $0x8] sm:$0xf]
        %v770 = vld [vmem:[#allocation8 + $0xc] sm:$0xf]
        %v771 = vld [vmem:[#allocation8 + $0x10] sm:$0xf]
        %v772 = vld [vmem:[#allocation8 + $0x14] sm:$0xf]
        %v773 = vld [vmem:[#allocation8 + $0x18] sm:$0xf]
        %v774 = vld [vmem:[#allocation8 + $0x1c] sm:$0xf]
        %v775 = vld [vmem:[#allocation8 + $0x20] sm:$0xf]
        %v776 = vld [vmem:[#allocation8 + $0x24] sm:$0xf]
        %v777 = vld [vmem:[#allocation8 + $0x28] sm:$0xf]
        %v778 = vld [vmem:[#allocation8 + $0x2c] sm:$0xf]
        %v779 = vld [vmem:[#allocation8 + $0x30] sm:$0xf]
        %v780 = vld [vmem:[#allocation8 + $0x34] sm:$0xf]
        %v781 = vld [vmem:[#allocation8 + $0x38] sm:$0xf]
        %v782 = vld [vmem:[#allocation8 + $0x3c] sm:$0xf]
        %v783 = vld [vmem:[#allocation8 + $0x40] sm:$0xf]
        %v784 = vld [vmem:[#allocation8 + $0x44] sm:$0xf]
        %v785 = vld [vmem:[#allocation8 + $0x48] sm:$0xf]
        %v786 = vld [vmem:[#allocation8 + $0x4c] sm:$0xf]
        %v787 = vld [vmem:[#allocation8 + $0x50] sm:$0xf]
        %v788 = vld [vmem:[#allocation8 + $0x54] sm:$0xf]
        %v789 = vld [vmem:[#allocation8 + $0x58] sm:$0xf]
        %v790 = vld [vmem:[#allocation8 + $0x5c] sm:$0xf]
        %v791 = vld [vmem:[#allocation8 + $0x60] sm:$0xf]
        %v792 = vld [vmem:[#allocation8 + $0x64] sm:$0xf]
        %v793 = vld [vmem:[#allocation8 + $0x68] sm:$0xf]
        %v794 = vld [vmem:[#allocation8 + $0x6c] sm:$0xf]
        %v795 = vld [vmem:[#allocation8 + $0x70] sm:$0xf]
        %v796 = vld [vmem:[#allocation8 + $0x74] sm:$0xf]
        %v797 = vld [vmem:[#allocation8 + $0x78] sm:$0xf]
        %v798 = vld [vmem:[#allocation8 + $0x7c] sm:$0xf]
        %v799 = vld [vmem:[%s6] sm:$0x1]
        %v801 = vlaneseq
        %v802 = vshrl.u32 %v801, 7
        %v803 = vsub.s32 0, %v802
        %v804 = vrot.slane %v799, %v803
        %v838 = vunpack.c.l.b16 %v767
        %v839 = vunpack.c.l.b16 %v768
        %v840 = vunpack.c.l.b16 %v769
        %v841 = vunpack.c.l.b16 %v770
        %v842 = vunpack.c.l.b16 %v771
        %v843 = vunpack.c.l.b16 %v772
        %v844 = vunpack.c.l.b16 %v773
        %v845 = vunpack.c.l.b16 %v774
        %v846 = vunpack.c.l.b16 %v775
        %v847 = vunpack.c.l.b16 %v776
        %v848 = vunpack.c.l.b16 %v777
        %v849 = vunpack.c.l.b16 %v778
        %v850 = vunpack.c.l.b16 %v779
        %v851 = vunpack.c.l.b16 %v780
        %v852 = vunpack.c.l.b16 %v781
        %v853 = vunpack.c.l.b16 %v782
        %v854 = vunpack.c.l.b16 %v783
        %v855 = vunpack.c.l.b16 %v784
        %v856 = vunpack.c.l.b16 %v785
        %v857 = vunpack.c.l.b16 %v786
        %v858 = vunpack.c.l.b16 %v787
        %v859 = vunpack.c.l.b16 %v788
        %v860 = vunpack.c.l.b16 %v789
        %v861 = vunpack.c.l.b16 %v790
        %v862 = vunpack.c.l.b16 %v791
        %v863 = vunpack.c.l.b16 %v792
        %v864 = vunpack.c.l.b16 %v793
        %v865 = vunpack.c.l.b16 %v794
        %v866 = vunpack.c.l.b16 %v795
        %v867 = vunpack.c.l.b16 %v796
        %v868 = vunpack.c.l.b16 %v797
        %v869 = vunpack.c.l.b16 %v798
        %v870 = vpack.c.b16 %v839, %v838
        %v871 = vpack.c.b16 %v841, %v840
        %v872 = vpack.c.b16 %v843, %v842
        %v873 = vpack.c.b16 %v845, %v844
        %v874 = vpack.c.b16 %v847, %v846
        %v875 = vpack.c.b16 %v849, %v848
        %v876 = vpack.c.b16 %v851, %v850
        %v877 = vpack.c.b16 %v853, %v852
        %v878 = vpack.c.b16 %v855, %v854
        %v879 = vpack.c.b16 %v857, %v856
        %v880 = vpack.c.b16 %v859, %v858
        %v881 = vpack.c.b16 %v861, %v860
        %v882 = vpack.c.b16 %v863, %v862
        %v883 = vpack.c.b16 %v865, %v864
        %v884 = vpack.c.b16 %v867, %v866
        %v885 = vpack.c.b16 %v869, %v868
        %902 = vmatprep.subr.bf16.mxu0 0
        %903 = vmatpush1.bf16.msra.mxu0 %v870
        %904 = vmatprep.subr.bf16.mxu0 0
        %905 = vmatpush1.bf16.msra.mxu0 %v871
        %906 = vmatprep.subr.bf16.mxu0 0
        %907 = vmatpush1.bf16.msra.mxu0 %v872
        %908 = vmatprep.subr.bf16.mxu0 0
        %909 = vmatpush1.bf16.msra.mxu0 %v873
        %910 = vmatprep.subr.bf16.mxu0 0
        %911 = vmatpush1.bf16.msra.mxu0 %v874
        %912 = vmatprep.subr.bf16.mxu0 0
        %913 = vmatpush1.bf16.msra.mxu0 %v875
        %914 = vmatprep.subr.bf16.mxu0 0
        %915 = vmatpush1.bf16.msra.mxu0 %v876
        %916 = vmatprep.subr.bf16.mxu0 0
        %917 = vmatpush1.bf16.msra.mxu0 %v877
        %918 = vmatprep.subr.bf16.mxu0 0
        %919 = vmatpush1.bf16.msra.mxu0 %v878
        %920 = vmatprep.subr.bf16.mxu0 0
        %921 = vmatpush1.bf16.msra.mxu0 %v879
        %922 = vmatprep.subr.bf16.mxu0 0
        %923 = vmatpush1.bf16.msra.mxu0 %v880
        %924 = vmatprep.subr.bf16.mxu0 0
        %925 = vmatpush1.bf16.msra.mxu0 %v881
        %926 = vmatprep.subr.bf16.mxu0 0
        %927 = vmatpush1.bf16.msra.mxu0 %v882
        %928 = vmatprep.subr.bf16.mxu0 0
        %929 = vmatpush1.bf16.msra.mxu0 %v883
        %930 = vmatprep.subr.bf16.mxu0 0
        %931 = vmatpush1.bf16.msra.mxu0 %v884
        %932 = vmatprep.subr.bf16.mxu0 0
        %933 = vmatpush1.bf16.msra.mxu0 %v885
        %934 = vmatprep.mubr.bf16.mxu0 %v766
        %935 = vmatmul.mubr.bf16.gmra.mrb[0].mxu0 %v765
        %v936 = vpop.f32.mrb[0].mxu0
        %v937 = vadd.f32 %v804, %v936
        %v938 = vpop.f32.mrb[0].mxu0
        %v939 = vpop.f32.mrb[0].mxu0
        %v940 = vpop.f32.mrb[0].mxu0
        %941 = vdwg.mxu0
        %v942 = vld [vmem:[%s608] sm:$0x1]
        %v943 = vld [vmem:[#allocation9] sm:$0xff]
        %v944 = vld [vmem:[#allocation9 + $0x8] sm:$0xff]
        %v945 = vld [vmem:[#allocation9 + $0x10] sm:$0xff]
        %v946 = vld [vmem:[#allocation9 + $0x18] sm:$0xff]
        %v947 = vld [vmem:[#allocation9 + $0x20] sm:$0xff]
        %v948 = vld [vmem:[#allocation9 + $0x28] sm:$0xff]
        %v949 = vld [vmem:[#allocation9 + $0x30] sm:$0xff]
        %v950 = vld [vmem:[#allocation9 + $0x38] sm:$0xff]
        %v951 = vld [vmem:[#allocation9 + $0x40] sm:$0xff]
        %v952 = vld [vmem:[#allocation9 + $0x48] sm:$0xff]
        %v953 = vld [vmem:[#allocation9 + $0x50] sm:$0xff]
        %v954 = vld [vmem:[#allocation9 + $0x58] sm:$0xff]
        %v955 = vld [vmem:[#allocation9 + $0x60] sm:$0xff]
        %v956 = vld [vmem:[#allocation9 + $0x68] sm:$0xff]
        %v957 = vld [vmem:[#allocation9 + $0x70] sm:$0xff]
        %v958 = vld [vmem:[#allocation9 + $0x78] sm:$0xff]
        %v959 = vld [vmem:[%s8] sm:$0x3]
        %v976 = vunpack.c.l.b16 %v943
        %v977 = vunpack.c.h.b16 %v943
        %v978 = vunpack.c.l.b16 %v944
        %v979 = vunpack.c.h.b16 %v944
        %v980 = vunpack.c.l.b16 %v945
        %v981 = vunpack.c.h.b16 %v945
        %v982 = vunpack.c.l.b16 %v946
        %v983 = vunpack.c.h.b16 %v946
        %v984 = vunpack.c.l.b16 %v947
        %v985 = vunpack.c.h.b16 %v947
        %v986 = vunpack.c.l.b16 %v948
        %v987 = vunpack.c.h.b16 %v948
        %v988 = vunpack.c.l.b16 %v949
        %v989 = vunpack.c.h.b16 %v949
        %v990 = vunpack.c.l.b16 %v950
        %v991 = vunpack.c.h.b16 %v950
        %v992 = vunpack.c.l.b16 %v951
        %v993 = vunpack.c.h.b16 %v951
        %v994 = vunpack.c.l.b16 %v952
        %v995 = vunpack.c.h.b16 %v952
        %v996 = vunpack.c.l.b16 %v953
        %v997 = vunpack.c.h.b16 %v953
        %v998 = vunpack.c.l.b16 %v954
        %v999 = vunpack.c.h.b16 %v954
        %v1000 = vunpack.c.l.b16 %v955
        %v1001 = vunpack.c.h.b16 %v955
        %v1002 = vunpack.c.l.b16 %v956
        %v1003 = vunpack.c.h.b16 %v956
        %v1004 = vunpack.c.l.b16 %v957
        %v1005 = vunpack.c.h.b16 %v957
        %v1006 = vunpack.c.l.b16 %v958
        %v1007 = vunpack.c.h.b16 %v958
        %v1008 = vpack.c.b16 %v978, %v976
        %v1009 = vpack.c.b16 %v979, %v977
        %v1010 = vpack.c.b16 %v982, %v980
        %v1011 = vpack.c.b16 %v983, %v981
        %v1012 = vpack.c.b16 %v986, %v984
        %v1013 = vpack.c.b16 %v987, %v985
        %v1014 = vpack.c.b16 %v990, %v988
        %v1015 = vpack.c.b16 %v991, %v989
        %v1016 = vpack.c.b16 %v994, %v992
        %v1017 = vpack.c.b16 %v995, %v993
        %v1018 = vpack.c.b16 %v998, %v996
        %v1019 = vpack.c.b16 %v999, %v997
        %v1020 = vpack.c.b16 %v1002, %v1000
        %v1021 = vpack.c.b16 %v1003, %v1001
        %v1022 = vpack.c.b16 %v1006, %v1004
        %v1023 = vpack.c.b16 %v1007, %v1005
        %v1041 = vlaneseq
        %v1042 = vshrl.u32 %v1041, 7
        %v1043 = vsub.s32 0, %v1042
        %v1044 = vrot.slane %v959, %v1043
        %v1045 = vlaneseq
        %v1046 = vshrl.u32 %v1045, 7
        %v1047 = vsub.s32 1, %v1046
        %v1048 = vrot.slane %v959, %v1047
        %1051 = vmatprep.subr.bf16.mxu0 %v1009
        %1052 = vmatpush1.bf16.msra.mxu0 %v1008
        %1053 = vmatprep.subr.bf16.mxu0 %v1011
        %1054 = vmatpush1.bf16.msra.mxu0 %v1010
        %1055 = vmatprep.subr.bf16.mxu0 %v1013
        %1056 = vmatpush1.bf16.msra.mxu0 %v1012
        %1057 = vmatprep.subr.bf16.mxu0 %v1015
        %1058 = vmatpush1.bf16.msra.mxu0 %v1014
        %1059 = vmatprep.subr.bf16.mxu0 %v1017
        %1060 = vmatpush1.bf16.msra.mxu0 %v1016
        %1061 = vmatprep.subr.bf16.mxu0 %v1019
        %1062 = vmatpush1.bf16.msra.mxu0 %v1018
        %1063 = vmatprep.subr.bf16.mxu0 %v1021
        %1064 = vmatpush1.bf16.msra.mxu0 %v1020
        %1065 = vmatprep.subr.bf16.mxu0 %v1023
        %1066 = vmatpush1.bf16.msra.mxu0 %v1022
        %1067 = vmatprep.subr.bf16.mxu0 0
        %1068 = vmatpush1.bf16.msra.mxu0 0
        %1069 = vmatprep.subr.bf16.mxu0 0
        %1070 = vmatpush1.bf16.msra.mxu0 0
        %1071 = vmatprep.subr.bf16.mxu0 0
        %1072 = vmatpush1.bf16.msra.mxu0 0
        %1073 = vmatprep.subr.bf16.mxu0 0
        %1074 = vmatpush1.bf16.msra.mxu0 0
        %1075 = vmatprep.subr.bf16.mxu0 0
        %1076 = vmatpush1.bf16.msra.mxu0 0
        %1077 = vmatprep.subr.bf16.mxu0 0
        %1078 = vmatpush1.bf16.msra.mxu0 0
        %1079 = vmatprep.subr.bf16.mxu0 0
        %1080 = vmatpush1.bf16.msra.mxu0 0
        %1081 = vmatprep.subr.bf16.mxu0 0
        %1082 = vmatpush1.bf16.msra.mxu0 0
        %1083 = vmatprep.mubr.bf16.mxu0 0
        %1084 = vmatmul.mubr.bf16.gmra.mrb[0].mxu0 %v942
        %v1085 = vpop.f32.mrb[0].mxu0
        %v1086 = vadd.f32 %v1044, %v1085
        %v1087 = vpop.f32.mrb[0].mxu0
        %v1088 = vadd.f32 %v1048, %v1087
        %v1089 = vpop.f32.mrb[0].mxu0
        %v1090 = vpop.f32.mrb[0].mxu0
        %1091 = vdwg.mxu0
        %v1092 = vmax.f32 %v1086, 0.0
        %v1093 = vmax.f32 %v1088, 0.0
        %v1094 = vpack.c.bf16 %v1092, %v1092
        %v1095 = vpack.c.bf16 %v1093, %v1093
        %v1096 = vld [vmem:[#allocation11] sm:$0xf]
        %v1097 = vld [vmem:[#allocation11 + $0x4] sm:$0xf]
        %v1098 = vld [vmem:[#allocation11 + $0x8] sm:$0xf]
        %v1099 = vld [vmem:[#allocation11 + $0xc] sm:$0xf]
        %v1100 = vld [vmem:[#allocation11 + $0x10] sm:$0xf]
        %v1101 = vld [vmem:[#allocation11 + $0x14] sm:$0xf]
        %v1102 = vld [vmem:[#allocation11 + $0x18] sm:$0xf]
        %v1103 = vld [vmem:[#allocation11 + $0x1c] sm:$0xf]
        %v1104 = vld [vmem:[#allocation11 + $0x20] sm:$0xf]
        %v1105 = vld [vmem:[#allocation11 + $0x24] sm:$0xf]
        %v1106 = vld [vmem:[#allocation11 + $0x28] sm:$0xf]
        %v1107 = vld [vmem:[#allocation11 + $0x2c] sm:$0xf]
        %v1108 = vld [vmem:[#allocation11 + $0x30] sm:$0xf]
        %v1109 = vld [vmem:[#allocation11 + $0x34] sm:$0xf]
        %v1110 = vld [vmem:[#allocation11 + $0x38] sm:$0xf]
        %v1111 = vld [vmem:[#allocation11 + $0x3c] sm:$0xf]
        %v1112 = vld [vmem:[#allocation11 + $0x40] sm:$0xf]
        %v1113 = vld [vmem:[#allocation11 + $0x44] sm:$0xf]
        %v1114 = vld [vmem:[#allocation11 + $0x48] sm:$0xf]
        %v1115 = vld [vmem:[#allocation11 + $0x4c] sm:$0xf]
        %v1116 = vld [vmem:[#allocation11 + $0x50] sm:$0xf]
        %v1117 = vld [vmem:[#allocation11 + $0x54] sm:$0xf]
        %v1118 = vld [vmem:[#allocation11 + $0x58] sm:$0xf]
        %v1119 = vld [vmem:[#allocation11 + $0x5c] sm:$0xf]
        %v1120 = vld [vmem:[#allocation11 + $0x60] sm:$0xf]
        %v1121 = vld [vmem:[#allocation11 + $0x64] sm:$0xf]
        %v1122 = vld [vmem:[#allocation11 + $0x68] sm:$0xf]
        %v1123 = vld [vmem:[#allocation11 + $0x6c] sm:$0xf]
        %v1124 = vld [vmem:[#allocation11 + $0x70] sm:$0xf]
        %v1125 = vld [vmem:[#allocation11 + $0x74] sm:$0xf]
        %v1126 = vld [vmem:[#allocation11 + $0x78] sm:$0xf]
        %v1127 = vld [vmem:[#allocation11 + $0x7c] sm:$0xf]
        %v1128 = vld [vmem:[%s10] sm:$0x1]
        %v1161 = vunpack.c.l.b16 %v1096
        %v1162 = vunpack.c.l.b16 %v1097
        %v1163 = vunpack.c.l.b16 %v1098
        %v1164 = vunpack.c.l.b16 %v1099
        %v1165 = vunpack.c.l.b16 %v1100
        %v1166 = vunpack.c.l.b16 %v1101
        %v1167 = vunpack.c.l.b16 %v1102
        %v1168 = vunpack.c.l.b16 %v1103
        %v1169 = vunpack.c.l.b16 %v1104
        %v1170 = vunpack.c.l.b16 %v1105
        %v1171 = vunpack.c.l.b16 %v1106
        %v1172 = vunpack.c.l.b16 %v1107
        %v1173 = vunpack.c.l.b16 %v1108
        %v1174 = vunpack.c.l.b16 %v1109
        %v1175 = vunpack.c.l.b16 %v1110
        %v1176 = vunpack.c.l.b16 %v1111
        %v1177 = vunpack.c.l.b16 %v1112
        %v1178 = vunpack.c.l.b16 %v1113
        %v1179 = vunpack.c.l.b16 %v1114
        %v1180 = vunpack.c.l.b16 %v1115
        %v1181 = vunpack.c.l.b16 %v1116
        %v1182 = vunpack.c.l.b16 %v1117
        %v1183 = vunpack.c.l.b16 %v1118
        %v1184 = vunpack.c.l.b16 %v1119
        %v1185 = vunpack.c.l.b16 %v1120
        %v1186 = vunpack.c.l.b16 %v1121
        %v1187 = vunpack.c.l.b16 %v1122
        %v1188 = vunpack.c.l.b16 %v1123
        %v1189 = vunpack.c.l.b16 %v1124
        %v1190 = vunpack.c.l.b16 %v1125
        %v1191 = vunpack.c.l.b16 %v1126
        %v1192 = vunpack.c.l.b16 %v1127
        %v1193 = vpack.c.b16 %v1162, %v1161
        %v1194 = vpack.c.b16 %v1164, %v1163
        %v1195 = vpack.c.b16 %v1166, %v1165
        %v1196 = vpack.c.b16 %v1168, %v1167
        %v1197 = vpack.c.b16 %v1170, %v1169
        %v1198 = vpack.c.b16 %v1172, %v1171
        %v1199 = vpack.c.b16 %v1174, %v1173
        %v1200 = vpack.c.b16 %v1176, %v1175
        %v1201 = vpack.c.b16 %v1178, %v1177
        %v1202 = vpack.c.b16 %v1180, %v1179
        %v1203 = vpack.c.b16 %v1182, %v1181
        %v1204 = vpack.c.b16 %v1184, %v1183
        %v1205 = vpack.c.b16 %v1186, %v1185
        %v1206 = vpack.c.b16 %v1188, %v1187
        %v1207 = vpack.c.b16 %v1190, %v1189
        %v1208 = vpack.c.b16 %v1192, %v1191
        %1225 = vmatprep.subr.bf16.mxu0 0
        %1226 = vmatpush1.bf16.msra.mxu0 %v1193
        %1227 = vmatprep.subr.bf16.mxu0 0
        %1228 = vmatpush1.bf16.msra.mxu0 %v1194
        %1229 = vmatprep.subr.bf16.mxu0 0
        %1230 = vmatpush1.bf16.msra.mxu0 %v1195
        %1231 = vmatprep.subr.bf16.mxu0 0
        %1232 = vmatpush1.bf16.msra.mxu0 %v1196
        %1233 = vmatprep.subr.bf16.mxu0 0
        %1234 = vmatpush1.bf16.msra.mxu0 %v1197
        %1235 = vmatprep.subr.bf16.mxu0 0
        %1236 = vmatpush1.bf16.msra.mxu0 %v1198
        %1237 = vmatprep.subr.bf16.mxu0 0
        %1238 = vmatpush1.bf16.msra.mxu0 %v1199
        %1239 = vmatprep.subr.bf16.mxu0 0
        %1240 = vmatpush1.bf16.msra.mxu0 %v1200
        %1241 = vmatprep.subr.bf16.mxu0 0
        %1242 = vmatpush1.bf16.msra.mxu0 %v1201
        %1243 = vmatprep.subr.bf16.mxu0 0
        %1244 = vmatpush1.bf16.msra.mxu0 %v1202
        %1245 = vmatprep.subr.bf16.mxu0 0
        %1246 = vmatpush1.bf16.msra.mxu0 %v1203
        %1247 = vmatprep.subr.bf16.mxu0 0
        %1248 = vmatpush1.bf16.msra.mxu0 %v1204
        %1249 = vmatprep.subr.bf16.mxu0 0
        %1250 = vmatpush1.bf16.msra.mxu0 %v1205
        %1251 = vmatprep.subr.bf16.mxu0 0
        %1252 = vmatpush1.bf16.msra.mxu0 %v1206
        %1253 = vmatprep.subr.bf16.mxu0 0
        %1254 = vmatpush1.bf16.msra.mxu0 %v1207
        %1255 = vmatprep.subr.bf16.mxu0 0
        %1256 = vmatpush1.bf16.msra.mxu0 %v1208
        %1257 = vmatprep.mubr.bf16.mxu0 %v1095
        %1258 = vmatmul.mubr.bf16.gmra.mrb[0].mxu0 %v1094
        %v1259 = vpop.f32.mrb[0].mxu0
        %v1260 = vadd.f32 %v1128, %v1259
        %v1261 = vpop.f32.mrb[0].mxu0
        %v1262 = vpop.f32.mrb[0].mxu0
        %v1263 = vpop.f32.mrb[0].mxu0
        %1264 = vdwg.mxu0
        %v1265 = vlaneseq
        %v1266 = vshrl.u32 %v1265, 7
        %v1267 = vsub.s32 0, %v1266
        %v1268 = vrot.slane %v1260, %v1267
        %v1269 = vmul.f32 %v937, %v1268
        %v1270 = vpack.c.bf16 %v1269, %v1269
        %v1271 = vld [vmem:[#allocation12] sm:$0xff]
        %v1272 = vld [vmem:[#allocation12 + $0x8] sm:$0xff]
        %v1273 = vld [vmem:[#allocation12 + $0x10] sm:$0xff]
        %v1274 = vld [vmem:[#allocation12 + $0x18] sm:$0xff]
        %v1275 = vld [vmem:[#allocation12 + $0x20] sm:$0xff]
        %v1276 = vld [vmem:[#allocation12 + $0x28] sm:$0xff]
        %v1277 = vld [vmem:[#allocation12 + $0x30] sm:$0xff]
        %v1278 = vld [vmem:[#allocation12 + $0x38] sm:$0xff]
        %v1279 = vld [vmem:[#allocation12 + $0x40] sm:$0xff]
        %v1280 = vld [vmem:[#allocation12 + $0x48] sm:$0xff]
        %v1281 = vld [vmem:[#allocation12 + $0x50] sm:$0xff]
        %v1282 = vld [vmem:[#allocation12 + $0x58] sm:$0xff]
        %v1283 = vld [vmem:[#allocation12 + $0x60] sm:$0xff]
        %v1284 = vld [vmem:[#allocation12 + $0x68] sm:$0xff]
        %v1285 = vld [vmem:[#allocation12 + $0x70] sm:$0xff]
        %v1286 = vld [vmem:[#allocation12 + $0x78] sm:$0xff]
        %v1287 = vld [vmem:[%s12] sm:$0x3]
        %v1289 = vlaneseq
        %v1290 = vshrl.u32 %v1289, 7
        %v1291 = vsub.s32 0, %v1290
        %v1292 = vrot.slane %v1287, %v1291
        %v1293 = vlaneseq
        %v1294 = vshrl.u32 %v1293, 7
        %v1295 = vsub.s32 1, %v1294
        %v1296 = vrot.slane %v1287, %v1295
        %v1315 = vunpack.c.l.b16 %v1271
        %v1316 = vunpack.c.h.b16 %v1271
        %v1317 = vunpack.c.l.b16 %v1272
        %v1318 = vunpack.c.h.b16 %v1272
        %v1319 = vunpack.c.l.b16 %v1273
        %v1320 = vunpack.c.h.b16 %v1273
        %v1321 = vunpack.c.l.b16 %v1274
        %v1322 = vunpack.c.h.b16 %v1274
        %v1323 = vunpack.c.l.b16 %v1275
        %v1324 = vunpack.c.h.b16 %v1275
        %v1325 = vunpack.c.l.b16 %v1276
        %v1326 = vunpack.c.h.b16 %v1276
        %v1327 = vunpack.c.l.b16 %v1277
        %v1328 = vunpack.c.h.b16 %v1277
        %v1329 = vunpack.c.l.b16 %v1278
        %v1330 = vunpack.c.h.b16 %v1278
        %v1331 = vunpack.c.l.b16 %v1279
        %v1332 = vunpack.c.h.b16 %v1279
        %v1333 = vunpack.c.l.b16 %v1280
        %v1334 = vunpack.c.h.b16 %v1280
        %v1335 = vunpack.c.l.b16 %v1281
        %v1336 = vunpack.c.h.b16 %v1281
        %v1337 = vunpack.c.l.b16 %v1282
        %v1338 = vunpack.c.h.b16 %v1282
        %v1339 = vunpack.c.l.b16 %v1283
        %v1340 = vunpack.c.h.b16 %v1283
        %v1341 = vunpack.c.l.b16 %v1284
        %v1342 = vunpack.c.h.b16 %v1284
        %v1343 = vunpack.c.l.b16 %v1285
        %v1344 = vunpack.c.h.b16 %v1285
        %v1345 = vunpack.c.l.b16 %v1286
        %v1346 = vunpack.c.h.b16 %v1286
        %v1347 = vpack.c.b16 %v1317, %v1315
        %v1348 = vpack.c.b16 %v1318, %v1316
        %v1349 = vpack.c.b16 %v1321, %v1319
        %v1350 = vpack.c.b16 %v1322, %v1320
        %v1351 = vpack.c.b16 %v1325, %v1323
        %v1352 = vpack.c.b16 %v1326, %v1324
        %v1353 = vpack.c.b16 %v1329, %v1327
        %v1354 = vpack.c.b16 %v1330, %v1328
        %v1355 = vpack.c.b16 %v1333, %v1331
        %v1356 = vpack.c.b16 %v1334, %v1332
        %v1357 = vpack.c.b16 %v1337, %v1335
        %v1358 = vpack.c.b16 %v1338, %v1336
        %v1359 = vpack.c.b16 %v1341, %v1339
        %v1360 = vpack.c.b16 %v1342, %v1340
        %v1361 = vpack.c.b16 %v1345, %v1343
        %v1362 = vpack.c.b16 %v1346, %v1344
        %1379 = vmatprep.subr.bf16.mxu0 %v1348
        %1380 = vmatpush1.bf16.msra.mxu0 %v1347
        %1381 = vmatprep.subr.bf16.mxu0 %v1350
        %1382 = vmatpush1.bf16.msra.mxu0 %v1349
        %1383 = vmatprep.subr.bf16.mxu0 %v1352
        %1384 = vmatpush1.bf16.msra.mxu0 %v1351
        %1385 = vmatprep.subr.bf16.mxu0 %v1354
        %1386 = vmatpush1.bf16.msra.mxu0 %v1353
        %1387 = vmatprep.subr.bf16.mxu0 %v1356
        %1388 = vmatpush1.bf16.msra.mxu0 %v1355
        %1389 = vmatprep.subr.bf16.mxu0 %v1358
        %1390 = vmatpush1.bf16.msra.mxu0 %v1357
        %1391 = vmatprep.subr.bf16.mxu0 %v1360
        %1392 = vmatpush1.bf16.msra.mxu0 %v1359
        %1393 = vmatprep.subr.bf16.mxu0 %v1362
        %1394 = vmatpush1.bf16.msra.mxu0 %v1361
        %1395 = vmatprep.subr.bf16.mxu0 0
        %1396 = vmatpush1.bf16.msra.mxu0 0
        %1397 = vmatprep.subr.bf16.mxu0 0
        %1398 = vmatpush1.bf16.msra.mxu0 0
        %1399 = vmatprep.subr.bf16.mxu0 0
        %1400 = vmatpush1.bf16.msra.mxu0 0
        %1401 = vmatprep.subr.bf16.mxu0 0
        %1402 = vmatpush1.bf16.msra.mxu0 0
        %1403 = vmatprep.subr.bf16.mxu0 0
        %1404 = vmatpush1.bf16.msra.mxu0 0
        %1405 = vmatprep.subr.bf16.mxu0 0
        %1406 = vmatpush1.bf16.msra.mxu0 0
        %1407 = vmatprep.subr.bf16.mxu0 0
        %1408 = vmatpush1.bf16.msra.mxu0 0
        %1409 = vmatprep.subr.bf16.mxu0 0
        %1410 = vmatpush1.bf16.msra.mxu0 0
        %1411 = vmatprep.mubr.bf16.mxu0 0
        %1412 = vmatmul.mubr.bf16.gmra.mrb[0].mxu0 %v1270
        %v1413 = vpop.f32.mrb[0].mxu0
        %v1414 = vadd.f32 %v1292, %v1413
        %v1415 = vpop.f32.mrb[0].mxu0
        %v1416 = vadd.f32 %v1296, %v1415
        %v1417 = vpop.f32.mrb[0].mxu0
        %v1418 = vpop.f32.mrb[0].mxu0
        %1419 = vdwg.mxu0
        %v1420 = vmax.f32 %v1414, 0.0
        %v1421 = vmax.f32 %v1416, 0.0
        %v1422 = vld [vmem:[%s13] sm:$0x3]
        %v1423 = vunpack.c.l.bf16 %v1422
        %v1425 = vlaneseq
        %v1426 = vshrl.u32 %v1425, 7
        %v1427 = vsub.s32 0, %v1426
        %v1428 = vrot.slane %v1423, %v1427
        %v1429 = vlaneseq
        %v1430 = vshrl.u32 %v1429, 7
        %v1431 = vsub.s32 2, %v1430
        %v1432 = vrot.slane %v1423, %v1431
        %v1435 = vlaneseq
        %v1436 = vshrl.u32 %v1435, 7
        %v1437 = vsub.s32 0, %v1436
        %v1438 = vrot.slane %v1428, %v1437
        %v1439 = vlaneseq
        %v1440 = vshrl.u32 %v1439, 7
        %v1441 = vsub.s32 0, %v1440
        %v1442 = vrot.slane %v1432, %v1441
        %v1443 = vmul.f32 %v1420, %v1438
        %v1444 = vmul.f32 %v1421, %v1442
        %v1445 = vadd.f32 %v1443, %v1444
        %1446 = vadd.xlane.f32.xlu0 %v1445
        %v1447 = vpop.xlane.xlu0 %1446
        %v1448 = vld [vmem:[#allocation2] sm:$0x1]
        %1450 = vset.pattern.permute.xlu0 0
        %1451 = vperm.xlu0 %1450, %v1448
        %v1452 = vpop.permute.xlu0 %1451
        %v1454 = vlaneseq
        %v1455 = vshrl.u32 %v1454, 7
        %v1456 = vsub.s32 0, %v1455
        %v1457 = vrot.slane %v1452, %v1456
        %v1458 = vadd.f32 %v1447, %v1457
        %v1459 = vld [vmem:[%s611] sm:$0x1]
        %vm1460 = vcmp.ne.s32.totalorder %v1459, 0
        %v1462 = vlaneseq
        %v1463 = vshrl.u32 %v1462, 7
        %v1464 = vsub.s32 0, %v1463
        %v1465 = vrot.slane %v1458, %v1464
        %v1466 = vlaneseq
        %v1467 = vshrl.u32 %v1466, 7
        %v1468 = vsub.s32 1, %v1467
        %v1469 = vrot.slane %v1458, %v1468
        %v1470 = vlaneseq
        %v1471 = vshrl.u32 %v1470, 7
        %v1472 = vsub.s32 2, %v1471
        %v1473 = vrot.slane %v1458, %v1472
        %v1474 = vlaneseq
        %v1475 = vshrl.u32 %v1474, 7
        %v1476 = vsub.s32 3, %v1475
        %v1477 = vrot.slane %v1458, %v1476
        %v1478 = vlaneseq
        %v1479 = vshrl.u32 %v1478, 7
        %v1480 = vsub.s32 4, %v1479
        %v1481 = vrot.slane %v1458, %v1480
        %v1482 = vlaneseq
        %v1483 = vshrl.u32 %v1482, 7
        %v1484 = vsub.s32 5, %v1483
        %v1485 = vrot.slane %v1458, %v1484
        %v1486 = vlaneseq
        %v1487 = vshrl.u32 %v1486, 7
        %v1488 = vsub.s32 6, %v1487
        %v1489 = vrot.slane %v1458, %v1488
        %v1490 = vlaneseq
        %v1491 = vshrl.u32 %v1490, 7
        %v1492 = vsub.s32 7, %v1491
        %v1493 = vrot.slane %v1458, %v1492
        %v1494 = vcombine.low %v1465, %v1469
        %v1495 = vcombine.low %v1473, %v1477
        %v1496 = vcombine.low %v1481, %v1485
        %v1497 = vcombine.low %v1489, %v1493
        %v1499 = vunpack.c.l.s4 1966171168
        %v1500 = vunpack.c.0.s8 %v1499
        %v1501 = vlaneseq
        %v1502 = vshrl.u32 %v1501, 7
        %v1503 = vsub.s32 %v1500, %v1502
        %v1504 = vrot.slane %v1494, %v1503
        %v1506 = vunpack.c.l.s4 1966171168
        %v1507 = vunpack.c.0.s8 %v1506
        %v1508 = vlaneseq
        %v1509 = vshrl.u32 %v1508, 7
        %v1510 = vsub.s32 %v1507, %v1509
        %v1511 = vrot.slane %v1495, %v1510
        %v1513 = vunpack.c.l.s4 1966171168
        %v1514 = vunpack.c.0.s8 %v1513
        %v1515 = vlaneseq
        %v1516 = vshrl.u32 %v1515, 7
        %v1517 = vsub.s32 %v1514, %v1516
        %v1518 = vrot.slane %v1496, %v1517
        %v1520 = vunpack.c.l.s4 1966171168
        %v1521 = vunpack.c.0.s8 %v1520
        %v1522 = vlaneseq
        %v1523 = vshrl.u32 %v1522, 7
        %v1524 = vsub.s32 %v1521, %v1523
        %v1525 = vrot.slane %v1497, %v1524
        %v1526 = vcombine.low %v1504, %v1511
        %v1527 = vcombine.low %v1518, %v1525
        %v1529 = vunpack.c.l.s4 1966171168
        %v1530 = vunpack.c.0.s8 %v1529
        %v1531 = vlaneseq
        %v1532 = vshrl.u32 %v1531, 7
        %v1533 = vsub.s32 %v1530, %v1532
        %v1534 = vrot.slane %v1526, %v1533
        %v1536 = vunpack.c.l.s4 1966171168
        %v1537 = vunpack.c.0.s8 %v1536
        %v1538 = vlaneseq
        %v1539 = vshrl.u32 %v1538, 7
        %v1540 = vsub.s32 %v1537, %v1539
        %v1541 = vrot.slane %v1527, %v1540
        %v1542 = vcombine.low %v1534, %v1541
        %1543 = vset.pattern.permute.xlu0 0
        %1544 = vperm.xlu0 %1543, %v1542
        %v1545 = vpop.permute.xlu0 %1544
        %v1546 = vlaneseq
        %v1547 = vand.u32 %v1546, 127
        %v1548 = vlaneseq
        %v1549 = vshrl.u32 %v1548, 7
        %v1550 = vsub.s32 %v1547, %v1549
        %v1551 = vrot.slane %v1545, %v1550
        %v1553 = vunpack.c.l.s4 1966171168
        %v1554 = vunpack.c.0.s8 %v1553
        %v1555 = vlaneseq
        %v1556 = vshrl.u32 %v1555, 7
        %v1557 = vsub.s32 %v1554, %v1556
        %v1558 = vrot.slane %v1551, %v1557
        %v1560 = vunpack.c.l.s4 1966171168
        %v1561 = vunpack.c.0.s8 %v1560
        %v1562 = vlaneseq
        %v1563 = vshrl.u32 %v1562, 7
        %v1564 = vsub.s32 %v1561, %v1563
        %v1565 = vrot.slane %v1558, %v1564
        %v1567 = vsel %vm1460, -65504.0, %v1565
        %vm1568 = vcmask 57344
        %v1569 = vsel %vm1568, %v1567, -inf
        %1570 = vmax.xlane.f32.xlu0 %v1569
        %v1571 = vpop.xlane.xlu0 %1570
        %v1572 = vsub.f32 %v1567, %v1571
        %v1573 = vmul.f32 %v1572, 1.442695
        %v1574 = vpow.pop %v1573
        %v1575 = vsel %vm1568, %v1574, 0.0
        %1576 = vadd.xlane.f32.xlu0 %v1575
        %v1577 = vpop.xlane.xlu0 %1576
        %v1578 = vrcp.pop %v1577
        %v1579 = vmul.f32 %v1577, %v1578
        %v1580 = vsub.f32 2.0, %v1579
        %v1581 = vmul.f32 %v1578, %v1580
        %v1582 = vmul.f32 %v1574, %v1581
        %1583 = vst.msk [vmem:[%s605] sm:$0x1] %vm1568, %v1582
        %s1584 = sand.u32 %s375, 1
        %s1585 = scalar_lea.sflag [#allocation5], %s1584
        %s1586 = sand.u32 %s375, 1
        %s1587 = scalar_lea.vmem [#allocation14], %s1586
        // Predicated region
        $region105: #{tpu_custom_call.1} parent=79 // pred_check
          %p1588 = pneg %p385
        $region106: #{tpu_custom_call.1} parent=79 // pred_check_branch
          %1590 = sbr.rel (%p1588) target = $region108
        $region107: #{tpu_custom_call.1} parent=79 // pred_region
          %s1592 = ssub.s32 16, 16
          %1593 = vsyncadd %s1585, %s1592
          %s1594 = smul.addr %s37, 16
          %s1595 = scalar_lea.hbm %s15, %s1594
          %s1597 = sshll.u32 %s1587, 4
          %s1598 = int_to_ptr.vmem [resolvable:$true] %s1597
          %1600 = dma.vmem_to_hbm [thread:$0]  %s1598, 16, %s1595, %s1585
        $region108: #{tpu_custom_call.1} parent=79 // pred_fallthru
          _
      $region80: #{tpu_custom_call.1} parent=5 // pred_fallthru
        _
      %p1601 = scmp.le.s32.totalorder 2, %s32
      // Predicated region
      $region109: #{tpu_custom_call.1} parent=5 // pred_check
        %p1602 = pneg %p1601
      $region110: #{tpu_custom_call.1} parent=5 // pred_check_branch
        %1604 = sbr.rel (%p1602) target = $region112
      $region111: #{tpu_custom_call.1} parent=5 // pred_region
        %s1605 = ssub.s32 %s32, 2
        // Predicated region
        $region113: #{tpu_custom_call.1} parent=111 // pred_check
          %p1606 = pneg %p391
        $region114: #{tpu_custom_call.1} parent=111 // pred_check_branch
          %1608 = sbr.rel (%p1606) target = $region116
        $region115: #{tpu_custom_call.1} parent=111 // pred_region
          %s1609 = sand.u32 %s376, 1
          %s1610 = scalar_lea.sflag [#allocation5], %s1609
          %s1611 = sand.u32 %s376, 1
          %s1612 = scalar_lea.vmem [#allocation14], %s1611
          %1613 = dma.done %s1610, 16
        $region116: #{tpu_custom_call.1} parent=111 // pred_fallthru
          _
      $region112: #{tpu_custom_call.1} parent=5 // pred_fallthru
        _
    $region6: #{tpu_custom_call.1} parent=1 // loop_footer
      %s36 = sadd.s32 1, %s32
    $region7: #{tpu_custom_call.1} parent=1 // loop_footer_branch
      %31 = sbr.rel target = $region3
    $region8: #{tpu_custom_call.1} parent=1 // loop_exit
      _
    %1614 = vsyncpa [#allocation4], 1
    %s1615 = scalar_lea.sflag [#allocation4], 1
    %1616 = vsyncpa %s1615, 1
    %1617 = vsyncpa [#allocation7], 1
    %1618 = vsyncpa [#allocation10], 1
    %1619 = vsyncpa [#allocation13], 1
    %1620 = vsyncpa [#allocation5], 1
    %s1621 = scalar_lea.sflag [#allocation5], 1
    %1622 = vsyncpa %s1621, 1

</llo_original>
